<compile_context>
chip_gen: v7x
topology: tpu7x:2x2x1
jax: 0.10.0
libtpu: 0.0.40
codegen_flags: <defaults>
</compile_context>

<pallas_src>
import jax
import jax.numpy as jnp
from jax.experimental import pallas as pl
from jax.experimental.pallas import tpu as pltpu

# ----------------------- small, module-consistent hyper-parameters -----------------------
EMB_DIM = 8                    # D (embed_dim)
VOCAB = (20, 20, 16)           # vocab_size; VOCAB[2] drives the DDI-GCN and the output size
HID = 2 * EMB_DIM              # GRU hidden size (emb_dim * 2)
KERNEL_NUM = 100               # Co (WordCnn default kernel_num)
KERNEL_SIZES = (3, 4, 5)       # WordCnn default kernel_sizes
WORD_VOCAB = 50                # word2vec table rows (stands in for torch.load(word2vec_path))
WORD_EMB = 16                  # word2vec embedding width E
TEXT_LEN = 32                  # words per clinical note (stands in for BatchNorm1d(2500)'s 2500)
N_ADM = 3                      # number of admissions (visit-sequence length)
N_SEQ = 3                      # GRU recurrences batched together: diag codes, proc codes, notes
BN_EPS = 1e-5

NK = len(KERNEL_SIZES)
# column offsets of each kernel-size block inside the fused im2col matrix
_COL_OFF, _off = [], 0
for _K in KERNEL_SIZES:
    _COL_OFF.append(_off)
    _off += _K * WORD_EMB
COL_OFF = tuple(_COL_OFF)
W_TOT = _off                                              # 192
RMAX = -(-(TEXT_LEN - min(KERNEL_SIZES) + 1) // 8) * 8    # 32: rows per (adm, K) block, 8-aligned
TOT_ROWS = N_ADM * NK * RMAX                              # 288


# ----------------------------------- the fused Pallas kernel -----------------------------------
def _fusionnet_kernel(p_ref, i12_ref, adj_ref,
                      wall_ref, cbias_ref, fcw_ref, fcb_ref,
                      wih_ref, whh_ref, gb_ref, attw_ref, attb_ref, exp_ref,
                      wcn_ref, bcn_ref,
                      gw1_ref, gw2_ref, gcb_ref,
                      convT_ref, oexp_ref, otile_ref, w16_ref, outT_ref, fbias_ref,
                      out_ref, o_scr):
    D, V2 = EMB_DIM, VOCAB[2]
    NSG = N_SEQ * HID                                     # 48

    # ---------------- WordCNN: all (admission, kernel-size) convs as ONE im2col matmul ----------------
    # Padded patch rows are edge-copies -> the per-block max-pool is unaffected.
    act = jnp.dot(p_ref[...], wall_ref[...], preferred_element_type=jnp.float32)  # (TOT, Co)
    cbias = cbias_ref[...]                                                         # (NK, Co)
    feats = []
    for t in range(N_ADM):                                # static, unrolled (tiny)
        parts = []
        for k in range(NK):
            b = t * NK + k
            blk = jnp.max(act[b * RMAX:(b + 1) * RMAX, :], axis=0, keepdims=True)  # (1, Co)
            # relu is monotone -> max(relu(x+b)) == relu(max(x)+b); bias added post-pool
            parts.append(jnp.maximum(blk + cbias[k:k + 1, :], 0.0))
        feats.append(jnp.concatenate(parts, axis=1))      # (1, NK*Co)
    feat = jnp.concatenate(feats, axis=0)                 # (N_ADM, NK*Co)
    note_seq = (jnp.dot(feat, fcw_ref[...], preferred_element_type=jnp.float32)
                + fcb_ref[...])                           # (N_ADM, D)

    # ---------------- three GRUs side-by-side on the lane axis + attention pooling ----------------
    # Input projection hoisted out of the time loop; split matmul avoids a lane concat of
    # [code-embeddings | note-features].
    wih = wih_ref[...]                                    # (3D, 3*NSG)
    gi_all = (jnp.dot(i12_ref[...], wih[0:2 * D, :], preferred_element_type=jnp.float32)
              + jnp.dot(note_seq, wih[2 * D:3 * D, :], preferred_element_type=jnp.float32)
              + gb_ref[0:1, :])                           # (N_ADM, 3*NSG)
    whh = whh_ref[...]                                    # (NSG, 3*NSG)
    bhh = gb_ref[1:2, :]
    h = jnp.zeros((1, NSG), jnp.float32)
    for t in range(N_ADM):                                # T small & static -> unrolled
        gi = gi_all[t:t + 1, :]
        gh = jnp.dot(h, whh, preferred_element_type=jnp.float32) + bhh
        r = jax.nn.sigmoid(gi[:, 0:NSG] + gh[:, 0:NSG])
        z = jax.nn.sigmoid(gi[:, NSG:2 * NSG] + gh[:, NSG:2 * NSG])
        n = jnp.tanh(gi[:, 2 * NSG:3 * NSG] + r * gh[:, 2 * NSG:3 * NSG])
        h = (1.0 - z) * n + z * h
        o_scr[t:t + 1, :] = h
    o = o_scr[...]                                                             # (T, NSG)
    logits = jnp.dot(o, attw_ref[...], preferred_element_type=jnp.float32) + attb_ref[...]
    e = jnp.exp(logits - jnp.max(logits, axis=0, keepdims=True))               # (T, N_SEQ)
    att = e * pl.reciprocal(jnp.sum(e, axis=0, keepdims=True), approx=True)    # softmax over T
    att_e = jnp.dot(att, exp_ref[...], preferred_element_type=jnp.float32)     # (T, NSG)
    f = jnp.sum(o * att_e, axis=0, keepdims=True)                              # (1, NSG)
    # fused CodeNet.feature1 / NoteNet.feature1 (ReLU -> Linear), block-diagonal weights
    cn = (jnp.dot(jnp.maximum(f, 0.0), wcn_ref[...], preferred_element_type=jnp.float32)
          + bcn_ref[...])                                                      # (1, 2D)

    # ---------------- two-layer GCN on identity features (x = I so x @ W1 == W1) ----------------
    adj = adj_ref[...]
    h1 = jnp.maximum(jnp.dot(adj, gw1_ref[...], preferred_element_type=jnp.float32)
                     + gcb_ref[0:1, :], 0.0)
    h2 = jnp.dot(adj, jnp.dot(h1, gw2_ref[...], preferred_element_type=jnp.float32),
                 preferred_element_type=jnp.float32) + gcb_ref[1:2, :]
    ddi = jnp.mean(h2, axis=0, keepdims=True)                                  # (1, D)

    # ---------------- fusion head, row-vector (1, D) layout throughout ----------------
    code = cn[:, 0:D]
    note = cn[:, D:2 * D]

    bias = fbias_ref[...]
    conv_b = bias[:, 0:D]
    fci_b = bias[:, D:2 * D]
    inter_b = bias[:, 2 * D:3 * D]
    fc1_b = bias[:, 3 * D:3 * D + 1]
    fc2_b = bias[:, 3 * D + 1:3 * D + 2]
    out_b = bias[:, 3 * D + 2:3 * D + 2 + V2]

    # conv over outer([code;1],[note;1]): x_e1[c] = sum_{i,j} W[c,i,j] code1[i] note1[j] + b[c]
    one = jnp.ones((1, 1), jnp.float32)
    code1 = jnp.concatenate([code, one], axis=1)                               # (1, D+1)
    note1 = jnp.concatenate([note, one], axis=1)
    op_row = (jnp.dot(code1, oexp_ref[...], preferred_element_type=jnp.float32)
              * jnp.dot(note1, otile_ref[...], preferred_element_type=jnp.float32))  # (1,(D+1)^2)
    x_e1 = jnp.dot(op_row, convT_ref[...], preferred_element_type=jnp.float32) + conv_b

    w16 = w16_ref[...]                                    # (2D, 2D+2) = [fci | inter | fc1 | fc2]
    x_i1 = jnp.dot(cn, w16[:, 0:D], preferred_element_type=jnp.float32) + fci_b      # (1, D)
    inter = jnp.dot(jnp.concatenate([x_e1, x_i1], axis=1), w16[:, D:2 * D],
                    preferred_element_type=jnp.float32) + inter_b                    # (1, D)
    w1 = jax.nn.sigmoid(jnp.dot(jnp.concatenate([ddi, code], axis=1), w16[:, 2 * D:2 * D + 1],
                                preferred_element_type=jnp.float32) + fc1_b)          # (1, 1)
    w2 = jax.nn.sigmoid(jnp.dot(jnp.concatenate([ddi, note], axis=1), w16[:, 2 * D + 1:2 * D + 2],
                                preferred_element_type=jnp.float32) + fc2_b)          # (1, 1)
    hh = jnp.maximum(jnp.concatenate([w1 * code, w2 * note, inter], axis=1), 0.0)     # (1, 3D)
    out_ref[...] = (jnp.dot(hh, outT_ref[...], preferred_element_type=jnp.float32)
                    + out_b)                                                          # (1, V2)


# ----------------------------------- pallas_call wrapper -----------------------------------
def _fused_call(patches, i12, adj_norm, q):
    args = (patches, i12, adj_norm,
            q['cnn_wall'], q['cnn_bias'], q['cnn_fcT'], q['cnn_fcb'],
            q['gru_wih'], q['gru_whh'], q['gru_bias'], q['att_w'], q['att_b'], q['att_expand'],
            q['feat_w'], q['feat_b'],
            q['gcn_w1'], q['gcn_w2'], q['gcn_b'],
            q['fuse_convT'], q['fuse_expand'], q['fuse_tile'],
            q['fuse_w16'], q['fuse_outT'], q['fuse_bias'])
    return pl.pallas_call(
        _fusionnet_kernel,
        out_shape=jax.ShapeDtypeStruct((1, VOCAB[2]), jnp.float32),
        in_specs=[pl.BlockSpec(memory_space=pltpu.MemorySpace.VMEM)] * len(args),
        out_specs=pl.BlockSpec(memory_space=pltpu.MemorySpace.VMEM),
        scratch_shapes=[pltpu.VMEM((N_ADM, N_SEQ * HID), jnp.float32)],
        compiler_params=pltpu.CompilerParams(vmem_limit_bytes=8 * 1024 * 1024),
    )(*args)


# ----------------------------------- module forward (jit'ed glue + 1 kernel) -----------------------------------
@jax.jit
def fusionnet_forward(codes0, codes1, texts, adj_norm, q):
    # CodeNet embedding gathers + per-admission token mean (cheap glue, fused by XLA)
    i1 = jnp.mean(q['emb0'][codes0], axis=1)              # (T, D)
    i2 = jnp.mean(q['emb1'][codes1], axis=1)              # (T, D)
    i12 = jnp.concatenate([i1, i2], axis=1)               # (T, 2D)

    # NoteNet front-end: word2vec lookup + BatchNorm1d eval (default running stats) + im2col.
    # Rows are edge-padded (duplicated last patch) so the in-kernel max-pool is unaffected;
    # columns are zero-padded into the kernel-size block layout matching cnn_wall.
    scale = 1.0 / jnp.sqrt(jnp.float32(1.0 + BN_EPS))
    blocks = []
    for t in range(N_ADM):
        x = q['word2vec'][texts[t]] * scale               # (L, E)
        for K, off in zip(KERNEL_SIZES, COL_OFF):
            nrow = TEXT_LEN - K + 1
            pk = jnp.concatenate([x[k:nrow + k, :] for k in range(K)], axis=1)   # (nrow, K*E)
            pk = jnp.pad(pk, ((0, RMAX - nrow), (0, 0)), mode='edge')
            pk = jnp.pad(pk, ((0, 0), (off, W_TOT - off - K * WORD_EMB)))
            blocks.append(pk)
    patches = jnp.concatenate(blocks, axis=0)             # (TOT_ROWS, W_TOT)

    # single fused kernel: WordCNN + 3xGRU/attention + GCN + fusion head
    return _fused_call(patches, i12, adj_norm, q)         # (1, VOCAB[2])


# ----------------------------------- one-time parameter packing -----------------------------------
def pack_params(p):
    """Pre-transpose / block-pack all weights and selection constants once (outside jit)."""
    D, G, V2, Co = EMB_DIM, HID, VOCAB[2], KERNEL_NUM
    q = {'emb0': p['emb0'], 'emb1': p['emb1'], 'word2vec': p['word2vec']}

    # fused WordCnn: block-diagonal im2col weight, stacked biases, pre-transposed fc1
    wall = jnp.zeros((W_TOT, Co), jnp.float32)
    for K, off in zip(KERNEL_SIZES, COL_OFF):
        wall = wall.at[off:off + K * WORD_EMB, :].set(
            p[f'conv{K}_w'].reshape(Co, K * WORD_EMB).T)
    q['cnn_wall'] = wall
    q['cnn_bias'] = jnp.stack([p[f'conv{K}_b'] for K in KERNEL_SIZES], axis=0)   # (NK, Co)
    q['cnn_fcT'] = p['cnn_fc1_w'].T                                              # (NK*Co, D)
    q['cnn_fcb'] = p['cnn_fc1_b'].reshape(1, D)

    # batched GRU: 3 recurrences on the lane axis; gate columns grouped [r | z | n],
    # each gate block is N_SEQ*G wide with sequence s at lanes s*G:(s+1)*G.
    NSG = N_SEQ * G
    wih = jnp.zeros((N_SEQ * D, 3 * NSG), jnp.float32)
    whh = jnp.zeros((NSG, 3 * NSG), jnp.float32)
    gbias = jnp.zeros((2, 3 * NSG), jnp.float32)          # row 0 = b_ih, row 1 = b_hh
    attw = jnp.zeros((NSG, N_SEQ), jnp.float32)
    attb = jnp.zeros((1, N_SEQ), jnp.float32)
    names = (('gru0', 'att1'), ('gru1', 'att2'), ('gruN', 'attN'))
    for s, (gname, aname) in enumerate(names):
        wihT = p[f'{gname}_wih'].T                        # (D, 3G), columns [r|z|n]
        whhT = p[f'{gname}_whh'].T                        # (G, 3G)
        for g in range(3):
            dst = slice(g * NSG + s * G, g * NSG + (s + 1) * G)
            src = slice(g * G, (g + 1) * G)
            wih = wih.at[s * D:(s + 1) * D, dst].set(wihT[:, src])
            whh = whh.at[s * G:(s + 1) * G, dst].set(whhT[:, src])
            gbias = gbias.at[0, dst].set(p[f'{gname}_bih'][src])
            gbias = gbias.at[1, dst].set(p[f'{gname}_bhh'][src])
        attw = attw.at[s * G:(s + 1) * G, s].set(p[f'{aname}_w'].reshape(G))
        attb = attb.at[0, s].set(p[f'{aname}_b'][0])
    q['gru_wih'], q['gru_whh'], q['gru_bias'] = wih, whh, gbias
    q['att_w'], q['att_b'] = attw, attb
    cols = jnp.arange(NSG)
    q['att_expand'] = (cols[None, :] // G == jnp.arange(N_SEQ)[:, None]).astype(jnp.float32)
    featw = jnp.zeros((NSG, 2 * D), jnp.float32)          # block-diag [code_feat | note_feat]
    featw = featw.at[0:2 * G, 0:D].set(p['code_feat_w'].T)
    featw = featw.at[2 * G:3 * G, D:2 * D].set(p['note_feat_w'].T)
    q['feat_w'] = featw
    q['feat_b'] = jnp.concatenate([p['code_feat_b'], p['note_feat_b']]).reshape(1, 2 * D)

    # GCN + fusion head (row-vector layout, pre-transposed weights, packed biases)
    q['gcn_w1'], q['gcn_w2'] = p['gcn_w1'], p['gcn_w2']
    q['gcn_b'] = jnp.stack([p['gcn_b1'], p['gcn_b2']], axis=0)                   # (2, D)
    Dp = D + 1
    P = Dp * Dp
    q['fuse_convT'] = p['fusion_conv_w'].reshape(D, P).T                         # (P, D)
    idx = jnp.arange(P)
    q['fuse_expand'] = (idx[None, :] // Dp == jnp.arange(Dp)[:, None]).astype(jnp.float32)
    q['fuse_tile'] = (idx[None, :] % Dp == jnp.arange(Dp)[:, None]).astype(jnp.float32)
    q['fuse_w16'] = jnp.concatenate(
        [p['fci_w'].T, p['inter_w'].T, p['fc1_w'].T, p['fc2_w'].T], axis=1)      # (2D, 2D+2)
    q['fuse_outT'] = p['out_w'].T                                                # (3D, V2)
    q['fuse_bias'] = jnp.concatenate(
        [p['fusion_conv_b'], p['fci_b'], p['inter_b'],
         p['fc1_b'], p['fc2_b'], p['out_b']]).reshape(1, -1)                     # (1, 3D+2+V2)
    return q


# ----------------------------------- deterministic parameter init -----------------------------------
def init_params(key):
    ks = iter(jax.random.split(key, 64))
    D, H, V2 = EMB_DIM, HID, VOCAB[2]

    def u(shape, scale=0.1):
        return jax.random.uniform(next(ks), shape, jnp.float32, -scale, scale)

    p = {}
    # CodeNet
    p['emb0'] = u((VOCAB[0], D))
    p['emb1'] = u((VOCAB[1], D))
    s = 1.0 / (H ** 0.5)
    for i in range(2):
        p[f'gru{i}_wih'] = u((3 * H, D), s)
        p[f'gru{i}_whh'] = u((3 * H, H), s)
        p[f'gru{i}_bih'] = u((3 * H,), s)
        p[f'gru{i}_bhh'] = u((3 * H,), s)
    p['att1_w'], p['att1_b'] = u((1, H)), u((1,))
    p['att2_w'], p['att2_b'] = u((1, H)), u((1,))
    p['code_feat_w'], p['code_feat_b'] = u((D, 4 * D)), u((D,))
    # GCN
    sg = 1.0 / (D ** 0.5)
    p['gcn_w1'], p['gcn_b1'] = u((V2, D), sg), u((D,), sg)
    p['gcn_w2'], p['gcn_b2'] = u((D, D), sg), u((D,), sg)
    # WordCnn (word2vec table = tanh of random, mirroring torch.tanh(torch.load(...)))
    p['word2vec'] = jnp.tanh(jax.random.normal(next(ks), (WORD_VOCAB, WORD_EMB), jnp.float32))
    for K in KERNEL_SIZES:
        p[f'conv{K}_w'] = u((KERNEL_NUM, 1, K, WORD_EMB), 0.2)
        p[f'conv{K}_b'] = u((KERNEL_NUM,), 0.2)
    p['cnn_fc1_w'], p['cnn_fc1_b'] = u((D, NK * KERNEL_NUM)), u((D,))
    # NoteNet
    p['gruN_wih'], p['gruN_whh'] = u((3 * H, D), s), u((3 * H, H), s)
    p['gruN_bih'], p['gruN_bhh'] = u((3 * H,), s), u((3 * H,), s)
    p['attN_w'], p['attN_b'] = u((1, H)), u((1,))
    p['note_feat_w'], p['note_feat_b'] = u((D, H)), u((D,))
    # Fusion head
    p['fusion_conv_w'] = u((D, 1, D + 1, D + 1), 0.2)
    p['fusion_conv_b'] = u((D,), 0.2)
    p['fci_w'], p['fci_b'] = u((D, 2 * D)), u((D,))
    p['inter_w'], p['inter_b'] = u((D, 2 * D)), u((D,))
    p['fc1_w'], p['fc1_b'] = u((1, 2 * D)), u((1,))
    p['fc2_w'], p['fc2_b'] = u((1, 2 * D)), u((1,))
    p['out_w'], p['out_b'] = u((V2, 3 * D)), u((V2,))
    return p


# ----------------------------------- main -----------------------------------
if __name__ == "__main__":
    key = jax.random.PRNGKey(0)
    k_param, k_adj, k_data = jax.random.split(key, 3)
    params = init_params(k_param)
    packed = pack_params(params)        # one-time weight packing / pre-transpose

    # DDI adjacency + GCN row-normalization of (adj + I)
    V2 = VOCAB[2]
    a = (jax.random.uniform(k_adj, (V2, V2)) < 0.25).astype(jnp.float32)
    ddi_adj = jnp.maximum(a, a.T) * (1.0 - jnp.eye(V2))
    mx = ddi_adj + jnp.eye(V2)
    r_inv = 1.0 / jnp.sum(mx, axis=1)
    r_inv = jnp.where(jnp.isinf(r_inv), 0.0, r_inv)
    adj_norm = mx * r_inv[:, None]

    # Patient record: per-admission diag codes, proc codes, note word indices (fixed lengths)
    dks = jax.random.split(k_data, 3)
    codes0 = jax.random.randint(dks[0], (N_ADM, 5), 0, VOCAB[0])
    codes1 = jax.random.randint(dks[1], (N_ADM, 4), 0, VOCAB[1])
    texts = jax.random.randint(dks[2], (N_ADM, TEXT_LEN), 0, WORD_VOCAB)

    out = fusionnet_forward(codes0, codes1, texts, adj_norm, packed)
    out = jax.block_until_ready(out)
    assert out.shape == (1, VOCAB[2]), out.shape
    assert bool(jnp.all(jnp.isfinite(out)))
    print("KERNEL_OK")
</pallas_src>

<mosaic_0001>
module attributes {stable_mosaic.version = 11 : i64} {
  func.func @_fusionnet_kernel(%arg0: memref<288x192xf32, #tpu.memory_space<vmem>>, %arg1: memref<3x16xf32, #tpu.memory_space<vmem>>, %arg2: memref<16x16xf32, #tpu.memory_space<vmem>>, %arg3: memref<192x100xf32, #tpu.memory_space<vmem>>, %arg4: memref<3x100xf32, #tpu.memory_space<vmem>>, %arg5: memref<300x8xf32, #tpu.memory_space<vmem>>, %arg6: memref<1x8xf32, #tpu.memory_space<vmem>>, %arg7: memref<24x144xf32, #tpu.memory_space<vmem>>, %arg8: memref<48x144xf32, #tpu.memory_space<vmem>>, %arg9: memref<2x144xf32, #tpu.memory_space<vmem>>, %arg10: memref<48x3xf32, #tpu.memory_space<vmem>>, %arg11: memref<1x3xf32, #tpu.memory_space<vmem>>, %arg12: memref<3x48xf32, #tpu.memory_space<vmem>>, %arg13: memref<48x16xf32, #tpu.memory_space<vmem>>, %arg14: memref<1x16xf32, #tpu.memory_space<vmem>>, %arg15: memref<16x8xf32, #tpu.memory_space<vmem>>, %arg16: memref<8x8xf32, #tpu.memory_space<vmem>>, %arg17: memref<2x8xf32, #tpu.memory_space<vmem>>, %arg18: memref<81x8xf32, #tpu.memory_space<vmem>>, %arg19: memref<9x81xf32, #tpu.memory_space<vmem>>, %arg20: memref<9x81xf32, #tpu.memory_space<vmem>>, %arg21: memref<16x18xf32, #tpu.memory_space<vmem>>, %arg22: memref<24x16xf32, #tpu.memory_space<vmem>>, %arg23: memref<1x42xf32, #tpu.memory_space<vmem>>, %arg24: memref<1x16xf32, #tpu.memory_space<vmem>>, %arg25: memref<3x48xf32, #tpu.memory_space<vmem>>) attributes {dimension_semantics = [], scalar_prefetch = 0 : i64, scratch_operands = 1 : i64, tpu.core_type = #tpu.core_type<tc>} {
    %c0 = arith.constant 0 : index
    %c0_0 = arith.constant 0 : index
    %0 = vector.load %arg0[%c0, %c0_0] : memref<288x192xf32, #tpu.memory_space<vmem>>, vector<288x192xf32>
    %c0_1 = arith.constant 0 : index
    %c0_2 = arith.constant 0 : index
    %1 = vector.load %arg3[%c0_1, %c0_2] : memref<192x100xf32, #tpu.memory_space<vmem>>, vector<192x100xf32>
    %cst = arith.constant dense<0.000000e+00> : vector<288x100xf32>
    %2 = tpu.matmul %0, %1, %cst {dimension_numbers = #tpu.dot_dimension_numbers<[1], [0], [0], [1], [0, 0, 1, 1], [], []>} : vector<288x192xf32>, vector<192x100xf32>, vector<288x100xf32> -> vector<288x100xf32>
    %c0_3 = arith.constant 0 : index
    %c0_4 = arith.constant 0 : index
    %3 = vector.load %arg4[%c0_3, %c0_4] : memref<3x100xf32, #tpu.memory_space<vmem>>, vector<3x100xf32>
    %4 = vector.extract_strided_slice %2 {offsets = [0, 0], sizes = [32, 100], strides = [1, 1]} : vector<288x100xf32> to vector<32x100xf32>
    %cst_5 = arith.constant dense<0xFF800000> : vector<100xf32>
    %5 = vector.multi_reduction <maximumf>, %4, %cst_5 [0] : vector<32x100xf32> to vector<100xf32>
    %6 = vector.shape_cast %5 : vector<100xf32> to vector<1x100xf32>
    %7 = vector.extract_strided_slice %3 {offsets = [0, 0], sizes = [1, 100], strides = [1, 1]} : vector<3x100xf32> to vector<1x100xf32>
    %8 = arith.addf %6, %7 : vector<1x100xf32>
    %cst_6 = arith.constant 0.000000e+00 : f32
    %9 = vector.broadcast %cst_6 : f32 to vector<1x100xf32>
    %10 = arith.maximumf %8, %9 : vector<1x100xf32>
    %11 = vector.extract_strided_slice %2 {offsets = [32, 0], sizes = [32, 100], strides = [1, 1]} : vector<288x100xf32> to vector<32x100xf32>
    %cst_7 = arith.constant dense<0xFF800000> : vector<100xf32>
    %12 = vector.multi_reduction <maximumf>, %11, %cst_7 [0] : vector<32x100xf32> to vector<100xf32>
    %13 = vector.shape_cast %12 : vector<100xf32> to vector<1x100xf32>
    %14 = vector.extract_strided_slice %3 {offsets = [1, 0], sizes = [1, 100], strides = [1, 1]} : vector<3x100xf32> to vector<1x100xf32>
    %15 = arith.addf %13, %14 : vector<1x100xf32>
    %cst_8 = arith.constant 0.000000e+00 : f32
    %16 = vector.broadcast %cst_8 : f32 to vector<1x100xf32>
    %17 = arith.maximumf %15, %16 : vector<1x100xf32>
    %18 = vector.extract_strided_slice %2 {offsets = [64, 0], sizes = [32, 100], strides = [1, 1]} : vector<288x100xf32> to vector<32x100xf32>
    %cst_9 = arith.constant dense<0xFF800000> : vector<100xf32>
    %19 = vector.multi_reduction <maximumf>, %18, %cst_9 [0] : vector<32x100xf32> to vector<100xf32>
    %20 = vector.shape_cast %19 : vector<100xf32> to vector<1x100xf32>
    %21 = vector.extract_strided_slice %3 {offsets = [2, 0], sizes = [1, 100], strides = [1, 1]} : vector<3x100xf32> to vector<1x100xf32>
    %22 = arith.addf %20, %21 : vector<1x100xf32>
    %cst_10 = arith.constant 0.000000e+00 : f32
    %23 = vector.broadcast %cst_10 : f32 to vector<1x100xf32>
    %24 = arith.maximumf %22, %23 : vector<1x100xf32>
    %25 = tpu.concatenate %10, %17, %24 in 1 : vector<1x100xf32>, vector<1x100xf32>, vector<1x100xf32> -> vector<1x300xf32>
    %26 = vector.extract_strided_slice %2 {offsets = [96, 0], sizes = [32, 100], strides = [1, 1]} : vector<288x100xf32> to vector<32x100xf32>
    %cst_11 = arith.constant dense<0xFF800000> : vector<100xf32>
    %27 = vector.multi_reduction <maximumf>, %26, %cst_11 [0] : vector<32x100xf32> to vector<100xf32>
    %28 = vector.shape_cast %27 : vector<100xf32> to vector<1x100xf32>
    %29 = vector.extract_strided_slice %3 {offsets = [0, 0], sizes = [1, 100], strides = [1, 1]} : vector<3x100xf32> to vector<1x100xf32>
    %30 = arith.addf %28, %29 : vector<1x100xf32>
    %cst_12 = arith.constant 0.000000e+00 : f32
    %31 = vector.broadcast %cst_12 : f32 to vector<1x100xf32>
    %32 = arith.maximumf %30, %31 : vector<1x100xf32>
    %33 = vector.extract_strided_slice %2 {offsets = [128, 0], sizes = [32, 100], strides = [1, 1]} : vector<288x100xf32> to vector<32x100xf32>
    %cst_13 = arith.constant dense<0xFF800000> : vector<100xf32>
    %34 = vector.multi_reduction <maximumf>, %33, %cst_13 [0] : vector<32x100xf32> to vector<100xf32>
    %35 = vector.shape_cast %34 : vector<100xf32> to vector<1x100xf32>
    %36 = vector.extract_strided_slice %3 {offsets = [1, 0], sizes = [1, 100], strides = [1, 1]} : vector<3x100xf32> to vector<1x100xf32>
    %37 = arith.addf %35, %36 : vector<1x100xf32>
    %cst_14 = arith.constant 0.000000e+00 : f32
    %38 = vector.broadcast %cst_14 : f32 to vector<1x100xf32>
    %39 = arith.maximumf %37, %38 : vector<1x100xf32>
    %40 = vector.extract_strided_slice %2 {offsets = [160, 0], sizes = [32, 100], strides = [1, 1]} : vector<288x100xf32> to vector<32x100xf32>
    %cst_15 = arith.constant dense<0xFF800000> : vector<100xf32>
    %41 = vector.multi_reduction <maximumf>, %40, %cst_15 [0] : vector<32x100xf32> to vector<100xf32>
    %42 = vector.shape_cast %41 : vector<100xf32> to vector<1x100xf32>
    %43 = vector.extract_strided_slice %3 {offsets = [2, 0], sizes = [1, 100], strides = [1, 1]} : vector<3x100xf32> to vector<1x100xf32>
    %44 = arith.addf %42, %43 : vector<1x100xf32>
    %cst_16 = arith.constant 0.000000e+00 : f32
    %45 = vector.broadcast %cst_16 : f32 to vector<1x100xf32>
    %46 = arith.maximumf %44, %45 : vector<1x100xf32>
    %47 = tpu.concatenate %32, %39, %46 in 1 : vector<1x100xf32>, vector<1x100xf32>, vector<1x100xf32> -> vector<1x300xf32>
    %48 = vector.extract_strided_slice %2 {offsets = [192, 0], sizes = [32, 100], strides = [1, 1]} : vector<288x100xf32> to vector<32x100xf32>
    %cst_17 = arith.constant dense<0xFF800000> : vector<100xf32>
    %49 = vector.multi_reduction <maximumf>, %48, %cst_17 [0] : vector<32x100xf32> to vector<100xf32>
    %50 = vector.shape_cast %49 : vector<100xf32> to vector<1x100xf32>
    %51 = vector.extract_strided_slice %3 {offsets = [0, 0], sizes = [1, 100], strides = [1, 1]} : vector<3x100xf32> to vector<1x100xf32>
    %52 = arith.addf %50, %51 : vector<1x100xf32>
    %cst_18 = arith.constant 0.000000e+00 : f32
    %53 = vector.broadcast %cst_18 : f32 to vector<1x100xf32>
    %54 = arith.maximumf %52, %53 : vector<1x100xf32>
    %55 = vector.extract_strided_slice %2 {offsets = [224, 0], sizes = [32, 100], strides = [1, 1]} : vector<288x100xf32> to vector<32x100xf32>
    %cst_19 = arith.constant dense<0xFF800000> : vector<100xf32>
    %56 = vector.multi_reduction <maximumf>, %55, %cst_19 [0] : vector<32x100xf32> to vector<100xf32>
    %57 = vector.shape_cast %56 : vector<100xf32> to vector<1x100xf32>
    %58 = vector.extract_strided_slice %3 {offsets = [1, 0], sizes = [1, 100], strides = [1, 1]} : vector<3x100xf32> to vector<1x100xf32>
    %59 = arith.addf %57, %58 : vector<1x100xf32>
    %cst_20 = arith.constant 0.000000e+00 : f32
    %60 = vector.broadcast %cst_20 : f32 to vector<1x100xf32>
    %61 = arith.maximumf %59, %60 : vector<1x100xf32>
    %62 = vector.extract_strided_slice %2 {offsets = [256, 0], sizes = [32, 100], strides = [1, 1]} : vector<288x100xf32> to vector<32x100xf32>
    %cst_21 = arith.constant dense<0xFF800000> : vector<100xf32>
    %63 = vector.multi_reduction <maximumf>, %62, %cst_21 [0] : vector<32x100xf32> to vector<100xf32>
    %64 = vector.shape_cast %63 : vector<100xf32> to vector<1x100xf32>
    %65 = vector.extract_strided_slice %3 {offsets = [2, 0], sizes = [1, 100], strides = [1, 1]} : vector<3x100xf32> to vector<1x100xf32>
    %66 = arith.addf %64, %65 : vector<1x100xf32>
    %cst_22 = arith.constant 0.000000e+00 : f32
    %67 = vector.broadcast %cst_22 : f32 to vector<1x100xf32>
    %68 = arith.maximumf %66, %67 : vector<1x100xf32>
    %69 = tpu.concatenate %54, %61, %68 in 1 : vector<1x100xf32>, vector<1x100xf32>, vector<1x100xf32> -> vector<1x300xf32>
    %70 = tpu.concatenate %25, %47, %69 in 0 : vector<1x300xf32>, vector<1x300xf32>, vector<1x300xf32> -> vector<3x300xf32>
    %c0_23 = arith.constant 0 : index
    %c0_24 = arith.constant 0 : index
    %71 = vector.load %arg5[%c0_23, %c0_24] : memref<300x8xf32, #tpu.memory_space<vmem>>, vector<300x8xf32>
    %cst_25 = arith.constant dense<0.000000e+00> : vector<3x8xf32>
    %72 = tpu.matmul %70, %71, %cst_25 {dimension_numbers = #tpu.dot_dimension_numbers<[1], [0], [0], [1], [0, 0, 1, 1], [], []>} : vector<3x300xf32>, vector<300x8xf32>, vector<3x8xf32> -> vector<3x8xf32>
    %c0_26 = arith.constant 0 : index
    %c0_27 = arith.constant 0 : index
    %73 = vector.load %arg6[%c0_26, %c0_27] : memref<1x8xf32, #tpu.memory_space<vmem>>, vector<1x8xf32>
    %74 = vector.broadcast %73 : vector<1x8xf32> to vector<3x8xf32>
    %75 = arith.addf %72, %74 : vector<3x8xf32>
    %c0_28 = arith.constant 0 : index
    %c0_29 = arith.constant 0 : index
    %76 = vector.load %arg7[%c0_28, %c0_29] : memref<24x144xf32, #tpu.memory_space<vmem>>, vector<24x144xf32>
    %c0_30 = arith.constant 0 : index
    %c0_31 = arith.constant 0 : index
    %77 = vector.load %arg1[%c0_30, %c0_31] : memref<3x16xf32, #tpu.memory_space<vmem>>, vector<3x16xf32>
    %78 = vector.extract_strided_slice %76 {offsets = [0, 0], sizes = [16, 144], strides = [1, 1]} : vector<24x144xf32> to vector<16x144xf32>
    %cst_32 = arith.constant dense<0.000000e+00> : vector<3x144xf32>
    %79 = tpu.matmul %77, %78, %cst_32 {dimension_numbers = #tpu.dot_dimension_numbers<[1], [0], [0], [1], [0, 0, 1, 1], [], []>} : vector<3x16xf32>, vector<16x144xf32>, vector<3x144xf32> -> vector<3x144xf32>
    %80 = vector.extract_strided_slice %76 {offsets = [16, 0], sizes = [8, 144], strides = [1, 1]} : vector<24x144xf32> to vector<8x144xf32>
    %cst_33 = arith.constant dense<0.000000e+00> : vector<3x144xf32>
    %81 = tpu.matmul %75, %80, %cst_33 {dimension_numbers = #tpu.dot_dimension_numbers<[1], [0], [0], [1], [0, 0, 1, 1], [], []>} : vector<3x8xf32>, vector<8x144xf32>, vector<3x144xf32> -> vector<3x144xf32>
    %82 = arith.addf %79, %81 : vector<3x144xf32>
    %c0_34 = arith.constant 0 : index
    %c0_35 = arith.constant 0 : index
    %83 = vector.load %arg9[%c0_34, %c0_35] : memref<2x144xf32, #tpu.memory_space<vmem>>, vector<1x144xf32>
    %84 = vector.broadcast %83 : vector<1x144xf32> to vector<3x144xf32>
    %85 = arith.addf %82, %84 : vector<3x144xf32>
    %c0_36 = arith.constant 0 : index
    %c0_37 = arith.constant 0 : index
    %86 = vector.load %arg8[%c0_36, %c0_37] : memref<48x144xf32, #tpu.memory_space<vmem>>, vector<48x144xf32>
    %c1 = arith.constant 1 : index
    %c0_38 = arith.constant 0 : index
    %87 = vector.load %arg9[%c1, %c0_38] : memref<2x144xf32, #tpu.memory_space<vmem>>, vector<1x144xf32>
    %cst_39 = arith.constant 0.000000e+00 : f32
    %88 = vector.broadcast %cst_39 : f32 to vector<1x48xf32>
    %89 = vector.extract_strided_slice %85 {offsets = [0, 0], sizes = [1, 144], strides = [1, 1]} : vector<3x144xf32> to vector<1x144xf32>
    %cst_40 = arith.constant dense<0.000000e+00> : vector<1x144xf32>
    %90 = tpu.matmul %88, %86, %cst_40 {dimension_numbers = #tpu.dot_dimension_numbers<[1], [0], [0], [1], [0, 0, 1, 1], [], []>} : vector<1x48xf32>, vector<48x144xf32>, vector<1x144xf32> -> vector<1x144xf32>
    %91 = arith.addf %90, %87 : vector<1x144xf32>
    %92 = vector.extract_strided_slice %89 {offsets = [0, 0], sizes = [1, 48], strides = [1, 1]} : vector<1x144xf32> to vector<1x48xf32>
    %93 = vector.extract_strided_slice %91 {offsets = [0, 0], sizes = [1, 48], strides = [1, 1]} : vector<1x144xf32> to vector<1x48xf32>
    %94 = arith.addf %92, %93 : vector<1x48xf32>
    %95 = arith.negf %94 : vector<1x48xf32>
    %96 = math.exp %95 : vector<1x48xf32>
    %cst_41 = arith.constant 1.000000e+00 : f32
    %97 = vector.broadcast %cst_41 : f32 to vector<1x48xf32>
    %98 = arith.addf %97, %96 : vector<1x48xf32>
    %99 = arith.divf %97, %98 : vector<1x48xf32>
    %100 = vector.extract_strided_slice %89 {offsets = [0, 48], sizes = [1, 48], strides = [1, 1]} : vector<1x144xf32> to vector<1x48xf32>
    %101 = vector.extract_strided_slice %91 {offsets = [0, 48], sizes = [1, 48], strides = [1, 1]} : vector<1x144xf32> to vector<1x48xf32>
    %102 = arith.addf %100, %101 : vector<1x48xf32>
    %103 = arith.negf %102 : vector<1x48xf32>
    %104 = math.exp %103 : vector<1x48xf32>
    %cst_42 = arith.constant 1.000000e+00 : f32
    %105 = vector.broadcast %cst_42 : f32 to vector<1x48xf32>
    %106 = arith.addf %105, %104 : vector<1x48xf32>
    %107 = arith.divf %105, %106 : vector<1x48xf32>
    %108 = vector.extract_strided_slice %89 {offsets = [0, 96], sizes = [1, 48], strides = [1, 1]} : vector<1x144xf32> to vector<1x48xf32>
    %109 = vector.extract_strided_slice %91 {offsets = [0, 96], sizes = [1, 48], strides = [1, 1]} : vector<1x144xf32> to vector<1x48xf32>
    %110 = arith.mulf %99, %109 : vector<1x48xf32>
    %111 = arith.addf %108, %110 : vector<1x48xf32>
    %112 = math.tanh %111 : vector<1x48xf32>
    %cst_43 = arith.constant 1.000000e+00 : f32
    %113 = vector.broadcast %cst_43 : f32 to vector<1x48xf32>
    %114 = arith.subf %113, %107 : vector<1x48xf32>
    %115 = arith.mulf %114, %112 : vector<1x48xf32>
    %116 = arith.mulf %107, %88 : vector<1x48xf32>
    %117 = arith.addf %115, %116 : vector<1x48xf32>
    %c0_44 = arith.constant 0 : index
    %c0_45 = arith.constant 0 : index
    %118 = vector.load %arg25[%c0_44, %c0_45] : memref<3x48xf32, #tpu.memory_space<vmem>>, vector<1x48xf32>
    tpu.vector_store %arg25[%c0_44, %c0_45], %117 {strides = array<i32>} : memref<3x48xf32, #tpu.memory_space<vmem>>, vector<1x48xf32>,
    %119 = vector.extract_strided_slice %85 {offsets = [1, 0], sizes = [1, 144], strides = [1, 1]} : vector<3x144xf32> to vector<1x144xf32>
    %cst_46 = arith.constant dense<0.000000e+00> : vector<1x144xf32>
    %120 = tpu.matmul %117, %86, %cst_46 {dimension_numbers = #tpu.dot_dimension_numbers<[1], [0], [0], [1], [0, 0, 1, 1], [], []>} : vector<1x48xf32>, vector<48x144xf32>, vector<1x144xf32> -> vector<1x144xf32>
    %121 = arith.addf %120, %87 : vector<1x144xf32>
    %122 = vector.extract_strided_slice %119 {offsets = [0, 0], sizes = [1, 48], strides = [1, 1]} : vector<1x144xf32> to vector<1x48xf32>
    %123 = vector.extract_strided_slice %121 {offsets = [0, 0], sizes = [1, 48], strides = [1, 1]} : vector<1x144xf32> to vector<1x48xf32>
    %124 = arith.addf %122, %123 : vector<1x48xf32>
    %125 = arith.negf %124 : vector<1x48xf32>
    %126 = math.exp %125 : vector<1x48xf32>
    %cst_47 = arith.constant 1.000000e+00 : f32
    %127 = vector.broadcast %cst_47 : f32 to vector<1x48xf32>
    %128 = arith.addf %127, %126 : vector<1x48xf32>
    %129 = arith.divf %127, %128 : vector<1x48xf32>
    %130 = vector.extract_strided_slice %119 {offsets = [0, 48], sizes = [1, 48], strides = [1, 1]} : vector<1x144xf32> to vector<1x48xf32>
    %131 = vector.extract_strided_slice %121 {offsets = [0, 48], sizes = [1, 48], strides = [1, 1]} : vector<1x144xf32> to vector<1x48xf32>
    %132 = arith.addf %130, %131 : vector<1x48xf32>
    %133 = arith.negf %132 : vector<1x48xf32>
    %134 = math.exp %133 : vector<1x48xf32>
    %cst_48 = arith.constant 1.000000e+00 : f32
    %135 = vector.broadcast %cst_48 : f32 to vector<1x48xf32>
    %136 = arith.addf %135, %134 : vector<1x48xf32>
    %137 = arith.divf %135, %136 : vector<1x48xf32>
    %138 = vector.extract_strided_slice %119 {offsets = [0, 96], sizes = [1, 48], strides = [1, 1]} : vector<1x144xf32> to vector<1x48xf32>
    %139 = vector.extract_strided_slice %121 {offsets = [0, 96], sizes = [1, 48], strides = [1, 1]} : vector<1x144xf32> to vector<1x48xf32>
    %140 = arith.mulf %129, %139 : vector<1x48xf32>
    %141 = arith.addf %138, %140 : vector<1x48xf32>
    %142 = math.tanh %141 : vector<1x48xf32>
    %cst_49 = arith.constant 1.000000e+00 : f32
    %143 = vector.broadcast %cst_49 : f32 to vector<1x48xf32>
    %144 = arith.subf %143, %137 : vector<1x48xf32>
    %145 = arith.mulf %144, %142 : vector<1x48xf32>
    %146 = arith.mulf %137, %117 : vector<1x48xf32>
    %147 = arith.addf %145, %146 : vector<1x48xf32>
    %c1_50 = arith.constant 1 : index
    %c0_51 = arith.constant 0 : index
    %148 = vector.load %arg25[%c1_50, %c0_51] : memref<3x48xf32, #tpu.memory_space<vmem>>, vector<1x48xf32>
    tpu.vector_store %arg25[%c1_50, %c0_51], %147 {strides = array<i32>} : memref<3x48xf32, #tpu.memory_space<vmem>>, vector<1x48xf32>,
    %149 = vector.extract_strided_slice %85 {offsets = [2, 0], sizes = [1, 144], strides = [1, 1]} : vector<3x144xf32> to vector<1x144xf32>
    %cst_52 = arith.constant dense<0.000000e+00> : vector<1x144xf32>
    %150 = tpu.matmul %147, %86, %cst_52 {dimension_numbers = #tpu.dot_dimension_numbers<[1], [0], [0], [1], [0, 0, 1, 1], [], []>} : vector<1x48xf32>, vector<48x144xf32>, vector<1x144xf32> -> vector<1x144xf32>
    %151 = arith.addf %150, %87 : vector<1x144xf32>
    %152 = vector.extract_strided_slice %149 {offsets = [0, 0], sizes = [1, 48], strides = [1, 1]} : vector<1x144xf32> to vector<1x48xf32>
    %153 = vector.extract_strided_slice %151 {offsets = [0, 0], sizes = [1, 48], strides = [1, 1]} : vector<1x144xf32> to vector<1x48xf32>
    %154 = arith.addf %152, %153 : vector<1x48xf32>
    %155 = arith.negf %154 : vector<1x48xf32>
    %156 = math.exp %155 : vector<1x48xf32>
    %cst_53 = arith.constant 1.000000e+00 : f32
    %157 = vector.broadcast %cst_53 : f32 to vector<1x48xf32>
    %158 = arith.addf %157, %156 : vector<1x48xf32>
    %159 = arith.divf %157, %158 : vector<1x48xf32>
    %160 = vector.extract_strided_slice %149 {offsets = [0, 48], sizes = [1, 48], strides = [1, 1]} : vector<1x144xf32> to vector<1x48xf32>
    %161 = vector.extract_strided_slice %151 {offsets = [0, 48], sizes = [1, 48], strides = [1, 1]} : vector<1x144xf32> to vector<1x48xf32>
    %162 = arith.addf %160, %161 : vector<1x48xf32>
    %163 = arith.negf %162 : vector<1x48xf32>
    %164 = math.exp %163 : vector<1x48xf32>
    %cst_54 = arith.constant 1.000000e+00 : f32
    %165 = vector.broadcast %cst_54 : f32 to vector<1x48xf32>
    %166 = arith.addf %165, %164 : vector<1x48xf32>
    %167 = arith.divf %165, %166 : vector<1x48xf32>
    %168 = vector.extract_strided_slice %149 {offsets = [0, 96], sizes = [1, 48], strides = [1, 1]} : vector<1x144xf32> to vector<1x48xf32>
    %169 = vector.extract_strided_slice %151 {offsets = [0, 96], sizes = [1, 48], strides = [1, 1]} : vector<1x144xf32> to vector<1x48xf32>
    %170 = arith.mulf %159, %169 : vector<1x48xf32>
    %171 = arith.addf %168, %170 : vector<1x48xf32>
    %172 = math.tanh %171 : vector<1x48xf32>
    %cst_55 = arith.constant 1.000000e+00 : f32
    %173 = vector.broadcast %cst_55 : f32 to vector<1x48xf32>
    %174 = arith.subf %173, %167 : vector<1x48xf32>
    %175 = arith.mulf %174, %172 : vector<1x48xf32>
    %176 = arith.mulf %167, %147 : vector<1x48xf32>
    %177 = arith.addf %175, %176 : vector<1x48xf32>
    %c2 = arith.constant 2 : index
    %c0_56 = arith.constant 0 : index
    %178 = vector.load %arg25[%c2, %c0_56] : memref<3x48xf32, #tpu.memory_space<vmem>>, vector<1x48xf32>
    tpu.vector_store %arg25[%c2, %c0_56], %177 {strides = array<i32>} : memref<3x48xf32, #tpu.memory_space<vmem>>, vector<1x48xf32>,
    %c0_57 = arith.constant 0 : index
    %c0_58 = arith.constant 0 : index
    %179 = vector.load %arg25[%c0_57, %c0_58] : memref<3x48xf32, #tpu.memory_space<vmem>>, vector<3x48xf32>
    %c0_59 = arith.constant 0 : index
    %c0_60 = arith.constant 0 : index
    %180 = vector.load %arg10[%c0_59, %c0_60] : memref<48x3xf32, #tpu.memory_space<vmem>>, vector<48x3xf32>
    %cst_61 = arith.constant dense<0.000000e+00> : vector<3x3xf32>
    %181 = tpu.matmul %179, %180, %cst_61 {dimension_numbers = #tpu.dot_dimension_numbers<[1], [0], [0], [1], [0, 0, 1, 1], [], []>} : vector<3x48xf32>, vector<48x3xf32>, vector<3x3xf32> -> vector<3x3xf32>
    %c0_62 = arith.constant 0 : index
    %c0_63 = arith.constant 0 : index
    %182 = vector.load %arg11[%c0_62, %c0_63] : memref<1x3xf32, #tpu.memory_space<vmem>>, vector<1x3xf32>
    %183 = vector.broadcast %182 : vector<1x3xf32> to vector<3x3xf32>
    %184 = arith.addf %181, %183 : vector<3x3xf32>
    %cst_64 = arith.constant dense<0xFF800000> : vector<3xf32>
    %185 = vector.multi_reduction <maximumf>, %184, %cst_64 [0] : vector<3x3xf32> to vector<3xf32>
    %186 = vector.shape_cast %185 : vector<3xf32> to vector<1x3xf32>
    %187 = vector.broadcast %186 : vector<1x3xf32> to vector<3x3xf32>
    %188 = arith.subf %184, %187 : vector<3x3xf32>
    %189 = math.exp %188 : vector<3x3xf32>
    %cst_65 = arith.constant dense<0.000000e+00> : vector<3xf32>
    %190 = vector.multi_reduction <add>, %189, %cst_65 [0] : vector<3x3xf32> to vector<3xf32>
    %191 = vector.shape_cast %190 : vector<3xf32> to vector<1x3xf32>
    %192 = tpu.reciprocal %191 {approx = true} : vector<1x3xf32> -> vector<1x3xf32>
    %193 = vector.broadcast %192 : vector<1x3xf32> to vector<3x3xf32>
    %194 = arith.mulf %189, %193 : vector<3x3xf32>
    %c0_66 = arith.constant 0 : index
    %c0_67 = arith.constant 0 : index
    %195 = vector.load %arg12[%c0_66, %c0_67] : memref<3x48xf32, #tpu.memory_space<vmem>>, vector<3x48xf32>
    %cst_68 = arith.constant dense<0.000000e+00> : vector<3x48xf32>
    %196 = tpu.matmul %194, %195, %cst_68 {dimension_numbers = #tpu.dot_dimension_numbers<[1], [0], [0], [1], [0, 0, 1, 1], [], []>} : vector<3x3xf32>, vector<3x48xf32>, vector<3x48xf32> -> vector<3x48xf32>
    %197 = arith.mulf %179, %196 : vector<3x48xf32>
    %cst_69 = arith.constant dense<0.000000e+00> : vector<48xf32>
    %198 = vector.multi_reduction <add>, %197, %cst_69 [0] : vector<3x48xf32> to vector<48xf32>
    %199 = vector.shape_cast %198 : vector<48xf32> to vector<1x48xf32>
    %cst_70 = arith.constant 0.000000e+00 : f32
    %200 = vector.broadcast %cst_70 : f32 to vector<1x48xf32>
    %201 = arith.maximumf %199, %200 : vector<1x48xf32>
    %c0_71 = arith.constant 0 : index
    %c0_72 = arith.constant 0 : index
    %202 = vector.load %arg13[%c0_71, %c0_72] : memref<48x16xf32, #tpu.memory_space<vmem>>, vector<48x16xf32>
    %cst_73 = arith.constant dense<0.000000e+00> : vector<1x16xf32>
    %203 = tpu.matmul %201, %202, %cst_73 {dimension_numbers = #tpu.dot_dimension_numbers<[1], [0], [0], [1], [0, 0, 1, 1], [], []>} : vector<1x48xf32>, vector<48x16xf32>, vector<1x16xf32> -> vector<1x16xf32>
    %c0_74 = arith.constant 0 : index
    %c0_75 = arith.constant 0 : index
    %204 = vector.load %arg14[%c0_74, %c0_75] : memref<1x16xf32, #tpu.memory_space<vmem>>, vector<1x16xf32>
    %205 = arith.addf %203, %204 : vector<1x16xf32>
    %c0_76 = arith.constant 0 : index
    %c0_77 = arith.constant 0 : index
    %206 = vector.load %arg2[%c0_76, %c0_77] : memref<16x16xf32, #tpu.memory_space<vmem>>, vector<16x16xf32>
    %c0_78 = arith.constant 0 : index
    %c0_79 = arith.constant 0 : index
    %207 = vector.load %arg15[%c0_78, %c0_79] : memref<16x8xf32, #tpu.memory_space<vmem>>, vector<16x8xf32>
    %cst_80 = arith.constant dense<0.000000e+00> : vector<16x8xf32>
    %208 = tpu.matmul %206, %207, %cst_80 {dimension_numbers = #tpu.dot_dimension_numbers<[1], [0], [0], [1], [0, 0, 1, 1], [], []>} : vector<16x16xf32>, vector<16x8xf32>, vector<16x8xf32> -> vector<16x8xf32>
    %c0_81 = arith.constant 0 : index
    %c0_82 = arith.constant 0 : index
    %209 = vector.load %arg17[%c0_81, %c0_82] : memref<2x8xf32, #tpu.memory_space<vmem>>, vector<1x8xf32>
    %210 = vector.broadcast %209 : vector<1x8xf32> to vector<16x8xf32>
    %211 = arith.addf %208, %210 : vector<16x8xf32>
    %cst_83 = arith.constant 0.000000e+00 : f32
    %212 = vector.broadcast %cst_83 : f32 to vector<16x8xf32>
    %213 = arith.maximumf %211, %212 : vector<16x8xf32>
    %c0_84 = arith.constant 0 : index
    %c0_85 = arith.constant 0 : index
    %214 = vector.load %arg16[%c0_84, %c0_85] : memref<8x8xf32, #tpu.memory_space<vmem>>, vector<8x8xf32>
    %cst_86 = arith.constant dense<0.000000e+00> : vector<16x8xf32>
    %215 = tpu.matmul %213, %214, %cst_86 {dimension_numbers = #tpu.dot_dimension_numbers<[1], [0], [0], [1], [0, 0, 1, 1], [], []>} : vector<16x8xf32>, vector<8x8xf32>, vector<16x8xf32> -> vector<16x8xf32>
    %cst_87 = arith.constant dense<0.000000e+00> : vector<16x8xf32>
    %216 = tpu.matmul %206, %215, %cst_87 {dimension_numbers = #tpu.dot_dimension_numbers<[1], [0], [0], [1], [0, 0, 1, 1], [], []>} : vector<16x16xf32>, vector<16x8xf32>, vector<16x8xf32> -> vector<16x8xf32>
    %c1_88 = arith.constant 1 : index
    %c0_89 = arith.constant 0 : index
    %217 = vector.load %arg17[%c1_88, %c0_89] : memref<2x8xf32, #tpu.memory_space<vmem>>, vector<1x8xf32>
    %218 = vector.broadcast %217 : vector<1x8xf32> to vector<16x8xf32>
    %219 = arith.addf %216, %218 : vector<16x8xf32>
    %cst_90 = arith.constant dense<0.000000e+00> : vector<8xf32>
    %220 = vector.multi_reduction <add>, %219, %cst_90 [0] : vector<16x8xf32> to vector<8xf32>
    %221 = vector.shape_cast %220 : vector<8xf32> to vector<1x8xf32>
    %cst_91 = arith.constant 1.600000e+01 : f32
    %222 = vector.broadcast %cst_91 : f32 to vector<1x8xf32>
    %223 = arith.divf %221, %222 : vector<1x8xf32>
    %224 = vector.extract_strided_slice %205 {offsets = [0, 0], sizes = [1, 8], strides = [1, 1]} : vector<1x16xf32> to vector<1x8xf32>
    %225 = vector.extract_strided_slice %205 {offsets = [0, 8], sizes = [1, 8], strides = [1, 1]} : vector<1x16xf32> to vector<1x8xf32>
    %c0_92 = arith.constant 0 : index
    %c0_93 = arith.constant 0 : index
    %226 = vector.load %arg23[%c0_92, %c0_93] : memref<1x42xf32, #tpu.memory_space<vmem>>, vector<1x42xf32>
    %227 = vector.extract_strided_slice %226 {offsets = [0, 0], sizes = [1, 8], strides = [1, 1]} : vector<1x42xf32> to vector<1x8xf32>
    %228 = vector.extract_strided_slice %226 {offsets = [0, 8], sizes = [1, 8], strides = [1, 1]} : vector<1x42xf32> to vector<1x8xf32>
    %229 = vector.extract_strided_slice %226 {offsets = [0, 16], sizes = [1, 8], strides = [1, 1]} : vector<1x42xf32> to vector<1x8xf32>
    %230 = vector.extract_strided_slice %226 {offsets = [0, 24], sizes = [1, 1], strides = [1, 1]} : vector<1x42xf32> to vector<1x1xf32>
    %231 = vector.extract_strided_slice %226 {offsets = [0, 25], sizes = [1, 1], strides = [1, 1]} : vector<1x42xf32> to vector<1x1xf32>
    %232 = vector.extract_strided_slice %226 {offsets = [0, 26], sizes = [1, 16], strides = [1, 1]} : vector<1x42xf32> to vector<1x16xf32>
    %cst_94 = arith.constant 1.000000e+00 : f32
    %233 = vector.broadcast %cst_94 : f32 to vector<1x1xf32>
    %234 = tpu.concatenate %224, %233 in 1 : vector<1x8xf32>, vector<1x1xf32> -> vector<1x9xf32>
    %235 = tpu.concatenate %225, %233 in 1 : vector<1x8xf32>, vector<1x1xf32> -> vector<1x9xf32>
    %c0_95 = arith.constant 0 : index
    %c0_96 = arith.constant 0 : index
    %236 = vector.load %arg19[%c0_95, %c0_96] : memref<9x81xf32, #tpu.memory_space<vmem>>, vector<9x81xf32>
    %cst_97 = arith.constant dense<0.000000e+00> : vector<1x81xf32>
    %237 = tpu.matmul %234, %236, %cst_97 {dimension_numbers = #tpu.dot_dimension_numbers<[1], [0], [0], [1], [0, 0, 1, 1], [], []>} : vector<1x9xf32>, vector<9x81xf32>, vector<1x81xf32> -> vector<1x81xf32>
    %c0_98 = arith.constant 0 : index
    %c0_99 = arith.constant 0 : index
    %238 = vector.load %arg20[%c0_98, %c0_99] : memref<9x81xf32, #tpu.memory_space<vmem>>, vector<9x81xf32>
    %cst_100 = arith.constant dense<0.000000e+00> : vector<1x81xf32>
    %239 = tpu.matmul %235, %238, %cst_100 {dimension_numbers = #tpu.dot_dimension_numbers<[1], [0], [0], [1], [0, 0, 1, 1], [], []>} : vector<1x9xf32>, vector<9x81xf32>, vector<1x81xf32> -> vector<1x81xf32>
    %240 = arith.mulf %237, %239 : vector<1x81xf32>
    %c0_101 = arith.constant 0 : index
    %c0_102 = arith.constant 0 : index
    %241 = vector.load %arg18[%c0_101, %c0_102] : memref<81x8xf32, #tpu.memory_space<vmem>>, vector<81x8xf32>
    %cst_103 = arith.constant dense<0.000000e+00> : vector<1x8xf32>
    %242 = tpu.matmul %240, %241, %cst_103 {dimension_numbers = #tpu.dot_dimension_numbers<[1], [0], [0], [1], [0, 0, 1, 1], [], []>} : vector<1x81xf32>, vector<81x8xf32>, vector<1x8xf32> -> vector<1x8xf32>
    %243 = arith.addf %242, %227 : vector<1x8xf32>
    %c0_104 = arith.constant 0 : index
    %c0_105 = arith.constant 0 : index
    %244 = vector.load %arg21[%c0_104, %c0_105] : memref<16x18xf32, #tpu.memory_space<vmem>>, vector<16x18xf32>
    %245 = vector.extract_strided_slice %244 {offsets = [0, 0], sizes = [16, 8], strides = [1, 1]} : vector<16x18xf32> to vector<16x8xf32>
    %cst_106 = arith.constant dense<0.000000e+00> : vector<1x8xf32>
    %246 = tpu.matmul %205, %245, %cst_106 {dimension_numbers = #tpu.dot_dimension_numbers<[1], [0], [0], [1], [0, 0, 1, 1], [], []>} : vector<1x16xf32>, vector<16x8xf32>, vector<1x8xf32> -> vector<1x8xf32>
    %247 = arith.addf %246, %228 : vector<1x8xf32>
    %248 = tpu.concatenate %243, %247 in 1 : vector<1x8xf32>, vector<1x8xf32> -> vector<1x16xf32>
    %249 = vector.extract_strided_slice %244 {offsets = [0, 8], sizes = [16, 8], strides = [1, 1]} : vector<16x18xf32> to vector<16x8xf32>
    %cst_107 = arith.constant dense<0.000000e+00> : vector<1x8xf32>
    %250 = tpu.matmul %248, %249, %cst_107 {dimension_numbers = #tpu.dot_dimension_numbers<[1], [0], [0], [1], [0, 0, 1, 1], [], []>} : vector<1x16xf32>, vector<16x8xf32>, vector<1x8xf32> -> vector<1x8xf32>
    %251 = arith.addf %250, %229 : vector<1x8xf32>
    %252 = tpu.concatenate %223, %224 in 1 : vector<1x8xf32>, vector<1x8xf32> -> vector<1x16xf32>
    %253 = vector.extract_strided_slice %244 {offsets = [0, 16], sizes = [16, 1], strides = [1, 1]} : vector<16x18xf32> to vector<16x1xf32>
    %cst_108 = arith.constant dense<0.000000e+00> : vector<1x1xf32>
    %254 = tpu.matmul %252, %253, %cst_108 {dimension_numbers = #tpu.dot_dimension_numbers<[1], [0], [0], [1], [0, 0, 1, 1], [], []>} : vector<1x16xf32>, vector<16x1xf32>, vector<1x1xf32> -> vector<1x1xf32>
    %255 = arith.addf %254, %230 : vector<1x1xf32>
    %256 = arith.negf %255 : vector<1x1xf32>
    %257 = math.exp %256 : vector<1x1xf32>
    %cst_109 = arith.constant 1.000000e+00 : f32
    %258 = vector.broadcast %cst_109 : f32 to vector<1x1xf32>
    %259 = arith.addf %258, %257 : vector<1x1xf32>
    %260 = arith.divf %258, %259 : vector<1x1xf32>
    %261 = tpu.concatenate %223, %225 in 1 : vector<1x8xf32>, vector<1x8xf32> -> vector<1x16xf32>
    %262 = vector.extract_strided_slice %244 {offsets = [0, 17], sizes = [16, 1], strides = [1, 1]} : vector<16x18xf32> to vector<16x1xf32>
    %cst_110 = arith.constant dense<0.000000e+00> : vector<1x1xf32>
    %263 = tpu.matmul %261, %262, %cst_110 {dimension_numbers = #tpu.dot_dimension_numbers<[1], [0], [0], [1], [0, 0, 1, 1], [], []>} : vector<1x16xf32>, vector<16x1xf32>, vector<1x1xf32> -> vector<1x1xf32>
    %264 = arith.addf %263, %231 : vector<1x1xf32>
    %265 = arith.negf %264 : vector<1x1xf32>
    %266 = math.exp %265 : vector<1x1xf32>
    %cst_111 = arith.constant 1.000000e+00 : f32
    %267 = vector.broadcast %cst_111 : f32 to vector<1x1xf32>
    %268 = arith.addf %267, %266 : vector<1x1xf32>
    %269 = arith.divf %267, %268 : vector<1x1xf32>
    %270 = vector.broadcast %260 : vector<1x1xf32> to vector<1x8xf32>
    %271 = arith.mulf %270, %224 : vector<1x8xf32>
    %272 = vector.broadcast %269 : vector<1x1xf32> to vector<1x8xf32>
    %273 = arith.mulf %272, %225 : vector<1x8xf32>
    %274 = tpu.concatenate %271, %273, %251 in 1 : vector<1x8xf32>, vector<1x8xf32>, vector<1x8xf32> -> vector<1x24xf32>
    %cst_112 = arith.constant 0.000000e+00 : f32
    %275 = vector.broadcast %cst_112 : f32 to vector<1x24xf32>
    %276 = arith.maximumf %274, %275 : vector<1x24xf32>
    %c0_113 = arith.constant 0 : index
    %c0_114 = arith.constant 0 : index
    %277 = vector.load %arg22[%c0_113, %c0_114] : memref<24x16xf32, #tpu.memory_space<vmem>>, vector<24x16xf32>
    %cst_115 = arith.constant dense<0.000000e+00> : vector<1x16xf32>
    %278 = tpu.matmul %276, %277, %cst_115 {dimension_numbers = #tpu.dot_dimension_numbers<[1], [0], [0], [1], [0, 0, 1, 1], [], []>} : vector<1x24xf32>, vector<24x16xf32>, vector<1x16xf32> -> vector<1x16xf32>
    %279 = arith.addf %278, %232 : vector<1x16xf32>
    %c0_116 = arith.constant 0 : index
    %c0_117 = arith.constant 0 : index
    %280 = vector.load %arg24[%c0_116, %c0_117] : memref<1x16xf32, #tpu.memory_space<vmem>>, vector<1x16xf32>
    tpu.vector_store %arg24[%c0_116, %c0_117], %279 {strides = array<i32>} : memref<1x16xf32, #tpu.memory_space<vmem>>, vector<1x16xf32>,
    return
  }
}

</mosaic_0001>

<llo_original>
// kernel: fusionnet_forward.1
$region0: #{fusionnet_forward.1}
  #allocation0 [shape = 'u32[]', space=smem, size = 0x4, offset = 0x4, fixed_abs, tag = 'smem constant byte address 0x4 - core index']
  #allocation1 [shape = 'u32[144,128]{1,0:T(1,128)}', space=vmem, size = 0x12000, scoped, tag = 'internal scratch']
  #allocation2 [shape = 'f32[3,48]{1,0:T(4,128)}', space=vmem, size = 0x800, scoped, tag = 'scratch operand']
  %s0 = inlined_call_operand.vmem [shape: f32[288,192], index: 0, kind: input, shape index: {}]
  %s1 = inlined_call_operand.vmem [shape: f32[3,16], index: 1, kind: input, shape index: {}]
  %s2 = inlined_call_operand.vmem [shape: f32[16,16], index: 2, kind: input, shape index: {}]
  %s3 = inlined_call_operand.vmem [shape: f32[192,100], index: 3, kind: input, shape index: {}]
  %s4 = inlined_call_operand.vmem [shape: f32[3,100], index: 4, kind: input, shape index: {}]
  %s5 = inlined_call_operand.vmem [shape: f32[300,8], index: 5, kind: input, shape index: {}]
  %s6 = inlined_call_operand.vmem [shape: f32[1,8], index: 6, kind: input, shape index: {}]
  %s7 = inlined_call_operand.vmem [shape: f32[24,144], index: 7, kind: input, shape index: {}]
  %s8 = inlined_call_operand.vmem [shape: f32[48,144], index: 8, kind: input, shape index: {}]
  %s9 = inlined_call_operand.vmem [shape: f32[2,144], index: 9, kind: input, shape index: {}]
  %s10 = inlined_call_operand.vmem [shape: f32[48,3], index: 10, kind: input, shape index: {}]
  %s11 = inlined_call_operand.vmem [shape: f32[1,3], index: 11, kind: input, shape index: {}]
  %s12 = inlined_call_operand.vmem [shape: f32[3,48], index: 12, kind: input, shape index: {}]
  %s13 = inlined_call_operand.vmem [shape: f32[48,16], index: 13, kind: input, shape index: {}]
  %s14 = inlined_call_operand.vmem [shape: f32[1,16], index: 14, kind: input, shape index: {}]
  %s15 = inlined_call_operand.vmem [shape: f32[16,8], index: 15, kind: input, shape index: {}]
  %s16 = inlined_call_operand.vmem [shape: f32[8,8], index: 16, kind: input, shape index: {}]
  %s17 = inlined_call_operand.vmem [shape: f32[2,8], index: 17, kind: input, shape index: {}]
  %s18 = inlined_call_operand.vmem [shape: f32[81,8], index: 18, kind: input, shape index: {}]
  %s19 = inlined_call_operand.vmem [shape: f32[9,81], index: 19, kind: input, shape index: {}]
  %s20 = inlined_call_operand.vmem [shape: f32[9,81], index: 20, kind: input, shape index: {}]
  %s21 = inlined_call_operand.vmem [shape: f32[16,18], index: 21, kind: input, shape index: {}]
  %s22 = inlined_call_operand.vmem [shape: f32[24,16], index: 22, kind: input, shape index: {}]
  %s23 = inlined_call_operand.vmem [shape: f32[1,42], index: 23, kind: input, shape index: {}]
  %s24 = inlined_call_operand.hbm [shape: f32[1,16], index: 24, kind: output, shape index: {}]
  %s25 = sld [smem:[#allocation0]]
  $region106: #{fusionnet_forward.1} parent=0
    _
  %s27 = ssub.s32 1, %s25
  %s28 = scalar_select 0, %s27, %s25
  $region1: #{fusionnet_forward.1} parent=0
    #allocation3 [shape = 'u8[512]{0}', space=vmem, size = 0x400, scoped, tag = 'output window, operand 0, single buffered']
    #allocation4 [shape = 's32[1]{0}', space=sflag, size = 0x4, scoped, tag = 'scoped memory for fusionnet_forward.1']
    %29 = vsyncpa [#allocation4], 0
    // Predicated region
    $region2: #{fusionnet_forward.1} parent=1 // pred_check
      _
    $region3: #{fusionnet_forward.1} parent=1 // pred_check_branch
      %31 = sbr.rel (0) target = $region5
    $region4: #{fusionnet_forward.1} parent=1 // pred_region
      _
    $region5: #{fusionnet_forward.1} parent=1 // pred_fallthru
      _
    // Predicated region
    $region6: #{fusionnet_forward.1} parent=1 // pred_check
      _
    $region7: #{fusionnet_forward.1} parent=1 // pred_check_branch
      %33 = sbr.rel (0) target = $region9
    $region8: #{fusionnet_forward.1} parent=1 // pred_region
      _
    $region9: #{fusionnet_forward.1} parent=1 // pred_fallthru
      _
    // Predicated region
    $region10: #{fusionnet_forward.1} parent=1 // pred_check
      _
    $region11: #{fusionnet_forward.1} parent=1 // pred_check_branch
      %35 = sbr.rel (0) target = $region13
    $region12: #{fusionnet_forward.1} parent=1 // pred_region
      _
    $region13: #{fusionnet_forward.1} parent=1 // pred_fallthru
      _
    // Predicated region
    $region14: #{fusionnet_forward.1} parent=1 // pred_check
      _
    $region15: #{fusionnet_forward.1} parent=1 // pred_check_branch
      %37 = sbr.rel (0) target = $region17
    $region16: #{fusionnet_forward.1} parent=1 // pred_region
      _
    $region17: #{fusionnet_forward.1} parent=1 // pred_fallthru
      _
    // Predicated region
    $region18: #{fusionnet_forward.1} parent=1 // pred_check
      _
    $region19: #{fusionnet_forward.1} parent=1 // pred_check_branch
      %39 = sbr.rel (0) target = $region21
    $region20: #{fusionnet_forward.1} parent=1 // pred_region
      _
    $region21: #{fusionnet_forward.1} parent=1 // pred_fallthru
      _
    // Predicated region
    $region22: #{fusionnet_forward.1} parent=1 // pred_check
      _
    $region23: #{fusionnet_forward.1} parent=1 // pred_check_branch
      %41 = sbr.rel (0) target = $region25
    $region24: #{fusionnet_forward.1} parent=1 // pred_region
      _
    $region25: #{fusionnet_forward.1} parent=1 // pred_fallthru
      _
    // Predicated region
    $region26: #{fusionnet_forward.1} parent=1 // pred_check
      _
    $region27: #{fusionnet_forward.1} parent=1 // pred_check_branch
      %43 = sbr.rel (0) target = $region29
    $region28: #{fusionnet_forward.1} parent=1 // pred_region
      _
    $region29: #{fusionnet_forward.1} parent=1 // pred_fallthru
      _
    // Predicated region
    $region30: #{fusionnet_forward.1} parent=1 // pred_check
      _
    $region31: #{fusionnet_forward.1} parent=1 // pred_check_branch
      %45 = sbr.rel (0) target = $region33
    $region32: #{fusionnet_forward.1} parent=1 // pred_region
      _
    $region33: #{fusionnet_forward.1} parent=1 // pred_fallthru
      _
    // Predicated region
    $region34: #{fusionnet_forward.1} parent=1 // pred_check
      _
    $region35: #{fusionnet_forward.1} parent=1 // pred_check_branch
      %47 = sbr.rel (0) target = $region37
    $region36: #{fusionnet_forward.1} parent=1 // pred_region
      _
    $region37: #{fusionnet_forward.1} parent=1 // pred_fallthru
      _
    // Predicated region
    $region38: #{fusionnet_forward.1} parent=1 // pred_check
      _
    $region39: #{fusionnet_forward.1} parent=1 // pred_check_branch
      %49 = sbr.rel (0) target = $region41
    $region40: #{fusionnet_forward.1} parent=1 // pred_region
      _
    $region41: #{fusionnet_forward.1} parent=1 // pred_fallthru
      _
    // Predicated region
    $region42: #{fusionnet_forward.1} parent=1 // pred_check
      _
    $region43: #{fusionnet_forward.1} parent=1 // pred_check_branch
      %51 = sbr.rel (0) target = $region45
    $region44: #{fusionnet_forward.1} parent=1 // pred_region
      _
    $region45: #{fusionnet_forward.1} parent=1 // pred_fallthru
      _
    // Predicated region
    $region46: #{fusionnet_forward.1} parent=1 // pred_check
      _
    $region47: #{fusionnet_forward.1} parent=1 // pred_check_branch
      %53 = sbr.rel (0) target = $region49
    $region48: #{fusionnet_forward.1} parent=1 // pred_region
      _
    $region49: #{fusionnet_forward.1} parent=1 // pred_fallthru
      _
    // Predicated region
    $region50: #{fusionnet_forward.1} parent=1 // pred_check
      _
    $region51: #{fusionnet_forward.1} parent=1 // pred_check_branch
      %55 = sbr.rel (0) target = $region53
    $region52: #{fusionnet_forward.1} parent=1 // pred_region
      _
    $region53: #{fusionnet_forward.1} parent=1 // pred_fallthru
      _
    // Predicated region
    $region54: #{fusionnet_forward.1} parent=1 // pred_check
      _
    $region55: #{fusionnet_forward.1} parent=1 // pred_check_branch
      %57 = sbr.rel (0) target = $region57
    $region56: #{fusionnet_forward.1} parent=1 // pred_region
      _
    $region57: #{fusionnet_forward.1} parent=1 // pred_fallthru
      _
    // Predicated region
    $region58: #{fusionnet_forward.1} parent=1 // pred_check
      _
    $region59: #{fusionnet_forward.1} parent=1 // pred_check_branch
      %59 = sbr.rel (0) target = $region61
    $region60: #{fusionnet_forward.1} parent=1 // pred_region
      _
    $region61: #{fusionnet_forward.1} parent=1 // pred_fallthru
      _
    // Predicated region
    $region62: #{fusionnet_forward.1} parent=1 // pred_check
      _
    $region63: #{fusionnet_forward.1} parent=1 // pred_check_branch
      %61 = sbr.rel (0) target = $region65
    $region64: #{fusionnet_forward.1} parent=1 // pred_region
      _
    $region65: #{fusionnet_forward.1} parent=1 // pred_fallthru
      _
    // Predicated region
    $region66: #{fusionnet_forward.1} parent=1 // pred_check
      _
    $region67: #{fusionnet_forward.1} parent=1 // pred_check_branch
      %63 = sbr.rel (0) target = $region69
    $region68: #{fusionnet_forward.1} parent=1 // pred_region
      _
    $region69: #{fusionnet_forward.1} parent=1 // pred_fallthru
      _
    // Predicated region
    $region70: #{fusionnet_forward.1} parent=1 // pred_check
      _
    $region71: #{fusionnet_forward.1} parent=1 // pred_check_branch
      %65 = sbr.rel (0) target = $region73
    $region72: #{fusionnet_forward.1} parent=1 // pred_region
      _
    $region73: #{fusionnet_forward.1} parent=1 // pred_fallthru
      _
    // Predicated region
    $region74: #{fusionnet_forward.1} parent=1 // pred_check
      _
    $region75: #{fusionnet_forward.1} parent=1 // pred_check_branch
      %67 = sbr.rel (0) target = $region77
    $region76: #{fusionnet_forward.1} parent=1 // pred_region
      _
    $region77: #{fusionnet_forward.1} parent=1 // pred_fallthru
      _
    // Predicated region
    $region78: #{fusionnet_forward.1} parent=1 // pred_check
      _
    $region79: #{fusionnet_forward.1} parent=1 // pred_check_branch
      %69 = sbr.rel (0) target = $region81
    $region80: #{fusionnet_forward.1} parent=1 // pred_region
      _
    $region81: #{fusionnet_forward.1} parent=1 // pred_fallthru
      _
    // Predicated region
    $region82: #{fusionnet_forward.1} parent=1 // pred_check
      _
    $region83: #{fusionnet_forward.1} parent=1 // pred_check_branch
      %71 = sbr.rel (0) target = $region85
    $region84: #{fusionnet_forward.1} parent=1 // pred_region
      _
    $region85: #{fusionnet_forward.1} parent=1 // pred_fallthru
      _
    // Predicated region
    $region86: #{fusionnet_forward.1} parent=1 // pred_check
      _
    $region87: #{fusionnet_forward.1} parent=1 // pred_check_branch
      %73 = sbr.rel (0) target = $region89
    $region88: #{fusionnet_forward.1} parent=1 // pred_region
      _
    $region89: #{fusionnet_forward.1} parent=1 // pred_fallthru
      _
    // Predicated region
    $region90: #{fusionnet_forward.1} parent=1 // pred_check
      _
    $region91: #{fusionnet_forward.1} parent=1 // pred_check_branch
      %75 = sbr.rel (0) target = $region93
    $region92: #{fusionnet_forward.1} parent=1 // pred_region
      _
    $region93: #{fusionnet_forward.1} parent=1 // pred_fallthru
      _
    // Predicated region
    $region94: #{fusionnet_forward.1} parent=1 // pred_check
      _
    $region95: #{fusionnet_forward.1} parent=1 // pred_check_branch
      %77 = sbr.rel (0) target = $region97
    $region96: #{fusionnet_forward.1} parent=1 // pred_region
      _
    $region97: #{fusionnet_forward.1} parent=1 // pred_fallthru
      _
    %v78 = vld [vmem:[%s0] sm:$0xff]
    %v79 = vld [vmem:[%s0 + $0x8] sm:$0xff]
    %v80 = vld [vmem:[%s0 + $0x10] sm:$0xff]
    %v81 = vld [vmem:[%s0 + $0x18] sm:$0xff]
    %v82 = vld [vmem:[%s0 + $0x20] sm:$0xff]
    %v83 = vld [vmem:[%s0 + $0x28] sm:$0xff]
    %v84 = vld [vmem:[%s0 + $0x30] sm:$0xff]
    %v85 = vld [vmem:[%s0 + $0x38] sm:$0xff]
    %v86 = vld [vmem:[%s0 + $0x40] sm:$0xff]
    %v87 = vld [vmem:[%s0 + $0x48] sm:$0xff]
    %v88 = vld [vmem:[%s0 + $0x50] sm:$0xff]
    %v89 = vld [vmem:[%s0 + $0x58] sm:$0xff]
    %v90 = vld [vmem:[%s0 + $0x60] sm:$0xff]
    %v91 = vld [vmem:[%s0 + $0x68] sm:$0xff]
    %v92 = vld [vmem:[%s0 + $0x70] sm:$0xff]
    %v93 = vld [vmem:[%s0 + $0x78] sm:$0xff]
    %v94 = vld [vmem:[%s0 + $0x80] sm:$0xff]
    %v95 = vld [vmem:[%s0 + $0x88] sm:$0xff]
    %v96 = vld [vmem:[%s0 + $0x90] sm:$0xff]
    %v97 = vld [vmem:[%s0 + $0x98] sm:$0xff]
    %v98 = vld [vmem:[%s0 + $0xa0] sm:$0xff]
    %v99 = vld [vmem:[%s0 + $0xa8] sm:$0xff]
    %v100 = vld [vmem:[%s0 + $0xb0] sm:$0xff]
    %v101 = vld [vmem:[%s0 + $0xb8] sm:$0xff]
    %v102 = vld [vmem:[%s0 + $0xc0] sm:$0xff]
    %v103 = vld [vmem:[%s0 + $0xc8] sm:$0xff]
    %v104 = vld [vmem:[%s0 + $0xd0] sm:$0xff]
    %v105 = vld [vmem:[%s0 + $0xd8] sm:$0xff]
    %v106 = vld [vmem:[%s0 + $0xe0] sm:$0xff]
    %v107 = vld [vmem:[%s0 + $0xe8] sm:$0xff]
    %v108 = vld [vmem:[%s0 + $0xf0] sm:$0xff]
    %v109 = vld [vmem:[%s0 + $0xf8] sm:$0xff]
    %v110 = vld [vmem:[%s0 + $0x100] sm:$0xff]
    %v111 = vld [vmem:[%s0 + $0x108] sm:$0xff]
    %v112 = vld [vmem:[%s0 + $0x110] sm:$0xff]
    %v113 = vld [vmem:[%s0 + $0x118] sm:$0xff]
    %v114 = vld [vmem:[%s0 + $0x120] sm:$0xff]
    %v115 = vld [vmem:[%s0 + $0x128] sm:$0xff]
    %v116 = vld [vmem:[%s0 + $0x130] sm:$0xff]
    %v117 = vld [vmem:[%s0 + $0x138] sm:$0xff]
    %v118 = vld [vmem:[%s0 + $0x140] sm:$0xff]
    %v119 = vld [vmem:[%s0 + $0x148] sm:$0xff]
    %v120 = vld [vmem:[%s0 + $0x150] sm:$0xff]
    %v121 = vld [vmem:[%s0 + $0x158] sm:$0xff]
    %v122 = vld [vmem:[%s0 + $0x160] sm:$0xff]
    %v123 = vld [vmem:[%s0 + $0x168] sm:$0xff]
    %v124 = vld [vmem:[%s0 + $0x170] sm:$0xff]
    %v125 = vld [vmem:[%s0 + $0x178] sm:$0xff]
    %v126 = vld [vmem:[%s0 + $0x180] sm:$0xff]
    %v127 = vld [vmem:[%s0 + $0x188] sm:$0xff]
    %v128 = vld [vmem:[%s0 + $0x190] sm:$0xff]
    %v129 = vld [vmem:[%s0 + $0x198] sm:$0xff]
    %v130 = vld [vmem:[%s0 + $0x1a0] sm:$0xff]
    %v131 = vld [vmem:[%s0 + $0x1a8] sm:$0xff]
    %v132 = vld [vmem:[%s0 + $0x1b0] sm:$0xff]
    %v133 = vld [vmem:[%s0 + $0x1b8] sm:$0xff]
    %v134 = vld [vmem:[%s0 + $0x1c0] sm:$0xff]
    %v135 = vld [vmem:[%s0 + $0x1c8] sm:$0xff]
    %v136 = vld [vmem:[%s0 + $0x1d0] sm:$0xff]
    %v137 = vld [vmem:[%s0 + $0x1d8] sm:$0xff]
    %v138 = vld [vmem:[%s0 + $0x1e0] sm:$0xff]
    %v139 = vld [vmem:[%s0 + $0x1e8] sm:$0xff]
    %v140 = vld [vmem:[%s0 + $0x1f0] sm:$0xff]
    %v141 = vld [vmem:[%s0 + $0x1f8] sm:$0xff]
    %v142 = vld [vmem:[%s0 + $0x200] sm:$0xff]
    %v143 = vld [vmem:[%s0 + $0x208] sm:$0xff]
    %v144 = vld [vmem:[%s0 + $0x210] sm:$0xff]
    %v145 = vld [vmem:[%s0 + $0x218] sm:$0xff]
    %v146 = vld [vmem:[%s0 + $0x220] sm:$0xff]
    %v147 = vld [vmem:[%s0 + $0x228] sm:$0xff]
    %v148 = vld [vmem:[%s0 + $0x230] sm:$0xff]
    %v149 = vld [vmem:[%s0 + $0x238] sm:$0xff]
    %v150 = vld [vmem:[%s3] sm:$0xff]
    %v151 = vld [vmem:[%s3 + $0x8] sm:$0xff]
    %v152 = vld [vmem:[%s3 + $0x10] sm:$0xff]
    %v153 = vld [vmem:[%s3 + $0x18] sm:$0xff]
    %v154 = vld [vmem:[%s3 + $0x20] sm:$0xff]
    %v155 = vld [vmem:[%s3 + $0x28] sm:$0xff]
    %v156 = vld [vmem:[%s3 + $0x30] sm:$0xff]
    %v157 = vld [vmem:[%s3 + $0x38] sm:$0xff]
    %v158 = vld [vmem:[%s3 + $0x40] sm:$0xff]
    %v159 = vld [vmem:[%s3 + $0x48] sm:$0xff]
    %v160 = vld [vmem:[%s3 + $0x50] sm:$0xff]
    %v161 = vld [vmem:[%s3 + $0x58] sm:$0xff]
    %v162 = vld [vmem:[%s3 + $0x60] sm:$0xff]
    %v163 = vld [vmem:[%s3 + $0x68] sm:$0xff]
    %v164 = vld [vmem:[%s3 + $0x70] sm:$0xff]
    %v165 = vld [vmem:[%s3 + $0x78] sm:$0xff]
    %v166 = vld [vmem:[%s3 + $0x80] sm:$0xff]
    %v167 = vld [vmem:[%s3 + $0x88] sm:$0xff]
    %v168 = vld [vmem:[%s3 + $0x90] sm:$0xff]
    %v169 = vld [vmem:[%s3 + $0x98] sm:$0xff]
    %v170 = vld [vmem:[%s3 + $0xa0] sm:$0xff]
    %v171 = vld [vmem:[%s3 + $0xa8] sm:$0xff]
    %v172 = vld [vmem:[%s3 + $0xb0] sm:$0xff]
    %v173 = vld [vmem:[%s3 + $0xb8] sm:$0xff]
    %vm174 = vcmask 523264
    %v176 = vsel %vm174, %v79, 0
    %v179 = vsel %vm174, %v81, 0
    %v182 = vsel %vm174, %v83, 0
    %v185 = vsel %vm174, %v85, 0
    %v188 = vsel %vm174, %v87, 0
    %v191 = vsel %vm174, %v89, 0
    %v194 = vsel %vm174, %v91, 0
    %v197 = vsel %vm174, %v93, 0
    %v200 = vsel %vm174, %v95, 0
    %v203 = vsel %vm174, %v97, 0
    %v206 = vsel %vm174, %v99, 0
    %v209 = vsel %vm174, %v101, 0
    %v212 = vsel %vm174, %v103, 0
    %v215 = vsel %vm174, %v105, 0
    %v218 = vsel %vm174, %v107, 0
    %v221 = vsel %vm174, %v109, 0
    %v224 = vsel %vm174, %v111, 0
    %v227 = vsel %vm174, %v113, 0
    %v230 = vsel %vm174, %v115, 0
    %v233 = vsel %vm174, %v117, 0
    %v236 = vsel %vm174, %v119, 0
    %v239 = vsel %vm174, %v121, 0
    %v242 = vsel %vm174, %v123, 0
    %v245 = vsel %vm174, %v125, 0
    %v248 = vsel %vm174, %v127, 0
    %v251 = vsel %vm174, %v129, 0
    %v254 = vsel %vm174, %v131, 0
    %v257 = vsel %vm174, %v133, 0
    %v260 = vsel %vm174, %v135, 0
    %v263 = vsel %vm174, %v137, 0
    %v266 = vsel %vm174, %v139, 0
    %v269 = vsel %vm174, %v141, 0
    %v272 = vsel %vm174, %v143, 0
    %v275 = vsel %vm174, %v145, 0
    %v278 = vsel %vm174, %v147, 0
    %v281 = vsel %vm174, %v149, 0
    %283 = vmatprep.subr.mxu0 0.0
    %284 = vmatpush1.msra.mxu0 %v150
    %285 = vmatprep.subr.mxu0 0.0
    %286 = vmatpush1.msra.mxu0 %v151
    %287 = vmatprep.subr.mxu0 0.0
    %288 = vmatpush1.msra.mxu0 %v152
    %289 = vmatprep.subr.mxu0 0.0
    %290 = vmatpush1.msra.mxu0 %v153
    %291 = vmatprep.subr.mxu0 0.0
    %292 = vmatpush1.msra.mxu0 %v154
    %293 = vmatprep.subr.mxu0 0.0
    %294 = vmatpush1.msra.mxu0 %v155
    %295 = vmatprep.subr.mxu0 0.0
    %296 = vmatpush1.msra.mxu0 %v156
    %297 = vmatprep.subr.mxu0 0.0
    %298 = vmatpush1.msra.mxu0 %v157
    %299 = vmatprep.subr.mxu0 0.0
    %300 = vmatpush1.msra.mxu0 %v158
    %301 = vmatprep.subr.mxu0 0.0
    %302 = vmatpush1.msra.mxu0 %v159
    %303 = vmatprep.subr.mxu0 0.0
    %304 = vmatpush1.msra.mxu0 %v160
    %305 = vmatprep.subr.mxu0 0.0
    %306 = vmatpush1.msra.mxu0 %v161
    %307 = vmatprep.subr.mxu0 0.0
    %308 = vmatpush1.msra.mxu0 %v162
    %309 = vmatprep.subr.mxu0 0.0
    %310 = vmatpush1.msra.mxu0 %v163
    %311 = vmatprep.subr.mxu0 0.0
    %312 = vmatpush1.msra.mxu0 %v164
    %313 = vmatprep.subr.mxu0 0.0
    %314 = vmatpush1.msra.mxu0 %v165
    %315 = vmatprep.subr.mxu0 0.0
    %316 = vmatpush1.msra.mxu0 %v166
    %317 = vmatprep.subr.mxu0 0.0
    %318 = vmatpush1.msra.mxu0 %v167
    %319 = vmatprep.subr.mxu0 0.0
    %320 = vmatpush1.msra.mxu0 %v168
    %321 = vmatprep.subr.mxu0 0.0
    %322 = vmatpush1.msra.mxu0 %v169
    %323 = vmatprep.subr.mxu0 0.0
    %324 = vmatpush1.msra.mxu0 %v170
    %325 = vmatprep.subr.mxu0 0.0
    %326 = vmatpush1.msra.mxu0 %v171
    %327 = vmatprep.subr.mxu0 0.0
    %328 = vmatpush1.msra.mxu0 %v172
    %329 = vmatprep.subr.mxu0 0.0
    %330 = vmatpush1.msra.mxu0 %v173
    %331 = vmatprep.subr.mxu0 0.0
    %332 = vmatpush1.msra.mxu0 0.0
    %333 = vmatprep.subr.mxu0 0.0
    %334 = vmatpush1.msra.mxu0 0.0
    %335 = vmatprep.subr.mxu0 0.0
    %336 = vmatpush1.msra.mxu0 0.0
    %337 = vmatprep.subr.mxu0 0.0
    %338 = vmatpush1.msra.mxu0 0.0
    %339 = vmatprep.subr.mxu0 0.0
    %340 = vmatpush1.msra.mxu0 0.0
    %341 = vmatprep.subr.mxu0 0.0
    %342 = vmatpush1.msra.mxu0 0.0
    %343 = vmatprep.subr.mxu0 0.0
    %344 = vmatpush1.msra.mxu0 0.0
    %345 = vmatprep.subr.mxu0 0.0
    %346 = vmatpush1.msra.mxu0 0.0
    %347 = vmatprep.mubr.f32.mxu0 %v176
    %348 = vmatmul.mubr.f32.gmra.mrb[0].mxu0 %v78
    %v349 = vpop.f32.mrb[0].mxu0
    %v350 = vadd.f32 0.0, %v349
    %v351 = vpop.f32.mrb[0].mxu0
    %352 = vmatprep.mubr.f32.mxu0 %v179
    %353 = vmatmul.mubr.f32.gmra.mrb[0].mxu0 %v80
    %v354 = vpop.f32.mrb[0].mxu0
    %v355 = vadd.f32 0.0, %v354
    %v356 = vpop.f32.mrb[0].mxu0
    %357 = vmatprep.mubr.f32.mxu0 %v182
    %358 = vmatmul.mubr.f32.gmra.mrb[0].mxu0 %v82
    %v359 = vpop.f32.mrb[0].mxu0
    %v360 = vadd.f32 0.0, %v359
    %v361 = vpop.f32.mrb[0].mxu0
    %362 = vmatprep.mubr.f32.mxu0 %v185
    %363 = vmatmul.mubr.f32.gmra.mrb[0].mxu0 %v84
    %v364 = vpop.f32.mrb[0].mxu0
    %v365 = vadd.f32 0.0, %v364
    %v366 = vpop.f32.mrb[0].mxu0
    %367 = vmatprep.mubr.f32.mxu0 %v188
    %368 = vmatmul.mubr.f32.gmra.mrb[0].mxu0 %v86
    %v369 = vpop.f32.mrb[0].mxu0
    %v370 = vadd.f32 0.0, %v369
    %v371 = vpop.f32.mrb[0].mxu0
    %372 = vmatprep.mubr.f32.mxu0 %v191
    %373 = vmatmul.mubr.f32.gmra.mrb[0].mxu0 %v88
    %v374 = vpop.f32.mrb[0].mxu0
    %v375 = vadd.f32 0.0, %v374
    %v376 = vpop.f32.mrb[0].mxu0
    %377 = vmatprep.mubr.f32.mxu0 %v194
    %378 = vmatmul.mubr.f32.gmra.mrb[0].mxu0 %v90
    %v379 = vpop.f32.mrb[0].mxu0
    %v380 = vadd.f32 0.0, %v379
    %v381 = vpop.f32.mrb[0].mxu0
    %382 = vmatprep.mubr.f32.mxu0 %v197
    %383 = vmatmul.mubr.f32.gmra.mrb[0].mxu0 %v92
    %v384 = vpop.f32.mrb[0].mxu0
    %v385 = vadd.f32 0.0, %v384
    %v386 = vpop.f32.mrb[0].mxu0
    %387 = vmatprep.mubr.f32.mxu0 %v200
    %388 = vmatmul.mubr.f32.gmra.mrb[0].mxu0 %v94
    %v389 = vpop.f32.mrb[0].mxu0
    %v390 = vadd.f32 0.0, %v389
    %v391 = vpop.f32.mrb[0].mxu0
    %392 = vmatprep.mubr.f32.mxu0 %v203
    %393 = vmatmul.mubr.f32.gmra.mrb[0].mxu0 %v96
    %v394 = vpop.f32.mrb[0].mxu0
    %v395 = vadd.f32 0.0, %v394
    %v396 = vpop.f32.mrb[0].mxu0
    %397 = vmatprep.mubr.f32.mxu0 %v206
    %398 = vmatmul.mubr.f32.gmra.mrb[0].mxu0 %v98
    %v399 = vpop.f32.mrb[0].mxu0
    %v400 = vadd.f32 0.0, %v399
    %v401 = vpop.f32.mrb[0].mxu0
    %402 = vmatprep.mubr.f32.mxu0 %v209
    %403 = vmatmul.mubr.f32.gmra.mrb[0].mxu0 %v100
    %v404 = vpop.f32.mrb[0].mxu0
    %v405 = vadd.f32 0.0, %v404
    %v406 = vpop.f32.mrb[0].mxu0
    %407 = vmatprep.mubr.f32.mxu0 %v212
    %408 = vmatmul.mubr.f32.gmra.mrb[0].mxu0 %v102
    %v409 = vpop.f32.mrb[0].mxu0
    %v410 = vadd.f32 0.0, %v409
    %v411 = vpop.f32.mrb[0].mxu0
    %412 = vmatprep.mubr.f32.mxu0 %v215
    %413 = vmatmul.mubr.f32.gmra.mrb[0].mxu0 %v104
    %v414 = vpop.f32.mrb[0].mxu0
    %v415 = vadd.f32 0.0, %v414
    %v416 = vpop.f32.mrb[0].mxu0
    %417 = vmatprep.mubr.f32.mxu0 %v218
    %418 = vmatmul.mubr.f32.gmra.mrb[0].mxu0 %v106
    %v419 = vpop.f32.mrb[0].mxu0
    %v420 = vadd.f32 0.0, %v419
    %v421 = vpop.f32.mrb[0].mxu0
    %422 = vmatprep.mubr.f32.mxu0 %v221
    %423 = vmatmul.mubr.f32.gmra.mrb[0].mxu0 %v108
    %v424 = vpop.f32.mrb[0].mxu0
    %v425 = vadd.f32 0.0, %v424
    %v426 = vpop.f32.mrb[0].mxu0
    %427 = vmatprep.mubr.f32.mxu0 %v224
    %428 = vmatmul.mubr.f32.gmra.mrb[0].mxu0 %v110
    %v429 = vpop.f32.mrb[0].mxu0
    %v430 = vadd.f32 0.0, %v429
    %v431 = vpop.f32.mrb[0].mxu0
    %432 = vmatprep.mubr.f32.mxu0 %v227
    %433 = vmatmul.mubr.f32.gmra.mrb[0].mxu0 %v112
    %v434 = vpop.f32.mrb[0].mxu0
    %v435 = vadd.f32 0.0, %v434
    %v436 = vpop.f32.mrb[0].mxu0
    %437 = vmatprep.mubr.f32.mxu0 %v230
    %438 = vmatmul.mubr.f32.gmra.mrb[0].mxu0 %v114
    %v439 = vpop.f32.mrb[0].mxu0
    %v440 = vadd.f32 0.0, %v439
    %v441 = vpop.f32.mrb[0].mxu0
    %442 = vmatprep.mubr.f32.mxu0 %v233
    %443 = vmatmul.mubr.f32.gmra.mrb[0].mxu0 %v116
    %v444 = vpop.f32.mrb[0].mxu0
    %v445 = vadd.f32 0.0, %v444
    %v446 = vpop.f32.mrb[0].mxu0
    %447 = vmatprep.mubr.f32.mxu0 %v236
    %448 = vmatmul.mubr.f32.gmra.mrb[0].mxu0 %v118
    %v449 = vpop.f32.mrb[0].mxu0
    %v450 = vadd.f32 0.0, %v449
    %v451 = vpop.f32.mrb[0].mxu0
    %452 = vmatprep.mubr.f32.mxu0 %v239
    %453 = vmatmul.mubr.f32.gmra.mrb[0].mxu0 %v120
    %v454 = vpop.f32.mrb[0].mxu0
    %v455 = vadd.f32 0.0, %v454
    %v456 = vpop.f32.mrb[0].mxu0
    %457 = vmatprep.mubr.f32.mxu0 %v242
    %458 = vmatmul.mubr.f32.gmra.mrb[0].mxu0 %v122
    %v459 = vpop.f32.mrb[0].mxu0
    %v460 = vadd.f32 0.0, %v459
    %v461 = vpop.f32.mrb[0].mxu0
    %462 = vmatprep.mubr.f32.mxu0 %v245
    %463 = vmatmul.mubr.f32.gmra.mrb[0].mxu0 %v124
    %v464 = vpop.f32.mrb[0].mxu0
    %v465 = vadd.f32 0.0, %v464
    %v466 = vpop.f32.mrb[0].mxu0
    %467 = vmatprep.mubr.f32.mxu0 %v248
    %468 = vmatmul.mubr.f32.gmra.mrb[0].mxu0 %v126
    %v469 = vpop.f32.mrb[0].mxu0
    %v470 = vadd.f32 0.0, %v469
    %v471 = vpop.f32.mrb[0].mxu0
    %472 = vmatprep.mubr.f32.mxu0 %v251
    %473 = vmatmul.mubr.f32.gmra.mrb[0].mxu0 %v128
    %v474 = vpop.f32.mrb[0].mxu0
    %v475 = vadd.f32 0.0, %v474
    %v476 = vpop.f32.mrb[0].mxu0
    %477 = vmatprep.mubr.f32.mxu0 %v254
    %478 = vmatmul.mubr.f32.gmra.mrb[0].mxu0 %v130
    %v479 = vpop.f32.mrb[0].mxu0
    %v480 = vadd.f32 0.0, %v479
    %v481 = vpop.f32.mrb[0].mxu0
    %482 = vmatprep.mubr.f32.mxu0 %v257
    %483 = vmatmul.mubr.f32.gmra.mrb[0].mxu0 %v132
    %v484 = vpop.f32.mrb[0].mxu0
    %v485 = vadd.f32 0.0, %v484
    %v486 = vpop.f32.mrb[0].mxu0
    %487 = vmatprep.mubr.f32.mxu0 %v260
    %488 = vmatmul.mubr.f32.gmra.mrb[0].mxu0 %v134
    %v489 = vpop.f32.mrb[0].mxu0
    %v490 = vadd.f32 0.0, %v489
    %v491 = vpop.f32.mrb[0].mxu0
    %492 = vmatprep.mubr.f32.mxu0 %v263
    %493 = vmatmul.mubr.f32.gmra.mrb[0].mxu0 %v136
    %v494 = vpop.f32.mrb[0].mxu0
    %v495 = vadd.f32 0.0, %v494
    %v496 = vpop.f32.mrb[0].mxu0
    %497 = vmatprep.mubr.f32.mxu0 %v266
    %498 = vmatmul.mubr.f32.gmra.mrb[0].mxu0 %v138
    %v499 = vpop.f32.mrb[0].mxu0
    %v500 = vadd.f32 0.0, %v499
    %v501 = vpop.f32.mrb[0].mxu0
    %502 = vmatprep.mubr.f32.mxu0 %v269
    %503 = vmatmul.mubr.f32.gmra.mrb[0].mxu0 %v140
    %v504 = vpop.f32.mrb[0].mxu0
    %v505 = vadd.f32 0.0, %v504
    %v506 = vpop.f32.mrb[0].mxu0
    %507 = vmatprep.mubr.f32.mxu0 %v272
    %508 = vmatmul.mubr.f32.gmra.mrb[0].mxu0 %v142
    %v509 = vpop.f32.mrb[0].mxu0
    %v510 = vadd.f32 0.0, %v509
    %v511 = vpop.f32.mrb[0].mxu0
    %512 = vmatprep.mubr.f32.mxu0 %v275
    %513 = vmatmul.mubr.f32.gmra.mrb[0].mxu0 %v144
    %v514 = vpop.f32.mrb[0].mxu0
    %v515 = vadd.f32 0.0, %v514
    %v516 = vpop.f32.mrb[0].mxu0
    %517 = vmatprep.mubr.f32.mxu0 %v278
    %518 = vmatmul.mubr.f32.gmra.mrb[0].mxu0 %v146
    %v519 = vpop.f32.mrb[0].mxu0
    %v520 = vadd.f32 0.0, %v519
    %v521 = vpop.f32.mrb[0].mxu0
    %522 = vmatprep.mubr.f32.mxu0 %v281
    %523 = vmatmul.mubr.f32.gmra.mrb[0].mxu0 %v148
    %v524 = vpop.f32.mrb[0].mxu0
    %v525 = vadd.f32 0.0, %v524
    %v526 = vpop.f32.mrb[0].mxu0
    %527 = vdwg.mxu0
    %v528 = vld [vmem:[%s4] sm:$0x7]
    %vm529 = vcmask 818176
    %v530 = vsel %vm529, %v350, -inf
    %v531 = vsel %vm529, %v355, -inf
    %v532 = vsel %vm529, %v360, -inf
    %v533 = vsel %vm529, %v365, -inf
    %v534 = vmax.f32 %v530, %v531
    %v535 = vmax.f32 %v532, %v533
    %v536 = vmax.f32 %v534, %v535
    %v537 = vrot.slane %v536, 4
    %v538 = vmax.f32 %v536, %v537
    %v539 = vrot.slane %v538, 2
    %v540 = vmax.f32 %v538, %v539
    %v541 = vrot.slane %v540, 1
    %v542 = vmax.f32 %v540, %v541
    %v543 = vadd.f32 %v542, %v528
    %v544 = vmax.f32 %v543, 0.0
    %v545 = vsel %vm529, %v370, -inf
    %v546 = vsel %vm529, %v375, -inf
    %v547 = vsel %vm529, %v380, -inf
    %v548 = vsel %vm529, %v385, -inf
    %v549 = vmax.f32 %v545, %v546
    %v550 = vmax.f32 %v547, %v548
    %v551 = vmax.f32 %v549, %v550
    %v552 = vrot.slane %v551, 4
    %v553 = vmax.f32 %v551, %v552
    %v554 = vrot.slane %v553, 2
    %v555 = vmax.f32 %v553, %v554
    %v556 = vrot.slane %v555, 1
    %v557 = vmax.f32 %v555, %v556
    %v558 = vadd.f32 %v557, %v528
    %v559 = vmax.f32 %v558, 0.0
    %v560 = vsel %vm529, %v390, -inf
    %v561 = vsel %vm529, %v395, -inf
    %v562 = vsel %vm529, %v400, -inf
    %v563 = vsel %vm529, %v405, -inf
    %v564 = vmax.f32 %v560, %v561
    %v565 = vmax.f32 %v562, %v563
    %v566 = vmax.f32 %v564, %v565
    %v567 = vrot.slane %v566, 4
    %v568 = vmax.f32 %v566, %v567
    %v569 = vrot.slane %v568, 2
    %v570 = vmax.f32 %v568, %v569
    %v571 = vrot.slane %v570, 1
    %v572 = vmax.f32 %v570, %v571
    %v573 = vadd.f32 %v572, %v528
    %v574 = vmax.f32 %v573, 0.0
    %v576 = vrot.slane %v559, 1
    %577 = vrot.lane.b32.xlu0 %v576, 100
    %v578 = vpop.permute.xlu0 %577
    %v581 = vrot.slane %v574, 2
    %582 = vrot.lane.b32.xlu0 %v581, 72
    %v583 = vpop.permute.xlu0 %582
    %v585 = vsel %vm529, %v544, %v578
    %vm586 = vcmask 588800
    %v587 = vsel %vm586, %v578, %v583
    %v588 = vsel %vm529, %v410, -inf
    %v589 = vsel %vm529, %v415, -inf
    %v590 = vsel %vm529, %v420, -inf
    %v591 = vsel %vm529, %v425, -inf
    %v592 = vmax.f32 %v588, %v589
    %v593 = vmax.f32 %v590, %v591
    %v594 = vmax.f32 %v592, %v593
    %v595 = vrot.slane %v594, 4
    %v596 = vmax.f32 %v594, %v595
    %v597 = vrot.slane %v596, 2
    %v598 = vmax.f32 %v596, %v597
    %v599 = vrot.slane %v598, 1
    %v600 = vmax.f32 %v598, %v599
    %v601 = vadd.f32 %v600, %v528
    %v602 = vmax.f32 %v601, 0.0
    %v603 = vsel %vm529, %v430, -inf
    %v604 = vsel %vm529, %v435, -inf
    %v605 = vsel %vm529, %v440, -inf
    %v606 = vsel %vm529, %v445, -inf
    %v607 = vmax.f32 %v603, %v604
    %v608 = vmax.f32 %v605, %v606
    %v609 = vmax.f32 %v607, %v608
    %v610 = vrot.slane %v609, 4
    %v611 = vmax.f32 %v609, %v610
    %v612 = vrot.slane %v611, 2
    %v613 = vmax.f32 %v611, %v612
    %v614 = vrot.slane %v613, 1
    %v615 = vmax.f32 %v613, %v614
    %v616 = vadd.f32 %v615, %v528
    %v617 = vmax.f32 %v616, 0.0
    %v618 = vsel %vm529, %v450, -inf
    %v619 = vsel %vm529, %v455, -inf
    %v620 = vsel %vm529, %v460, -inf
    %v621 = vsel %vm529, %v465, -inf
    %v622 = vmax.f32 %v618, %v619
    %v623 = vmax.f32 %v620, %v621
    %v624 = vmax.f32 %v622, %v623
    %v625 = vrot.slane %v624, 4
    %v626 = vmax.f32 %v624, %v625
    %v627 = vrot.slane %v626, 2
    %v628 = vmax.f32 %v626, %v627
    %v629 = vrot.slane %v628, 1
    %v630 = vmax.f32 %v628, %v629
    %v631 = vadd.f32 %v630, %v528
    %v632 = vmax.f32 %v631, 0.0
    %v634 = vrot.slane %v617, 1
    %635 = vrot.lane.b32.xlu0 %v634, 100
    %v636 = vpop.permute.xlu0 %635
    %v639 = vrot.slane %v632, 2
    %640 = vrot.lane.b32.xlu0 %v639, 72
    %v641 = vpop.permute.xlu0 %640
    %v643 = vsel %vm529, %v602, %v636
    %v644 = vsel %vm586, %v636, %v641
    %v645 = vsel %vm529, %v470, -inf
    %v646 = vsel %vm529, %v475, -inf
    %v647 = vsel %vm529, %v480, -inf
    %v648 = vsel %vm529, %v485, -inf
    %v649 = vmax.f32 %v645, %v646
    %v650 = vmax.f32 %v647, %v648
    %v651 = vmax.f32 %v649, %v650
    %v652 = vrot.slane %v651, 4
    %v653 = vmax.f32 %v651, %v652
    %v654 = vrot.slane %v653, 2
    %v655 = vmax.f32 %v653, %v654
    %v656 = vrot.slane %v655, 1
    %v657 = vmax.f32 %v655, %v656
    %v658 = vadd.f32 %v657, %v528
    %v659 = vmax.f32 %v658, 0.0
    %v660 = vsel %vm529, %v490, -inf
    %v661 = vsel %vm529, %v495, -inf
    %v662 = vsel %vm529, %v500, -inf
    %v663 = vsel %vm529, %v505, -inf
    %v664 = vmax.f32 %v660, %v661
    %v665 = vmax.f32 %v662, %v663
    %v666 = vmax.f32 %v664, %v665
    %v667 = vrot.slane %v666, 4
    %v668 = vmax.f32 %v666, %v667
    %v669 = vrot.slane %v668, 2
    %v670 = vmax.f32 %v668, %v669
    %v671 = vrot.slane %v670, 1
    %v672 = vmax.f32 %v670, %v671
    %v673 = vadd.f32 %v672, %v528
    %v674 = vmax.f32 %v673, 0.0
    %v675 = vsel %vm529, %v510, -inf
    %v676 = vsel %vm529, %v515, -inf
    %v677 = vsel %vm529, %v520, -inf
    %v678 = vsel %vm529, %v525, -inf
    %v679 = vmax.f32 %v675, %v676
    %v680 = vmax.f32 %v677, %v678
    %v681 = vmax.f32 %v679, %v680
    %v682 = vrot.slane %v681, 4
    %v683 = vmax.f32 %v681, %v682
    %v684 = vrot.slane %v683, 2
    %v685 = vmax.f32 %v683, %v684
    %v686 = vrot.slane %v685, 1
    %v687 = vmax.f32 %v685, %v686
    %v688 = vadd.f32 %v687, %v528
    %v689 = vmax.f32 %v688, 0.0
    %v691 = vrot.slane %v674, 1
    %692 = vrot.lane.b32.xlu0 %v691, 100
    %v693 = vpop.permute.xlu0 %692
    %v696 = vrot.slane %v689, 2
    %697 = vrot.lane.b32.xlu0 %v696, 72
    %v698 = vpop.permute.xlu0 %697
    %v700 = vsel %vm529, %v659, %v693
    %v701 = vsel %vm586, %v693, %v698
    %v704 = vrot.slane %v643, 7
    %v705 = vrot.slane %v644, 7
    %v706 = vrot.slane %v641, 7
    %v712 = vrot.slane %v700, 6
    %v713 = vrot.slane %v701, 6
    %v714 = vrot.slane %v698, 6
    %vm718 = vcmask 1040384
    %v719 = vsel %vm718, %v585, %v704
    %v720 = vsel %vm718, %v587, %v705
    %v721 = vsel %vm718, %v583, %v706
    %vm722 = vcmask 1041408
    %v723 = vsel %vm722, %v719, %v712
    %v724 = vsel %vm722, %v720, %v713
    %v725 = vsel %vm722, %v721, %v714
    %v726 = vld [vmem:[%s5] sm:$0xff]
    %v727 = vld [vmem:[%s5 + $0x8] sm:$0xff]
    %v728 = vld [vmem:[%s5 + $0x10] sm:$0xff]
    %v729 = vld [vmem:[%s5 + $0x18] sm:$0xff]
    %v730 = vld [vmem:[%s5 + $0x20] sm:$0xff]
    %v731 = vld [vmem:[%s5 + $0x28] sm:$0xff]
    %v732 = vld [vmem:[%s5 + $0x30] sm:$0xff]
    %v733 = vld [vmem:[%s5 + $0x38] sm:$0xff]
    %v734 = vld [vmem:[%s5 + $0x40] sm:$0xff]
    %v735 = vld [vmem:[%s5 + $0x48] sm:$0xff]
    %v736 = vld [vmem:[%s5 + $0x50] sm:$0xff]
    %v737 = vld [vmem:[%s5 + $0x58] sm:$0xff]
    %v738 = vld [vmem:[%s5 + $0x60] sm:$0xff]
    %v739 = vld [vmem:[%s5 + $0x68] sm:$0xff]
    %v740 = vld [vmem:[%s5 + $0x70] sm:$0xff]
    %v741 = vld [vmem:[%s5 + $0x78] sm:$0xff]
    %v742 = vld [vmem:[%s5 + $0x80] sm:$0xff]
    %v743 = vld [vmem:[%s5 + $0x88] sm:$0xff]
    %v744 = vld [vmem:[%s5 + $0x90] sm:$0xff]
    %v745 = vld [vmem:[%s5 + $0x98] sm:$0xff]
    %v746 = vld [vmem:[%s5 + $0xa0] sm:$0xff]
    %v747 = vld [vmem:[%s5 + $0xa8] sm:$0xff]
    %v748 = vld [vmem:[%s5 + $0xb0] sm:$0xff]
    %v749 = vld [vmem:[%s5 + $0xb8] sm:$0xff]
    %v750 = vld [vmem:[%s5 + $0xc0] sm:$0xff]
    %v751 = vld [vmem:[%s5 + $0xc8] sm:$0xff]
    %v752 = vld [vmem:[%s5 + $0xd0] sm:$0xff]
    %v753 = vld [vmem:[%s5 + $0xd8] sm:$0xff]
    %v754 = vld [vmem:[%s5 + $0xe0] sm:$0xff]
    %v755 = vld [vmem:[%s5 + $0xe8] sm:$0xff]
    %v756 = vld [vmem:[%s5 + $0xf0] sm:$0xff]
    %v757 = vld [vmem:[%s5 + $0xf8] sm:$0xff]
    %v758 = vld [vmem:[%s5 + $0x100] sm:$0xff]
    %v759 = vld [vmem:[%s5 + $0x108] sm:$0xff]
    %v760 = vld [vmem:[%s5 + $0x110] sm:$0xff]
    %v761 = vld [vmem:[%s5 + $0x118] sm:$0xff]
    %v762 = vld [vmem:[%s5 + $0x120] sm:$0xff]
    %v763 = vld [vmem:[%s5 + $0x128] sm:$0xf]
    %v764 = vld [vmem:[%s6] sm:$0x1]
    %v766 = vlaneseq
    %v767 = vshrl.u32 %v766, 7
    %v768 = vsub.s32 0, %v767
    %v769 = vrot.slane %v764, %v768
    %vm771 = vcmask 359424
    %v773 = vsel %vm771, %v725, 0
    %vm775 = vcmask 1043456
    %v777 = vsel %vm775, %v763, 0
    %779 = vmatprep.subr.mxu0 0.0
    %780 = vmatpush1.msra.mxu0 %v726
    %781 = vmatprep.subr.mxu0 0.0
    %782 = vmatpush1.msra.mxu0 %v727
    %783 = vmatprep.subr.mxu0 0.0
    %784 = vmatpush1.msra.mxu0 %v728
    %785 = vmatprep.subr.mxu0 0.0
    %786 = vmatpush1.msra.mxu0 %v729
    %787 = vmatprep.subr.mxu0 0.0
    %788 = vmatpush1.msra.mxu0 %v730
    %789 = vmatprep.subr.mxu0 0.0
    %790 = vmatpush1.msra.mxu0 %v731
    %791 = vmatprep.subr.mxu0 0.0
    %792 = vmatpush1.msra.mxu0 %v732
    %793 = vmatprep.subr.mxu0 0.0
    %794 = vmatpush1.msra.mxu0 %v733
    %795 = vmatprep.subr.mxu0 0.0
    %796 = vmatpush1.msra.mxu0 %v734
    %797 = vmatprep.subr.mxu0 0.0
    %798 = vmatpush1.msra.mxu0 %v735
    %799 = vmatprep.subr.mxu0 0.0
    %800 = vmatpush1.msra.mxu0 %v736
    %801 = vmatprep.subr.mxu0 0.0
    %802 = vmatpush1.msra.mxu0 %v737
    %803 = vmatprep.subr.mxu0 0.0
    %804 = vmatpush1.msra.mxu0 %v738
    %805 = vmatprep.subr.mxu0 0.0
    %806 = vmatpush1.msra.mxu0 %v739
    %807 = vmatprep.subr.mxu0 0.0
    %808 = vmatpush1.msra.mxu0 %v740
    %809 = vmatprep.subr.mxu0 0.0
    %810 = vmatpush1.msra.mxu0 %v741
    %811 = vmatprep.subr.mxu0 0.0
    %812 = vmatpush1.msra.mxu0 %v742
    %813 = vmatprep.subr.mxu0 0.0
    %814 = vmatpush1.msra.mxu0 %v743
    %815 = vmatprep.subr.mxu0 0.0
    %816 = vmatpush1.msra.mxu0 %v744
    %817 = vmatprep.subr.mxu0 0.0
    %818 = vmatpush1.msra.mxu0 %v745
    %819 = vmatprep.subr.mxu0 0.0
    %820 = vmatpush1.msra.mxu0 %v746
    %821 = vmatprep.subr.mxu0 0.0
    %822 = vmatpush1.msra.mxu0 %v747
    %823 = vmatprep.subr.mxu0 0.0
    %824 = vmatpush1.msra.mxu0 %v748
    %825 = vmatprep.subr.mxu0 0.0
    %826 = vmatpush1.msra.mxu0 %v749
    %827 = vmatprep.subr.mxu0 0.0
    %828 = vmatpush1.msra.mxu0 %v750
    %829 = vmatprep.subr.mxu0 0.0
    %830 = vmatpush1.msra.mxu0 %v751
    %831 = vmatprep.subr.mxu0 0.0
    %832 = vmatpush1.msra.mxu0 %v752
    %833 = vmatprep.subr.mxu0 0.0
    %834 = vmatpush1.msra.mxu0 %v753
    %835 = vmatprep.subr.mxu0 0.0
    %836 = vmatpush1.msra.mxu0 %v754
    %837 = vmatprep.subr.mxu0 0.0
    %838 = vmatpush1.msra.mxu0 %v755
    %839 = vmatprep.subr.mxu0 0.0
    %840 = vmatpush1.msra.mxu0 %v756
    %841 = vmatprep.subr.mxu0 0.0
    %842 = vmatpush1.msra.mxu0 %v757
    %843 = vmatprep.mubr.f32.mxu0 %v724
    %844 = vmatmul.mubr.f32.gmra.mrb[0].mxu0 %v723
    %v845 = vpop.f32.mrb[0].mxu0
    %v846 = vadd.f32 %v769, %v845
    %v847 = vpop.f32.mrb[0].mxu0
    %848 = vdwg.mxu0
    %849 = vmatprep.subr.mxu0 0.0
    %850 = vmatpush1.msra.mxu0 %v758
    %851 = vmatprep.subr.mxu0 0.0
    %852 = vmatpush1.msra.mxu0 %v759
    %853 = vmatprep.subr.mxu0 0.0
    %854 = vmatpush1.msra.mxu0 %v760
    %855 = vmatprep.subr.mxu0 0.0
    %856 = vmatpush1.msra.mxu0 %v761
    %857 = vmatprep.subr.mxu0 0.0
    %858 = vmatpush1.msra.mxu0 %v762
    %859 = vmatprep.subr.mxu0 0.0
    %860 = vmatpush1.msra.mxu0 %v777
    %861 = vmatprep.subr.mxu0 0.0
    %862 = vmatpush1.msra.mxu0 0.0
    %863 = vmatprep.subr.mxu0 0.0
    %864 = vmatpush1.msra.mxu0 0.0
    %865 = vmatprep.subr.mxu0 0.0
    %866 = vmatpush1.msra.mxu0 0.0
    %867 = vmatprep.subr.mxu0 0.0
    %868 = vmatpush1.msra.mxu0 0.0
    %869 = vmatprep.subr.mxu0 0.0
    %870 = vmatpush1.msra.mxu0 0.0
    %871 = vmatprep.subr.mxu0 0.0
    %872 = vmatpush1.msra.mxu0 0.0
    %873 = vmatprep.subr.mxu0 0.0
    %874 = vmatpush1.msra.mxu0 0.0
    %875 = vmatprep.subr.mxu0 0.0
    %876 = vmatpush1.msra.mxu0 0.0
    %877 = vmatprep.subr.mxu0 0.0
    %878 = vmatpush1.msra.mxu0 0.0
    %879 = vmatprep.subr.mxu0 0.0
    %880 = vmatpush1.msra.mxu0 0.0
    %881 = vmatprep.subr.mxu0 0.0
    %882 = vmatpush1.msra.mxu0 0.0
    %883 = vmatprep.subr.mxu0 0.0
    %884 = vmatpush1.msra.mxu0 0.0
    %885 = vmatprep.subr.mxu0 0.0
    %886 = vmatpush1.msra.mxu0 0.0
    %887 = vmatprep.subr.mxu0 0.0
    %888 = vmatpush1.msra.mxu0 0.0
    %889 = vmatprep.subr.mxu0 0.0
    %890 = vmatpush1.msra.mxu0 0.0
    %891 = vmatprep.subr.mxu0 0.0
    %892 = vmatpush1.msra.mxu0 0.0
    %893 = vmatprep.subr.mxu0 0.0
    %894 = vmatpush1.msra.mxu0 0.0
    %895 = vmatprep.subr.mxu0 0.0
    %896 = vmatpush1.msra.mxu0 0.0
    %897 = vmatprep.subr.mxu0 0.0
    %898 = vmatpush1.msra.mxu0 0.0
    %899 = vmatprep.subr.mxu0 0.0
    %900 = vmatpush1.msra.mxu0 0.0
    %901 = vmatprep.subr.mxu0 0.0
    %902 = vmatpush1.msra.mxu0 0.0
    %903 = vmatprep.subr.mxu0 0.0
    %904 = vmatpush1.msra.mxu0 0.0
    %905 = vmatprep.subr.mxu0 0.0
    %906 = vmatpush1.msra.mxu0 0.0
    %907 = vmatprep.subr.mxu0 0.0
    %908 = vmatpush1.msra.mxu0 0.0
    %909 = vmatprep.subr.mxu0 0.0
    %910 = vmatpush1.msra.mxu0 0.0
    %911 = vmatprep.subr.mxu0 0.0
    %912 = vmatpush1.msra.mxu0 0.0
    %913 = vmatprep.mubr.f32.mxu0 0.0
    %914 = vmatmul.mubr.f32.gmra.mrb[0].mxu0 %v773
    %v915 = vpop.f32.mrb[0].mxu0
    %v916 = vadd.f32 %v846, %v915
    %v917 = vpop.f32.mrb[0].mxu0
    %918 = vdwg.mxu0
    %v919 = vld [vmem:[%s7] sm:$0xff]
    %v920 = vld [vmem:[%s7 + $0x8] sm:$0xff]
    %v921 = vld [vmem:[%s7 + $0x10] sm:$0xff]
    %v922 = vld [vmem:[%s7 + $0x18] sm:$0xff]
    %v923 = vld [vmem:[%s7 + $0x20] sm:$0xff]
    %v924 = vld [vmem:[%s7 + $0x28] sm:$0xff]
    %v925 = vld [vmem:[%s1] sm:$0x7]
    %vm926 = vcmask 64512
    %v928 = vsel %vm926, %v916, 0
    %930 = vmatprep.subr.mxu0 %v924
    %931 = vmatpush1.msra.mxu0 %v923
    %932 = vmatprep.subr.mxu0 0.0
    %933 = vmatpush1.msra.mxu0 0.0
    %934 = vmatprep.subr.mxu0 0.0
    %935 = vmatpush1.msra.mxu0 0.0
    %936 = vmatprep.subr.mxu0 0.0
    %937 = vmatpush1.msra.mxu0 0.0
    %938 = vmatprep.subr.mxu0 0.0
    %939 = vmatpush1.msra.mxu0 0.0
    %940 = vmatprep.subr.mxu0 0.0
    %941 = vmatpush1.msra.mxu0 0.0
    %942 = vmatprep.subr.mxu0 0.0
    %943 = vmatpush1.msra.mxu0 0.0
    %944 = vmatprep.subr.mxu0 0.0
    %945 = vmatpush1.msra.mxu0 0.0
    %946 = vmatprep.subr.mxu0 0.0
    %947 = vmatpush1.msra.mxu0 0.0
    %948 = vmatprep.subr.mxu0 0.0
    %949 = vmatpush1.msra.mxu0 0.0
    %950 = vmatprep.subr.mxu0 0.0
    %951 = vmatpush1.msra.mxu0 0.0
    %952 = vmatprep.subr.mxu0 0.0
    %953 = vmatpush1.msra.mxu0 0.0
    %954 = vmatprep.subr.mxu0 0.0
    %955 = vmatpush1.msra.mxu0 0.0
    %956 = vmatprep.subr.mxu0 0.0
    %957 = vmatpush1.msra.mxu0 0.0
    %958 = vmatprep.subr.mxu0 0.0
    %959 = vmatpush1.msra.mxu0 0.0
    %960 = vmatprep.subr.mxu0 0.0
    %961 = vmatpush1.msra.mxu0 0.0
    %962 = vmatprep.subr.mxu0 0.0
    %963 = vmatpush1.msra.mxu0 0.0
    %964 = vmatprep.subr.mxu0 0.0
    %965 = vmatpush1.msra.mxu0 0.0
    %966 = vmatprep.subr.mxu0 0.0
    %967 = vmatpush1.msra.mxu0 0.0
    %968 = vmatprep.subr.mxu0 0.0
    %969 = vmatpush1.msra.mxu0 0.0
    %970 = vmatprep.subr.mxu0 0.0
    %971 = vmatpush1.msra.mxu0 0.0
    %972 = vmatprep.subr.mxu0 0.0
    %973 = vmatpush1.msra.mxu0 0.0
    %974 = vmatprep.subr.mxu0 0.0
    %975 = vmatpush1.msra.mxu0 0.0
    %976 = vmatprep.subr.mxu0 0.0
    %977 = vmatpush1.msra.mxu0 0.0
    %978 = vmatprep.subr.mxu0 0.0
    %979 = vmatpush1.msra.mxu0 0.0
    %980 = vmatprep.subr.mxu0 0.0
    %981 = vmatpush1.msra.mxu0 0.0
    %982 = vmatprep.subr.mxu0 0.0
    %983 = vmatpush1.msra.mxu0 0.0
    %984 = vmatprep.subr.mxu0 0.0
    %985 = vmatpush1.msra.mxu0 0.0
    %986 = vmatprep.subr.mxu0 0.0
    %987 = vmatpush1.msra.mxu0 0.0
    %988 = vmatprep.subr.mxu0 0.0
    %989 = vmatpush1.msra.mxu0 0.0
    %990 = vmatprep.subr.mxu0 0.0
    %991 = vmatpush1.msra.mxu0 0.0
    %992 = vmatprep.subr.mxu0 0.0
    %993 = vmatpush1.msra.mxu0 0.0
    %994 = vmatprep.mubr.f32.mxu0 0.0
    %995 = vmatmul.mubr.f32.gmra.mrb[0].mxu0 %v928
    %v996 = vpop.f32.mrb[0].mxu0
    %v997 = vadd.f32 0.0, %v996
    %v998 = vpop.f32.mrb[0].mxu0
    %v999 = vadd.f32 0.0, %v998
    %1000 = vdwg.mxu0
    %vm1001 = vcmask 130048
    %v1003 = vsel %vm1001, %v925, 0
    %1005 = vmatprep.subr.mxu0 %v920
    %1006 = vmatpush1.msra.mxu0 %v919
    %1007 = vmatprep.subr.mxu0 %v922
    %1008 = vmatpush1.msra.mxu0 %v921
    %1009 = vmatprep.subr.mxu0 0.0
    %1010 = vmatpush1.msra.mxu0 0.0
    %1011 = vmatprep.subr.mxu0 0.0
    %1012 = vmatpush1.msra.mxu0 0.0
    %1013 = vmatprep.subr.mxu0 0.0
    %1014 = vmatpush1.msra.mxu0 0.0
    %1015 = vmatprep.subr.mxu0 0.0
    %1016 = vmatpush1.msra.mxu0 0.0
    %1017 = vmatprep.subr.mxu0 0.0
    %1018 = vmatpush1.msra.mxu0 0.0
    %1019 = vmatprep.subr.mxu0 0.0
    %1020 = vmatpush1.msra.mxu0 0.0
    %1021 = vmatprep.subr.mxu0 0.0
    %1022 = vmatpush1.msra.mxu0 0.0
    %1023 = vmatprep.subr.mxu0 0.0
    %1024 = vmatpush1.msra.mxu0 0.0
    %1025 = vmatprep.subr.mxu0 0.0
    %1026 = vmatpush1.msra.mxu0 0.0
    %1027 = vmatprep.subr.mxu0 0.0
    %1028 = vmatpush1.msra.mxu0 0.0
    %1029 = vmatprep.subr.mxu0 0.0
    %1030 = vmatpush1.msra.mxu0 0.0
    %1031 = vmatprep.subr.mxu0 0.0
    %1032 = vmatpush1.msra.mxu0 0.0
    %1033 = vmatprep.subr.mxu0 0.0
    %1034 = vmatpush1.msra.mxu0 0.0
    %1035 = vmatprep.subr.mxu0 0.0
    %1036 = vmatpush1.msra.mxu0 0.0
    %1037 = vmatprep.subr.mxu0 0.0
    %1038 = vmatpush1.msra.mxu0 0.0
    %1039 = vmatprep.subr.mxu0 0.0
    %1040 = vmatpush1.msra.mxu0 0.0
    %1041 = vmatprep.subr.mxu0 0.0
    %1042 = vmatpush1.msra.mxu0 0.0
    %1043 = vmatprep.subr.mxu0 0.0
    %1044 = vmatpush1.msra.mxu0 0.0
    %1045 = vmatprep.subr.mxu0 0.0
    %1046 = vmatpush1.msra.mxu0 0.0
    %1047 = vmatprep.subr.mxu0 0.0
    %1048 = vmatpush1.msra.mxu0 0.0
    %1049 = vmatprep.subr.mxu0 0.0
    %1050 = vmatpush1.msra.mxu0 0.0
    %1051 = vmatprep.subr.mxu0 0.0
    %1052 = vmatpush1.msra.mxu0 0.0
    %1053 = vmatprep.subr.mxu0 0.0
    %1054 = vmatpush1.msra.mxu0 0.0
    %1055 = vmatprep.subr.mxu0 0.0
    %1056 = vmatpush1.msra.mxu0 0.0
    %1057 = vmatprep.subr.mxu0 0.0
    %1058 = vmatpush1.msra.mxu0 0.0
    %1059 = vmatprep.subr.mxu0 0.0
    %1060 = vmatpush1.msra.mxu0 0.0
    %1061 = vmatprep.subr.mxu0 0.0
    %1062 = vmatpush1.msra.mxu0 0.0
    %1063 = vmatprep.subr.mxu0 0.0
    %1064 = vmatpush1.msra.mxu0 0.0
    %1065 = vmatprep.subr.mxu0 0.0
    %1066 = vmatpush1.msra.mxu0 0.0
    %1067 = vmatprep.subr.mxu0 0.0
    %1068 = vmatpush1.msra.mxu0 0.0
    %1069 = vmatprep.mubr.f32.mxu0 0.0
    %1070 = vmatmul.mubr.f32.gmra.mrb[0].mxu0 %v1003
    %v1071 = vpop.f32.mrb[0].mxu0
    %v1072 = vadd.f32 %v997, %v1071
    %v1073 = vpop.f32.mrb[0].mxu0
    %v1074 = vadd.f32 %v999, %v1073
    %1075 = vdwg.mxu0
    %v1076 = vld [vmem:[%s9] ss:$2 sm:$0x3]
    %v1078 = vlaneseq
    %v1079 = vshrl.u32 %v1078, 7
    %v1080 = vsub.s32 0, %v1079
    %v1081 = vrot.slane %v1076, %v1080
    %v1082 = vlaneseq
    %v1083 = vshrl.u32 %v1082, 7
    %v1084 = vsub.s32 1, %v1083
    %v1085 = vrot.slane %v1076, %v1084
    %v1088 = vadd.f32 %v1072, %v1081
    %v1089 = vadd.f32 %v1074, %v1085
    %v1090 = vld [vmem:[%s8] sm:$0xff]
    %v1091 = vld [vmem:[%s8 + $0x8] sm:$0xff]
    %v1092 = vld [vmem:[%s8 + $0x10] sm:$0xff]
    %v1093 = vld [vmem:[%s8 + $0x18] sm:$0xff]
    %v1094 = vld [vmem:[%s8 + $0x20] sm:$0xff]
    %v1095 = vld [vmem:[%s8 + $0x28] sm:$0xff]
    %v1096 = vld [vmem:[%s8 + $0x30] sm:$0xff]
    %v1097 = vld [vmem:[%s8 + $0x38] sm:$0xff]
    %v1098 = vld [vmem:[%s8 + $0x40] sm:$0xff]
    %v1099 = vld [vmem:[%s8 + $0x48] sm:$0xff]
    %v1100 = vld [vmem:[%s8 + $0x50] sm:$0xff]
    %v1101 = vld [vmem:[%s8 + $0x58] sm:$0xff]
    %s1102 = scalar_lea.vmem %s9, 1
    %v1103 = vld [vmem:[%s1102] ss:$2 sm:$0x3]
    %v1105 = vlaneseq
    %v1106 = vshrl.u32 %v1105, 7
    %v1107 = vsub.s32 0, %v1106
    %v1108 = vrot.slane %v1103, %v1107
    %v1109 = vlaneseq
    %v1110 = vshrl.u32 %v1109, 7
    %v1111 = vsub.s32 1, %v1110
    %v1112 = vrot.slane %v1103, %v1111
    %vm1115 = vcmask 392192
    %v1117 = vsel %vm1115, 0.0, 0
    %1119 = vmatprep.subr.mxu0 %v1091
    %1120 = vmatpush1.msra.mxu0 %v1090
    %1121 = vmatprep.subr.mxu0 %v1093
    %1122 = vmatpush1.msra.mxu0 %v1092
    %1123 = vmatprep.subr.mxu0 %v1095
    %1124 = vmatpush1.msra.mxu0 %v1094
    %1125 = vmatprep.subr.mxu0 %v1097
    %1126 = vmatpush1.msra.mxu0 %v1096
    %1127 = vmatprep.subr.mxu0 %v1099
    %1128 = vmatpush1.msra.mxu0 %v1098
    %1129 = vmatprep.subr.mxu0 %v1101
    %1130 = vmatpush1.msra.mxu0 %v1100
    %1131 = vmatprep.subr.mxu0 0.0
    %1132 = vmatpush1.msra.mxu0 0.0
    %1133 = vmatprep.subr.mxu0 0.0
    %1134 = vmatpush1.msra.mxu0 0.0
    %1135 = vmatprep.subr.mxu0 0.0
    %1136 = vmatpush1.msra.mxu0 0.0
    %1137 = vmatprep.subr.mxu0 0.0
    %1138 = vmatpush1.msra.mxu0 0.0
    %1139 = vmatprep.subr.mxu0 0.0
    %1140 = vmatpush1.msra.mxu0 0.0
    %1141 = vmatprep.subr.mxu0 0.0
    %1142 = vmatpush1.msra.mxu0 0.0
    %1143 = vmatprep.subr.mxu0 0.0
    %1144 = vmatpush1.msra.mxu0 0.0
    %1145 = vmatprep.subr.mxu0 0.0
    %1146 = vmatpush1.msra.mxu0 0.0
    %1147 = vmatprep.subr.mxu0 0.0
    %1148 = vmatpush1.msra.mxu0 0.0
    %1149 = vmatprep.subr.mxu0 0.0
    %1150 = vmatpush1.msra.mxu0 0.0
    %1151 = vmatprep.subr.mxu0 0.0
    %1152 = vmatpush1.msra.mxu0 0.0
    %1153 = vmatprep.subr.mxu0 0.0
    %1154 = vmatpush1.msra.mxu0 0.0
    %1155 = vmatprep.subr.mxu0 0.0
    %1156 = vmatpush1.msra.mxu0 0.0
    %1157 = vmatprep.subr.mxu0 0.0
    %1158 = vmatpush1.msra.mxu0 0.0
    %1159 = vmatprep.subr.mxu0 0.0
    %1160 = vmatpush1.msra.mxu0 0.0
    %1161 = vmatprep.subr.mxu0 0.0
    %1162 = vmatpush1.msra.mxu0 0.0
    %1163 = vmatprep.subr.mxu0 0.0
    %1164 = vmatpush1.msra.mxu0 0.0
    %1165 = vmatprep.subr.mxu0 0.0
    %1166 = vmatpush1.msra.mxu0 0.0
    %1167 = vmatprep.subr.mxu0 0.0
    %1168 = vmatpush1.msra.mxu0 0.0
    %1169 = vmatprep.subr.mxu0 0.0
    %1170 = vmatpush1.msra.mxu0 0.0
    %1171 = vmatprep.subr.mxu0 0.0
    %1172 = vmatpush1.msra.mxu0 0.0
    %1173 = vmatprep.subr.mxu0 0.0
    %1174 = vmatpush1.msra.mxu0 0.0
    %1175 = vmatprep.subr.mxu0 0.0
    %1176 = vmatpush1.msra.mxu0 0.0
    %1177 = vmatprep.subr.mxu0 0.0
    %1178 = vmatpush1.msra.mxu0 0.0
    %1179 = vmatprep.subr.mxu0 0.0
    %1180 = vmatpush1.msra.mxu0 0.0
    %1181 = vmatprep.subr.mxu0 0.0
    %1182 = vmatpush1.msra.mxu0 0.0
    %1183 = vmatprep.mubr.f32.mxu0 0.0
    %1184 = vmatmul.mubr.f32.gmra.mrb[0].mxu0 %v1117
    %v1185 = vpop.f32.mrb[0].mxu0
    %v1186 = vadd.f32 %v1108, %v1185
    %v1187 = vpop.f32.mrb[0].mxu0
    %v1188 = vadd.f32 %v1112, %v1187
    %1189 = vdwg.mxu0
    %v1190 = vadd.f32 %v1088, %v1186
    %v1191 = vxor.u32 %v1190, 2147483648
    %v1192 = vmul.f32 %v1191, 1.442695
    %v1193 = vpow.pop %v1192
    %v1194 = vadd.f32 %v1193, 1.0
    %v1195 = vrcp.pop %v1194
    %v1196 = vmul.f32 1.0, %v1195
    %1199 = vrot.lane.b32.xlu0 %v1186, 32
    %v1200 = vpop.permute.xlu0 %1199
    %1201 = vrot.lane.b32.xlu0 %v1188, 32
    %v1202 = vpop.permute.xlu0 %1201
    %vm1203 = vcmask 261120
    %v1204 = vsel %vm1203, %v1200, %v1202
    %v1206 = vmul.f32 %v1196, %v1204
    %1208 = vrot.lane.b32.xlu0 %v1206, 96
    %v1209 = vpop.permute.xlu0 %1208
    %v1211 = vadd.f32 %v1088, %v1209
    %v1212 = vadd.f32 %v1089, %v1209
    %v1213 = vtanh.pop %v1211
    %v1214 = vtanh.pop %v1212
    %v1215 = vsub.f32 1.0, %v1196
    %1218 = vrot.lane.b32.xlu0 %v1213, 80
    %v1219 = vpop.permute.xlu0 %1218
    %1220 = vrot.lane.b32.xlu0 %v1214, 80
    %v1221 = vpop.permute.xlu0 %1220
    %vm1222 = vcmask 654336
    %v1223 = vsel %vm1222, %v1219, %v1221
    %v1225 = vmul.f32 %v1215, %v1223
    %v1226 = vmul.f32 %v1196, 0.0
    %v1227 = vadd.f32 %v1225, %v1226
    %1229 = vrot.lane.b32.xlu0 %v1227, 80
    %v1230 = vpop.permute.xlu0 %1229
    %vm1232 = vcmask 385024
    %1233 = vst.msk [vmem:[#allocation2] sm:$0x1] %vm1232, %v1230
    %v1234 = vsel %vm1115, %v1230, 0
    %1236 = vmatprep.subr.mxu0 %v1091
    %1237 = vmatpush1.msra.mxu0 %v1090
    %1238 = vmatprep.subr.mxu0 %v1093
    %1239 = vmatpush1.msra.mxu0 %v1092
    %1240 = vmatprep.subr.mxu0 %v1095
    %1241 = vmatpush1.msra.mxu0 %v1094
    %1242 = vmatprep.subr.mxu0 %v1097
    %1243 = vmatpush1.msra.mxu0 %v1096
    %1244 = vmatprep.subr.mxu0 %v1099
    %1245 = vmatpush1.msra.mxu0 %v1098
    %1246 = vmatprep.subr.mxu0 %v1101
    %1247 = vmatpush1.msra.mxu0 %v1100
    %1248 = vmatprep.subr.mxu0 0.0
    %1249 = vmatpush1.msra.mxu0 0.0
    %1250 = vmatprep.subr.mxu0 0.0
    %1251 = vmatpush1.msra.mxu0 0.0
    %1252 = vmatprep.subr.mxu0 0.0
    %1253 = vmatpush1.msra.mxu0 0.0
    %1254 = vmatprep.subr.mxu0 0.0
    %1255 = vmatpush1.msra.mxu0 0.0
    %1256 = vmatprep.subr.mxu0 0.0
    %1257 = vmatpush1.msra.mxu0 0.0
    %1258 = vmatprep.subr.mxu0 0.0
    %1259 = vmatpush1.msra.mxu0 0.0
    %1260 = vmatprep.subr.mxu0 0.0
    %1261 = vmatpush1.msra.mxu0 0.0
    %1262 = vmatprep.subr.mxu0 0.0
    %1263 = vmatpush1.msra.mxu0 0.0
    %1264 = vmatprep.subr.mxu0 0.0
    %1265 = vmatpush1.msra.mxu0 0.0
    %1266 = vmatprep.subr.mxu0 0.0
    %1267 = vmatpush1.msra.mxu0 0.0
    %1268 = vmatprep.subr.mxu0 0.0
    %1269 = vmatpush1.msra.mxu0 0.0
    %1270 = vmatprep.subr.mxu0 0.0
    %1271 = vmatpush1.msra.mxu0 0.0
    %1272 = vmatprep.subr.mxu0 0.0
    %1273 = vmatpush1.msra.mxu0 0.0
    %1274 = vmatprep.subr.mxu0 0.0
    %1275 = vmatpush1.msra.mxu0 0.0
    %1276 = vmatprep.subr.mxu0 0.0
    %1277 = vmatpush1.msra.mxu0 0.0
    %1278 = vmatprep.subr.mxu0 0.0
    %1279 = vmatpush1.msra.mxu0 0.0
    %1280 = vmatprep.subr.mxu0 0.0
    %1281 = vmatpush1.msra.mxu0 0.0
    %1282 = vmatprep.subr.mxu0 0.0
    %1283 = vmatpush1.msra.mxu0 0.0
    %1284 = vmatprep.subr.mxu0 0.0
    %1285 = vmatpush1.msra.mxu0 0.0
    %1286 = vmatprep.subr.mxu0 0.0
    %1287 = vmatpush1.msra.mxu0 0.0
    %1288 = vmatprep.subr.mxu0 0.0
    %1289 = vmatpush1.msra.mxu0 0.0
    %1290 = vmatprep.subr.mxu0 0.0
    %1291 = vmatpush1.msra.mxu0 0.0
    %1292 = vmatprep.subr.mxu0 0.0
    %1293 = vmatpush1.msra.mxu0 0.0
    %1294 = vmatprep.subr.mxu0 0.0
    %1295 = vmatpush1.msra.mxu0 0.0
    %1296 = vmatprep.subr.mxu0 0.0
    %1297 = vmatpush1.msra.mxu0 0.0
    %1298 = vmatprep.subr.mxu0 0.0
    %1299 = vmatpush1.msra.mxu0 0.0
    %1300 = vmatprep.mubr.f32.mxu0 0.0
    %1301 = vmatmul.mubr.f32.gmra.mrb[0].mxu0 %v1234
    %v1302 = vpop.f32.mrb[0].mxu0
    %v1303 = vadd.f32 %v1108, %v1302
    %v1304 = vpop.f32.mrb[0].mxu0
    %v1305 = vadd.f32 %v1112, %v1304
    %1306 = vdwg.mxu0
    %v1308 = vrot.slane %v1303, 7
    %v1310 = vadd.f32 %v1088, %v1308
    %v1311 = vxor.u32 %v1310, 2147483648
    %v1312 = vmul.f32 %v1311, 1.442695
    %v1313 = vpow.pop %v1312
    %v1314 = vadd.f32 %v1313, 1.0
    %v1315 = vrcp.pop %v1314
    %v1316 = vmul.f32 1.0, %v1315
    %v1318 = vrot.slane %v1305, 7
    %1319 = vrot.lane.b32.xlu0 %v1308, 32
    %v1320 = vpop.permute.xlu0 %1319
    %1321 = vrot.lane.b32.xlu0 %v1318, 32
    %v1322 = vpop.permute.xlu0 %1321
    %v1323 = vsel %vm1203, %v1320, %v1322
    %v1325 = vmul.f32 %v1316, %v1323
    %1327 = vrot.lane.b32.xlu0 %v1325, 96
    %v1328 = vpop.permute.xlu0 %1327
    %v1330 = vadd.f32 %v1088, %v1328
    %v1331 = vadd.f32 %v1089, %v1328
    %v1332 = vtanh.pop %v1330
    %v1333 = vtanh.pop %v1331
    %v1334 = vsub.f32 1.0, %v1316
    %1337 = vrot.lane.b32.xlu0 %v1332, 80
    %v1338 = vpop.permute.xlu0 %1337
    %1339 = vrot.lane.b32.xlu0 %v1333, 80
    %v1340 = vpop.permute.xlu0 %1339
    %v1341 = vsel %vm1222, %v1338, %v1340
    %v1343 = vmul.f32 %v1334, %v1341
    %v1344 = vrot.slane %v1227, 7
    %v1346 = vmul.f32 %v1316, %v1344
    %v1347 = vadd.f32 %v1343, %v1346
    %1349 = vrot.lane.b32.xlu0 %v1347, 80
    %v1350 = vpop.permute.xlu0 %1349
    %vm1352 = vcmask 386049
    %1353 = vst.msk [vmem:[#allocation2] sm:$0x2] %vm1352, %v1350
    %v1354 = vrot.slane %v1347, 1
    %1355 = vrot.lane.b32.xlu0 %v1354, 80
    %v1356 = vpop.permute.xlu0 %1355
    %v1357 = vsel %vm1115, %v1356, 0
    %1359 = vmatprep.subr.mxu0 %v1091
    %1360 = vmatpush1.msra.mxu0 %v1090
    %1361 = vmatprep.subr.mxu0 %v1093
    %1362 = vmatpush1.msra.mxu0 %v1092
    %1363 = vmatprep.subr.mxu0 %v1095
    %1364 = vmatpush1.msra.mxu0 %v1094
    %1365 = vmatprep.subr.mxu0 %v1097
    %1366 = vmatpush1.msra.mxu0 %v1096
    %1367 = vmatprep.subr.mxu0 %v1099
    %1368 = vmatpush1.msra.mxu0 %v1098
    %1369 = vmatprep.subr.mxu0 %v1101
    %1370 = vmatpush1.msra.mxu0 %v1100
    %1371 = vmatprep.subr.mxu0 0.0
    %1372 = vmatpush1.msra.mxu0 0.0
    %1373 = vmatprep.subr.mxu0 0.0
    %1374 = vmatpush1.msra.mxu0 0.0
    %1375 = vmatprep.subr.mxu0 0.0
    %1376 = vmatpush1.msra.mxu0 0.0
    %1377 = vmatprep.subr.mxu0 0.0
    %1378 = vmatpush1.msra.mxu0 0.0
    %1379 = vmatprep.subr.mxu0 0.0
    %1380 = vmatpush1.msra.mxu0 0.0
    %1381 = vmatprep.subr.mxu0 0.0
    %1382 = vmatpush1.msra.mxu0 0.0
    %1383 = vmatprep.subr.mxu0 0.0
    %1384 = vmatpush1.msra.mxu0 0.0
    %1385 = vmatprep.subr.mxu0 0.0
    %1386 = vmatpush1.msra.mxu0 0.0
    %1387 = vmatprep.subr.mxu0 0.0
    %1388 = vmatpush1.msra.mxu0 0.0
    %1389 = vmatprep.subr.mxu0 0.0
    %1390 = vmatpush1.msra.mxu0 0.0
    %1391 = vmatprep.subr.mxu0 0.0
    %1392 = vmatpush1.msra.mxu0 0.0
    %1393 = vmatprep.subr.mxu0 0.0
    %1394 = vmatpush1.msra.mxu0 0.0
    %1395 = vmatprep.subr.mxu0 0.0
    %1396 = vmatpush1.msra.mxu0 0.0
    %1397 = vmatprep.subr.mxu0 0.0
    %1398 = vmatpush1.msra.mxu0 0.0
    %1399 = vmatprep.subr.mxu0 0.0
    %1400 = vmatpush1.msra.mxu0 0.0
    %1401 = vmatprep.subr.mxu0 0.0
    %1402 = vmatpush1.msra.mxu0 0.0
    %1403 = vmatprep.subr.mxu0 0.0
    %1404 = vmatpush1.msra.mxu0 0.0
    %1405 = vmatprep.subr.mxu0 0.0
    %1406 = vmatpush1.msra.mxu0 0.0
    %1407 = vmatprep.subr.mxu0 0.0
    %1408 = vmatpush1.msra.mxu0 0.0
    %1409 = vmatprep.subr.mxu0 0.0
    %1410 = vmatpush1.msra.mxu0 0.0
    %1411 = vmatprep.subr.mxu0 0.0
    %1412 = vmatpush1.msra.mxu0 0.0
    %1413 = vmatprep.subr.mxu0 0.0
    %1414 = vmatpush1.msra.mxu0 0.0
    %1415 = vmatprep.subr.mxu0 0.0
    %1416 = vmatpush1.msra.mxu0 0.0
    %1417 = vmatprep.subr.mxu0 0.0
    %1418 = vmatpush1.msra.mxu0 0.0
    %1419 = vmatprep.subr.mxu0 0.0
    %1420 = vmatpush1.msra.mxu0 0.0
    %1421 = vmatprep.subr.mxu0 0.0
    %1422 = vmatpush1.msra.mxu0 0.0
    %1423 = vmatprep.mubr.f32.mxu0 0.0
    %1424 = vmatmul.mubr.f32.gmra.mrb[0].mxu0 %v1357
    %v1425 = vpop.f32.mrb[0].mxu0
    %v1426 = vadd.f32 %v1108, %v1425
    %v1427 = vpop.f32.mrb[0].mxu0
    %v1428 = vadd.f32 %v1112, %v1427
    %1429 = vdwg.mxu0
    %v1431 = vrot.slane %v1426, 6
    %v1433 = vadd.f32 %v1088, %v1431
    %v1434 = vxor.u32 %v1433, 2147483648
    %v1435 = vmul.f32 %v1434, 1.442695
    %v1436 = vpow.pop %v1435
    %v1437 = vadd.f32 %v1436, 1.0
    %v1438 = vrcp.pop %v1437
    %v1439 = vmul.f32 1.0, %v1438
    %v1441 = vrot.slane %v1428, 6
    %1442 = vrot.lane.b32.xlu0 %v1431, 32
    %v1443 = vpop.permute.xlu0 %1442
    %1444 = vrot.lane.b32.xlu0 %v1441, 32
    %v1445 = vpop.permute.xlu0 %1444
    %v1446 = vsel %vm1203, %v1443, %v1445
    %v1448 = vmul.f32 %v1439, %v1446
    %1450 = vrot.lane.b32.xlu0 %v1448, 96
    %v1451 = vpop.permute.xlu0 %1450
    %v1453 = vadd.f32 %v1088, %v1451
    %v1454 = vadd.f32 %v1089, %v1451
    %v1455 = vtanh.pop %v1453
    %v1456 = vtanh.pop %v1454
    %v1457 = vsub.f32 1.0, %v1439
    %1460 = vrot.lane.b32.xlu0 %v1455, 80
    %v1461 = vpop.permute.xlu0 %1460
    %1462 = vrot.lane.b32.xlu0 %v1456, 80
    %v1463 = vpop.permute.xlu0 %1462
    %v1464 = vsel %vm1222, %v1461, %v1463
    %v1466 = vmul.f32 %v1457, %v1464
    %v1467 = vrot.slane %v1347, 7
    %v1469 = vmul.f32 %v1439, %v1467
    %v1470 = vadd.f32 %v1466, %v1469
    %1472 = vrot.lane.b32.xlu0 %v1470, 80
    %v1473 = vpop.permute.xlu0 %1472
    %vm1475 = vcmask 387074
    %1476 = vst.msk [vmem:[#allocation2] sm:$0x4] %vm1475, %v1473
    %v1477 = vld [vmem:[#allocation2] sm:$0x7]
    %v1478 = vld [vmem:[%s10] sm:$0xff]
    %v1479 = vld [vmem:[%s10 + $0x8] sm:$0xff]
    %v1480 = vld [vmem:[%s10 + $0x10] sm:$0xff]
    %v1481 = vld [vmem:[%s10 + $0x18] sm:$0xff]
    %v1482 = vld [vmem:[%s10 + $0x20] sm:$0xff]
    %v1483 = vld [vmem:[%s10 + $0x28] sm:$0xff]
    %v1484 = vld [vmem:[%s11] sm:$0x1]
    %v1486 = vlaneseq
    %v1487 = vshrl.u32 %v1486, 7
    %v1488 = vsub.s32 0, %v1487
    %v1489 = vrot.slane %v1484, %v1488
    %v1492 = vsel %vm1115, %v1477, 0
    %1494 = vmatprep.subr.mxu0 0.0
    %1495 = vmatpush1.msra.mxu0 %v1478
    %1496 = vmatprep.subr.mxu0 0.0
    %1497 = vmatpush1.msra.mxu0 %v1479
    %1498 = vmatprep.subr.mxu0 0.0
    %1499 = vmatpush1.msra.mxu0 %v1480
    %1500 = vmatprep.subr.mxu0 0.0
    %1501 = vmatpush1.msra.mxu0 %v1481
    %1502 = vmatprep.subr.mxu0 0.0
    %1503 = vmatpush1.msra.mxu0 %v1482
    %1504 = vmatprep.subr.mxu0 0.0
    %1505 = vmatpush1.msra.mxu0 %v1483
    %1506 = vmatprep.subr.mxu0 0.0
    %1507 = vmatpush1.msra.mxu0 0.0
    %1508 = vmatprep.subr.mxu0 0.0
    %1509 = vmatpush1.msra.mxu0 0.0
    %1510 = vmatprep.subr.mxu0 0.0
    %1511 = vmatpush1.msra.mxu0 0.0
    %1512 = vmatprep.subr.mxu0 0.0
    %1513 = vmatpush1.msra.mxu0 0.0
    %1514 = vmatprep.subr.mxu0 0.0
    %1515 = vmatpush1.msra.mxu0 0.0
    %1516 = vmatprep.subr.mxu0 0.0
    %1517 = vmatpush1.msra.mxu0 0.0
    %1518 = vmatprep.subr.mxu0 0.0
    %1519 = vmatpush1.msra.mxu0 0.0
    %1520 = vmatprep.subr.mxu0 0.0
    %1521 = vmatpush1.msra.mxu0 0.0
    %1522 = vmatprep.subr.mxu0 0.0
    %1523 = vmatpush1.msra.mxu0 0.0
    %1524 = vmatprep.subr.mxu0 0.0
    %1525 = vmatpush1.msra.mxu0 0.0
    %1526 = vmatprep.subr.mxu0 0.0
    %1527 = vmatpush1.msra.mxu0 0.0
    %1528 = vmatprep.subr.mxu0 0.0
    %1529 = vmatpush1.msra.mxu0 0.0
    %1530 = vmatprep.subr.mxu0 0.0
    %1531 = vmatpush1.msra.mxu0 0.0
    %1532 = vmatprep.subr.mxu0 0.0
    %1533 = vmatpush1.msra.mxu0 0.0
    %1534 = vmatprep.subr.mxu0 0.0
    %1535 = vmatpush1.msra.mxu0 0.0
    %1536 = vmatprep.subr.mxu0 0.0
    %1537 = vmatpush1.msra.mxu0 0.0
    %1538 = vmatprep.subr.mxu0 0.0
    %1539 = vmatpush1.msra.mxu0 0.0
    %1540 = vmatprep.subr.mxu0 0.0
    %1541 = vmatpush1.msra.mxu0 0.0
    %1542 = vmatprep.subr.mxu0 0.0
    %1543 = vmatpush1.msra.mxu0 0.0
    %1544 = vmatprep.subr.mxu0 0.0
    %1545 = vmatpush1.msra.mxu0 0.0
    %1546 = vmatprep.subr.mxu0 0.0
    %1547 = vmatpush1.msra.mxu0 0.0
    %1548 = vmatprep.subr.mxu0 0.0
    %1549 = vmatpush1.msra.mxu0 0.0
    %1550 = vmatprep.subr.mxu0 0.0
    %1551 = vmatpush1.msra.mxu0 0.0
    %1552 = vmatprep.subr.mxu0 0.0
    %1553 = vmatpush1.msra.mxu0 0.0
    %1554 = vmatprep.subr.mxu0 0.0
    %1555 = vmatpush1.msra.mxu0 0.0
    %1556 = vmatprep.subr.mxu0 0.0
    %1557 = vmatpush1.msra.mxu0 0.0
    %1558 = vmatprep.mubr.f32.mxu0 0.0
    %1559 = vmatmul.mubr.f32.gmra.mrb[0].mxu0 %v1492
    %v1560 = vpop.f32.mrb[0].mxu0
    %v1561 = vadd.f32 %v1489, %v1560
    %v1562 = vpop.f32.mrb[0].mxu0
    %1563 = vdwg.mxu0
    %vm1564 = vcmask 18432
    %v1565 = vsel %vm1564, %v1561, -inf
    %v1566 = vrot.slane %v1565, 4
    %v1567 = vmax.f32 %v1565, %v1566
    %v1568 = vrot.slane %v1567, 2
    %v1569 = vmax.f32 %v1567, %v1568
    %v1570 = vrot.slane %v1569, 1
    %v1571 = vmax.f32 %v1569, %v1570
    %v1572 = vsub.f32 %v1561, %v1571
    %v1573 = vmul.f32 %v1572, 1.442695
    %v1574 = vpow.pop %v1573
    %v1575 = vsel %vm1564, %v1574, 0.0
    %v1576 = vrot.slane %v1575, 4
    %v1577 = vadd.f32 %v1575, %v1576
    %v1578 = vrot.slane %v1577, 2
    %v1579 = vadd.f32 %v1577, %v1578
    %v1580 = vrot.slane %v1579, 1
    %v1581 = vadd.f32 %v1579, %v1580
    %v1582 = vrcp.pop %v1581
    %v1583 = vmul.f32 %v1574, %v1582
    %v1584 = vld [vmem:[%s12] sm:$0x7]
    %vm1585 = vcmask 23552
    %v1587 = vsel %vm1585, %v1583, 0
    %vm1589 = vcmask 1042432
    %v1591 = vsel %vm1589, %v1584, 0
    %1593 = vmatprep.subr.mxu0 0.0
    %1594 = vmatpush1.msra.mxu0 %v1591
    %1595 = vmatprep.subr.mxu0 0.0
    %1596 = vmatpush1.msra.mxu0 0.0
    %1597 = vmatprep.subr.mxu0 0.0
    %1598 = vmatpush1.msra.mxu0 0.0
    %1599 = vmatprep.subr.mxu0 0.0
    %1600 = vmatpush1.msra.mxu0 0.0
    %1601 = vmatprep.subr.mxu0 0.0
    %1602 = vmatpush1.msra.mxu0 0.0
    %1603 = vmatprep.subr.mxu0 0.0
    %1604 = vmatpush1.msra.mxu0 0.0
    %1605 = vmatprep.subr.mxu0 0.0
    %1606 = vmatpush1.msra.mxu0 0.0
    %1607 = vmatprep.subr.mxu0 0.0
    %1608 = vmatpush1.msra.mxu0 0.0
    %1609 = vmatprep.subr.mxu0 0.0
    %1610 = vmatpush1.msra.mxu0 0.0
    %1611 = vmatprep.subr.mxu0 0.0
    %1612 = vmatpush1.msra.mxu0 0.0
    %1613 = vmatprep.subr.mxu0 0.0
    %1614 = vmatpush1.msra.mxu0 0.0
    %1615 = vmatprep.subr.mxu0 0.0
    %1616 = vmatpush1.msra.mxu0 0.0
    %1617 = vmatprep.subr.mxu0 0.0
    %1618 = vmatpush1.msra.mxu0 0.0
    %1619 = vmatprep.subr.mxu0 0.0
    %1620 = vmatpush1.msra.mxu0 0.0
    %1621 = vmatprep.subr.mxu0 0.0
    %1622 = vmatpush1.msra.mxu0 0.0
    %1623 = vmatprep.subr.mxu0 0.0
    %1624 = vmatpush1.msra.mxu0 0.0
    %1625 = vmatprep.subr.mxu0 0.0
    %1626 = vmatpush1.msra.mxu0 0.0
    %1627 = vmatprep.subr.mxu0 0.0
    %1628 = vmatpush1.msra.mxu0 0.0
    %1629 = vmatprep.subr.mxu0 0.0
    %1630 = vmatpush1.msra.mxu0 0.0
    %1631 = vmatprep.subr.mxu0 0.0
    %1632 = vmatpush1.msra.mxu0 0.0
    %1633 = vmatprep.subr.mxu0 0.0
    %1634 = vmatpush1.msra.mxu0 0.0
    %1635 = vmatprep.subr.mxu0 0.0
    %1636 = vmatpush1.msra.mxu0 0.0
    %1637 = vmatprep.subr.mxu0 0.0
    %1638 = vmatpush1.msra.mxu0 0.0
    %1639 = vmatprep.subr.mxu0 0.0
    %1640 = vmatpush1.msra.mxu0 0.0
    %1641 = vmatprep.subr.mxu0 0.0
    %1642 = vmatpush1.msra.mxu0 0.0
    %1643 = vmatprep.subr.mxu0 0.0
    %1644 = vmatpush1.msra.mxu0 0.0
    %1645 = vmatprep.subr.mxu0 0.0
    %1646 = vmatpush1.msra.mxu0 0.0
    %1647 = vmatprep.subr.mxu0 0.0
    %1648 = vmatpush1.msra.mxu0 0.0
    %1649 = vmatprep.subr.mxu0 0.0
    %1650 = vmatpush1.msra.mxu0 0.0
    %1651 = vmatprep.subr.mxu0 0.0
    %1652 = vmatpush1.msra.mxu0 0.0
    %1653 = vmatprep.subr.mxu0 0.0
    %1654 = vmatpush1.msra.mxu0 0.0
    %1655 = vmatprep.subr.mxu0 0.0
    %1656 = vmatpush1.msra.mxu0 0.0
    %1657 = vmatprep.mubr.f32.mxu0 0.0
    %1658 = vmatmul.mubr.f32.gmra.mrb[0].mxu0 %v1587
    %v1659 = vpop.f32.mrb[0].mxu0
    %v1660 = vadd.f32 0.0, %v1659
    %v1661 = vpop.f32.mrb[0].mxu0
    %1662 = vdwg.mxu0
    %v1663 = vmul.f32 %v1477, %v1660
    %vm1664 = vcmask 387072
    %v1665 = vsel %vm1664, %v1663, 0.0
    %v1666 = vrot.slane %v1665, 4
    %v1667 = vadd.f32 %v1665, %v1666
    %v1668 = vrot.slane %v1667, 2
    %v1669 = vadd.f32 %v1667, %v1668
    %v1670 = vrot.slane %v1669, 1
    %v1671 = vadd.f32 %v1669, %v1670
    %v1672 = vmax.f32 %v1671, 0.0
    %v1673 = vld [vmem:[%s13] sm:$0xff]
    %v1674 = vld [vmem:[%s13 + $0x8] sm:$0xff]
    %v1675 = vld [vmem:[%s13 + $0x10] sm:$0xff]
    %v1676 = vld [vmem:[%s13 + $0x18] sm:$0xff]
    %v1677 = vld [vmem:[%s13 + $0x20] sm:$0xff]
    %v1678 = vld [vmem:[%s13 + $0x28] sm:$0xff]
    %v1679 = vld [vmem:[%s14] sm:$0x1]
    %v1681 = vsel %vm1115, %v1672, 0
    %1683 = vmatprep.subr.mxu0 0.0
    %1684 = vmatpush1.msra.mxu0 %v1673
    %1685 = vmatprep.subr.mxu0 0.0
    %1686 = vmatpush1.msra.mxu0 %v1674
    %1687 = vmatprep.subr.mxu0 0.0
    %1688 = vmatpush1.msra.mxu0 %v1675
    %1689 = vmatprep.subr.mxu0 0.0
    %1690 = vmatpush1.msra.mxu0 %v1676
    %1691 = vmatprep.subr.mxu0 0.0
    %1692 = vmatpush1.msra.mxu0 %v1677
    %1693 = vmatprep.subr.mxu0 0.0
    %1694 = vmatpush1.msra.mxu0 %v1678
    %1695 = vmatprep.subr.mxu0 0.0
    %1696 = vmatpush1.msra.mxu0 0.0
    %1697 = vmatprep.subr.mxu0 0.0
    %1698 = vmatpush1.msra.mxu0 0.0
    %1699 = vmatprep.subr.mxu0 0.0
    %1700 = vmatpush1.msra.mxu0 0.0
    %1701 = vmatprep.subr.mxu0 0.0
    %1702 = vmatpush1.msra.mxu0 0.0
    %1703 = vmatprep.subr.mxu0 0.0
    %1704 = vmatpush1.msra.mxu0 0.0
    %1705 = vmatprep.subr.mxu0 0.0
    %1706 = vmatpush1.msra.mxu0 0.0
    %1707 = vmatprep.subr.mxu0 0.0
    %1708 = vmatpush1.msra.mxu0 0.0
    %1709 = vmatprep.subr.mxu0 0.0
    %1710 = vmatpush1.msra.mxu0 0.0
    %1711 = vmatprep.subr.mxu0 0.0
    %1712 = vmatpush1.msra.mxu0 0.0
    %1713 = vmatprep.subr.mxu0 0.0
    %1714 = vmatpush1.msra.mxu0 0.0
    %1715 = vmatprep.subr.mxu0 0.0
    %1716 = vmatpush1.msra.mxu0 0.0
    %1717 = vmatprep.subr.mxu0 0.0
    %1718 = vmatpush1.msra.mxu0 0.0
    %1719 = vmatprep.subr.mxu0 0.0
    %1720 = vmatpush1.msra.mxu0 0.0
    %1721 = vmatprep.subr.mxu0 0.0
    %1722 = vmatpush1.msra.mxu0 0.0
    %1723 = vmatprep.subr.mxu0 0.0
    %1724 = vmatpush1.msra.mxu0 0.0
    %1725 = vmatprep.subr.mxu0 0.0
    %1726 = vmatpush1.msra.mxu0 0.0
    %1727 = vmatprep.subr.mxu0 0.0
    %1728 = vmatpush1.msra.mxu0 0.0
    %1729 = vmatprep.subr.mxu0 0.0
    %1730 = vmatpush1.msra.mxu0 0.0
    %1731 = vmatprep.subr.mxu0 0.0
    %1732 = vmatpush1.msra.mxu0 0.0
    %1733 = vmatprep.subr.mxu0 0.0
    %1734 = vmatpush1.msra.mxu0 0.0
    %1735 = vmatprep.subr.mxu0 0.0
    %1736 = vmatpush1.msra.mxu0 0.0
    %1737 = vmatprep.subr.mxu0 0.0
    %1738 = vmatpush1.msra.mxu0 0.0
    %1739 = vmatprep.subr.mxu0 0.0
    %1740 = vmatpush1.msra.mxu0 0.0
    %1741 = vmatprep.subr.mxu0 0.0
    %1742 = vmatpush1.msra.mxu0 0.0
    %1743 = vmatprep.subr.mxu0 0.0
    %1744 = vmatpush1.msra.mxu0 0.0
    %1745 = vmatprep.subr.mxu0 0.0
    %1746 = vmatpush1.msra.mxu0 0.0
    %1747 = vmatprep.mubr.f32.mxu0 0.0
    %1748 = vmatmul.mubr.f32.gmra.mrb[0].mxu0 %v1681
    %v1749 = vpop.f32.mrb[0].mxu0
    %v1750 = vadd.f32 %v1679, %v1749
    %v1751 = vpop.f32.mrb[0].mxu0
    %1752 = vdwg.mxu0
    %v1753 = vld [vmem:[%s2] sm:$0xff]
    %v1754 = vld [vmem:[%s2 + $0x8] sm:$0xff]
    %v1755 = vld [vmem:[%s15] sm:$0xff]
    %v1756 = vld [vmem:[%s15 + $0x8] sm:$0xff]
    %v1757 = vld [vmem:[%s17] sm:$0x1]
    %v1758 = vlaneseq
    %v1759 = vshrl.u32 %v1758, 7
    %v1760 = vsub.s32 0, %v1759
    %v1761 = vrot.slane %v1757, %v1760
    %v1763 = vsel %vm1001, %v1753, 0
    %v1766 = vsel %vm1001, %v1754, 0
    %1768 = vmatprep.subr.mxu0 0.0
    %1769 = vmatpush1.msra.mxu0 %v1755
    %1770 = vmatprep.subr.mxu0 0.0
    %1771 = vmatpush1.msra.mxu0 %v1756
    %1772 = vmatprep.subr.mxu0 0.0
    %1773 = vmatpush1.msra.mxu0 0.0
    %1774 = vmatprep.subr.mxu0 0.0
    %1775 = vmatpush1.msra.mxu0 0.0
    %1776 = vmatprep.subr.mxu0 0.0
    %1777 = vmatpush1.msra.mxu0 0.0
    %1778 = vmatprep.subr.mxu0 0.0
    %1779 = vmatpush1.msra.mxu0 0.0
    %1780 = vmatprep.subr.mxu0 0.0
    %1781 = vmatpush1.msra.mxu0 0.0
    %1782 = vmatprep.subr.mxu0 0.0
    %1783 = vmatpush1.msra.mxu0 0.0
    %1784 = vmatprep.subr.mxu0 0.0
    %1785 = vmatpush1.msra.mxu0 0.0
    %1786 = vmatprep.subr.mxu0 0.0
    %1787 = vmatpush1.msra.mxu0 0.0
    %1788 = vmatprep.subr.mxu0 0.0
    %1789 = vmatpush1.msra.mxu0 0.0
    %1790 = vmatprep.subr.mxu0 0.0
    %1791 = vmatpush1.msra.mxu0 0.0
    %1792 = vmatprep.subr.mxu0 0.0
    %1793 = vmatpush1.msra.mxu0 0.0
    %1794 = vmatprep.subr.mxu0 0.0
    %1795 = vmatpush1.msra.mxu0 0.0
    %1796 = vmatprep.subr.mxu0 0.0
    %1797 = vmatpush1.msra.mxu0 0.0
    %1798 = vmatprep.subr.mxu0 0.0
    %1799 = vmatpush1.msra.mxu0 0.0
    %1800 = vmatprep.subr.mxu0 0.0
    %1801 = vmatpush1.msra.mxu0 0.0
    %1802 = vmatprep.subr.mxu0 0.0
    %1803 = vmatpush1.msra.mxu0 0.0
    %1804 = vmatprep.subr.mxu0 0.0
    %1805 = vmatpush1.msra.mxu0 0.0
    %1806 = vmatprep.subr.mxu0 0.0
    %1807 = vmatpush1.msra.mxu0 0.0
    %1808 = vmatprep.subr.mxu0 0.0
    %1809 = vmatpush1.msra.mxu0 0.0
    %1810 = vmatprep.subr.mxu0 0.0
    %1811 = vmatpush1.msra.mxu0 0.0
    %1812 = vmatprep.subr.mxu0 0.0
    %1813 = vmatpush1.msra.mxu0 0.0
    %1814 = vmatprep.subr.mxu0 0.0
    %1815 = vmatpush1.msra.mxu0 0.0
    %1816 = vmatprep.subr.mxu0 0.0
    %1817 = vmatpush1.msra.mxu0 0.0
    %1818 = vmatprep.subr.mxu0 0.0
    %1819 = vmatpush1.msra.mxu0 0.0
    %1820 = vmatprep.subr.mxu0 0.0
    %1821 = vmatpush1.msra.mxu0 0.0
    %1822 = vmatprep.subr.mxu0 0.0
    %1823 = vmatpush1.msra.mxu0 0.0
    %1824 = vmatprep.subr.mxu0 0.0
    %1825 = vmatpush1.msra.mxu0 0.0
    %1826 = vmatprep.subr.mxu0 0.0
    %1827 = vmatpush1.msra.mxu0 0.0
    %1828 = vmatprep.subr.mxu0 0.0
    %1829 = vmatpush1.msra.mxu0 0.0
    %1830 = vmatprep.subr.mxu0 0.0
    %1831 = vmatpush1.msra.mxu0 0.0
    %1832 = vmatprep.mubr.f32.mxu0 0.0
    %1833 = vmatmul.mubr.f32.gmra.mrb[0].mxu0 %v1763
    %v1834 = vpop.f32.mrb[0].mxu0
    %v1835 = vadd.f32 %v1761, %v1834
    %v1836 = vpop.f32.mrb[0].mxu0
    %1837 = vmatprep.mubr.f32.mxu0 0.0
    %1838 = vmatmul.mubr.f32.gmra.mrb[0].mxu0 %v1766
    %v1839 = vpop.f32.mrb[0].mxu0
    %v1840 = vadd.f32 %v1761, %v1839
    %v1841 = vpop.f32.mrb[0].mxu0
    %1842 = vdwg.mxu0
    %v1843 = vmax.f32 %v1835, 0.0
    %v1844 = vmax.f32 %v1840, 0.0
    %v1845 = vld [vmem:[%s16] sm:$0xff]
    %v1847 = vsel %vm926, %v1843, 0
    %v1850 = vsel %vm926, %v1844, 0
    %1852 = vmatprep.subr.mxu0 0.0
    %1853 = vmatpush1.msra.mxu0 %v1845
    %1854 = vmatprep.subr.mxu0 0.0
    %1855 = vmatpush1.msra.mxu0 0.0
    %1856 = vmatprep.subr.mxu0 0.0
    %1857 = vmatpush1.msra.mxu0 0.0
    %1858 = vmatprep.subr.mxu0 0.0
    %1859 = vmatpush1.msra.mxu0 0.0
    %1860 = vmatprep.subr.mxu0 0.0
    %1861 = vmatpush1.msra.mxu0 0.0
    %1862 = vmatprep.subr.mxu0 0.0
    %1863 = vmatpush1.msra.mxu0 0.0
    %1864 = vmatprep.subr.mxu0 0.0
    %1865 = vmatpush1.msra.mxu0 0.0
    %1866 = vmatprep.subr.mxu0 0.0
    %1867 = vmatpush1.msra.mxu0 0.0
    %1868 = vmatprep.subr.mxu0 0.0
    %1869 = vmatpush1.msra.mxu0 0.0
    %1870 = vmatprep.subr.mxu0 0.0
    %1871 = vmatpush1.msra.mxu0 0.0
    %1872 = vmatprep.subr.mxu0 0.0
    %1873 = vmatpush1.msra.mxu0 0.0
    %1874 = vmatprep.subr.mxu0 0.0
    %1875 = vmatpush1.msra.mxu0 0.0
    %1876 = vmatprep.subr.mxu0 0.0
    %1877 = vmatpush1.msra.mxu0 0.0
    %1878 = vmatprep.subr.mxu0 0.0
    %1879 = vmatpush1.msra.mxu0 0.0
    %1880 = vmatprep.subr.mxu0 0.0
    %1881 = vmatpush1.msra.mxu0 0.0
    %1882 = vmatprep.subr.mxu0 0.0
    %1883 = vmatpush1.msra.mxu0 0.0
    %1884 = vmatprep.subr.mxu0 0.0
    %1885 = vmatpush1.msra.mxu0 0.0
    %1886 = vmatprep.subr.mxu0 0.0
    %1887 = vmatpush1.msra.mxu0 0.0
    %1888 = vmatprep.subr.mxu0 0.0
    %1889 = vmatpush1.msra.mxu0 0.0
    %1890 = vmatprep.subr.mxu0 0.0
    %1891 = vmatpush1.msra.mxu0 0.0
    %1892 = vmatprep.subr.mxu0 0.0
    %1893 = vmatpush1.msra.mxu0 0.0
    %1894 = vmatprep.subr.mxu0 0.0
    %1895 = vmatpush1.msra.mxu0 0.0
    %1896 = vmatprep.subr.mxu0 0.0
    %1897 = vmatpush1.msra.mxu0 0.0
    %1898 = vmatprep.subr.mxu0 0.0
    %1899 = vmatpush1.msra.mxu0 0.0
    %1900 = vmatprep.subr.mxu0 0.0
    %1901 = vmatpush1.msra.mxu0 0.0
    %1902 = vmatprep.subr.mxu0 0.0
    %1903 = vmatpush1.msra.mxu0 0.0
    %1904 = vmatprep.subr.mxu0 0.0
    %1905 = vmatpush1.msra.mxu0 0.0
    %1906 = vmatprep.subr.mxu0 0.0
    %1907 = vmatpush1.msra.mxu0 0.0
    %1908 = vmatprep.subr.mxu0 0.0
    %1909 = vmatpush1.msra.mxu0 0.0
    %1910 = vmatprep.subr.mxu0 0.0
    %1911 = vmatpush1.msra.mxu0 0.0
    %1912 = vmatprep.subr.mxu0 0.0
    %1913 = vmatpush1.msra.mxu0 0.0
    %1914 = vmatprep.subr.mxu0 0.0
    %1915 = vmatpush1.msra.mxu0 0.0
    %1916 = vmatprep.mubr.f32.mxu0 0.0
    %1917 = vmatmul.mubr.f32.gmra.mrb[0].mxu0 %v1847
    %v1918 = vpop.f32.mrb[0].mxu0
    %v1919 = vadd.f32 0.0, %v1918
    %v1920 = vpop.f32.mrb[0].mxu0
    %1921 = vmatprep.mubr.f32.mxu0 0.0
    %1922 = vmatmul.mubr.f32.gmra.mrb[0].mxu0 %v1850
    %v1923 = vpop.f32.mrb[0].mxu0
    %v1924 = vadd.f32 0.0, %v1923
    %v1925 = vpop.f32.mrb[0].mxu0
    %1926 = vdwg.mxu0
    %v1927 = vld [vmem:[%s17 + $0x1] sm:$0x1]
    %v1928 = vlaneseq
    %v1929 = vshrl.u32 %v1928, 7
    %v1930 = vsub.s32 0, %v1929
    %v1931 = vrot.slane %v1927, %v1930
    %1932 = vmatprep.subr.mxu0 0.0
    %1933 = vmatpush1.msra.mxu0 %v1919
    %1934 = vmatprep.subr.mxu0 0.0
    %1935 = vmatpush1.msra.mxu0 %v1924
    %1936 = vmatprep.subr.mxu0 0.0
    %1937 = vmatpush1.msra.mxu0 0.0
    %1938 = vmatprep.subr.mxu0 0.0
    %1939 = vmatpush1.msra.mxu0 0.0
    %1940 = vmatprep.subr.mxu0 0.0
    %1941 = vmatpush1.msra.mxu0 0.0
    %1942 = vmatprep.subr.mxu0 0.0
    %1943 = vmatpush1.msra.mxu0 0.0
    %1944 = vmatprep.subr.mxu0 0.0
    %1945 = vmatpush1.msra.mxu0 0.0
    %1946 = vmatprep.subr.mxu0 0.0
    %1947 = vmatpush1.msra.mxu0 0.0
    %1948 = vmatprep.subr.mxu0 0.0
    %1949 = vmatpush1.msra.mxu0 0.0
    %1950 = vmatprep.subr.mxu0 0.0
    %1951 = vmatpush1.msra.mxu0 0.0
    %1952 = vmatprep.subr.mxu0 0.0
    %1953 = vmatpush1.msra.mxu0 0.0
    %1954 = vmatprep.subr.mxu0 0.0
    %1955 = vmatpush1.msra.mxu0 0.0
    %1956 = vmatprep.subr.mxu0 0.0
    %1957 = vmatpush1.msra.mxu0 0.0
    %1958 = vmatprep.subr.mxu0 0.0
    %1959 = vmatpush1.msra.mxu0 0.0
    %1960 = vmatprep.subr.mxu0 0.0
    %1961 = vmatpush1.msra.mxu0 0.0
    %1962 = vmatprep.subr.mxu0 0.0
    %1963 = vmatpush1.msra.mxu0 0.0
    %1964 = vmatprep.subr.mxu0 0.0
    %1965 = vmatpush1.msra.mxu0 0.0
    %1966 = vmatprep.subr.mxu0 0.0
    %1967 = vmatpush1.msra.mxu0 0.0
    %1968 = vmatprep.subr.mxu0 0.0
    %1969 = vmatpush1.msra.mxu0 0.0
    %1970 = vmatprep.subr.mxu0 0.0
    %1971 = vmatpush1.msra.mxu0 0.0
    %1972 = vmatprep.subr.mxu0 0.0
    %1973 = vmatpush1.msra.mxu0 0.0
    %1974 = vmatprep.subr.mxu0 0.0
    %1975 = vmatpush1.msra.mxu0 0.0
    %1976 = vmatprep.subr.mxu0 0.0
    %1977 = vmatpush1.msra.mxu0 0.0
    %1978 = vmatprep.subr.mxu0 0.0
    %1979 = vmatpush1.msra.mxu0 0.0
    %1980 = vmatprep.subr.mxu0 0.0
    %1981 = vmatpush1.msra.mxu0 0.0
    %1982 = vmatprep.subr.mxu0 0.0
    %1983 = vmatpush1.msra.mxu0 0.0
    %1984 = vmatprep.subr.mxu0 0.0
    %1985 = vmatpush1.msra.mxu0 0.0
    %1986 = vmatprep.subr.mxu0 0.0
    %1987 = vmatpush1.msra.mxu0 0.0
    %1988 = vmatprep.subr.mxu0 0.0
    %1989 = vmatpush1.msra.mxu0 0.0
    %1990 = vmatprep.subr.mxu0 0.0
    %1991 = vmatpush1.msra.mxu0 0.0
    %1992 = vmatprep.subr.mxu0 0.0
    %1993 = vmatpush1.msra.mxu0 0.0
    %1994 = vmatprep.subr.mxu0 0.0
    %1995 = vmatpush1.msra.mxu0 0.0
    %1996 = vmatprep.mubr.f32.mxu0 0.0
    %1997 = vmatmul.mubr.f32.gmra.mrb[0].mxu0 %v1763
    %v1998 = vpop.f32.mrb[0].mxu0
    %v1999 = vadd.f32 %v1931, %v1998
    %v2000 = vpop.f32.mrb[0].mxu0
    %2001 = vmatprep.mubr.f32.mxu0 0.0
    %2002 = vmatmul.mubr.f32.gmra.mrb[0].mxu0 %v1766
    %v2003 = vpop.f32.mrb[0].mxu0
    %v2004 = vadd.f32 %v1931, %v2003
    %v2005 = vpop.f32.mrb[0].mxu0
    %2006 = vdwg.mxu0
    %v2007 = vsel %vm926, %v1999, 0.0
    %v2008 = vsel %vm926, %v2004, 0.0
    %v2009 = vadd.f32 %v2007, %v2008
    %v2010 = vrot.slane %v2009, 4
    %v2011 = vadd.f32 %v2009, %v2010
    %v2012 = vrot.slane %v2011, 2
    %v2013 = vadd.f32 %v2011, %v2012
    %v2014 = vrot.slane %v2013, 1
    %v2015 = vadd.f32 %v2013, %v2014
    %v2016 = vrcp.pop 16.0
    %v2017 = vmul.f32 %v2015, %v2016
    %v2018 = vld [vmem:[%s23] sm:$0x1]
    %v2019 = vsel %vm926, %v1750, 1.0
    %2021 = vrot.lane.b32.xlu0 %v1750, 120
    %v2022 = vpop.permute.xlu0 %2021
    %v2024 = vsel %vm926, %v2022, 1.0
    %v2025 = vld [vmem:[%s19] sm:$0xff]
    %v2026 = vld [vmem:[%s19 + $0x8] sm:$0x1]
    %vm2027 = vcmask 72704
    %v2029 = vsel %vm2027, %v2019, 0
    %v2032 = vsel %vm718, %v2026, 0
    %2034 = vmatprep.subr.mxu0 0.0
    %2035 = vmatpush1.msra.mxu0 %v2025
    %2036 = vmatprep.subr.mxu0 0.0
    %2037 = vmatpush1.msra.mxu0 %v2032
    %2038 = vmatprep.subr.mxu0 0.0
    %2039 = vmatpush1.msra.mxu0 0.0
    %2040 = vmatprep.subr.mxu0 0.0
    %2041 = vmatpush1.msra.mxu0 0.0
    %2042 = vmatprep.subr.mxu0 0.0
    %2043 = vmatpush1.msra.mxu0 0.0
    %2044 = vmatprep.subr.mxu0 0.0
    %2045 = vmatpush1.msra.mxu0 0.0
    %2046 = vmatprep.subr.mxu0 0.0
    %2047 = vmatpush1.msra.mxu0 0.0
    %2048 = vmatprep.subr.mxu0 0.0
    %2049 = vmatpush1.msra.mxu0 0.0
    %2050 = vmatprep.subr.mxu0 0.0
    %2051 = vmatpush1.msra.mxu0 0.0
    %2052 = vmatprep.subr.mxu0 0.0
    %2053 = vmatpush1.msra.mxu0 0.0
    %2054 = vmatprep.subr.mxu0 0.0
    %2055 = vmatpush1.msra.mxu0 0.0
    %2056 = vmatprep.subr.mxu0 0.0
    %2057 = vmatpush1.msra.mxu0 0.0
    %2058 = vmatprep.subr.mxu0 0.0
    %2059 = vmatpush1.msra.mxu0 0.0
    %2060 = vmatprep.subr.mxu0 0.0
    %2061 = vmatpush1.msra.mxu0 0.0
    %2062 = vmatprep.subr.mxu0 0.0
    %2063 = vmatpush1.msra.mxu0 0.0
    %2064 = vmatprep.subr.mxu0 0.0
    %2065 = vmatpush1.msra.mxu0 0.0
    %2066 = vmatprep.subr.mxu0 0.0
    %2067 = vmatpush1.msra.mxu0 0.0
    %2068 = vmatprep.subr.mxu0 0.0
    %2069 = vmatpush1.msra.mxu0 0.0
    %2070 = vmatprep.subr.mxu0 0.0
    %2071 = vmatpush1.msra.mxu0 0.0
    %2072 = vmatprep.subr.mxu0 0.0
    %2073 = vmatpush1.msra.mxu0 0.0
    %2074 = vmatprep.subr.mxu0 0.0
    %2075 = vmatpush1.msra.mxu0 0.0
    %2076 = vmatprep.subr.mxu0 0.0
    %2077 = vmatpush1.msra.mxu0 0.0
    %2078 = vmatprep.subr.mxu0 0.0
    %2079 = vmatpush1.msra.mxu0 0.0
    %2080 = vmatprep.subr.mxu0 0.0
    %2081 = vmatpush1.msra.mxu0 0.0
    %2082 = vmatprep.subr.mxu0 0.0
    %2083 = vmatpush1.msra.mxu0 0.0
    %2084 = vmatprep.subr.mxu0 0.0
    %2085 = vmatpush1.msra.mxu0 0.0
    %2086 = vmatprep.subr.mxu0 0.0
    %2087 = vmatpush1.msra.mxu0 0.0
    %2088 = vmatprep.subr.mxu0 0.0
    %2089 = vmatpush1.msra.mxu0 0.0
    %2090 = vmatprep.subr.mxu0 0.0
    %2091 = vmatpush1.msra.mxu0 0.0
    %2092 = vmatprep.subr.mxu0 0.0
    %2093 = vmatpush1.msra.mxu0 0.0
    %2094 = vmatprep.subr.mxu0 0.0
    %2095 = vmatpush1.msra.mxu0 0.0
    %2096 = vmatprep.subr.mxu0 0.0
    %2097 = vmatpush1.msra.mxu0 0.0
    %2098 = vmatprep.mubr.f32.mxu0 0.0
    %2099 = vmatmul.mubr.f32.gmra.mrb[0].mxu0 %v2029
    %v2100 = vpop.f32.mrb[0].mxu0
    %v2101 = vadd.f32 0.0, %v2100
    %v2102 = vpop.f32.mrb[0].mxu0
    %2103 = vdwg.mxu0
    %v2104 = vld [vmem:[%s20] sm:$0xff]
    %v2105 = vld [vmem:[%s20 + $0x8] sm:$0x1]
    %v2107 = vsel %vm2027, %v2024, 0
    %v2110 = vsel %vm718, %v2105, 0
    %2112 = vmatprep.subr.mxu0 0.0
    %2113 = vmatpush1.msra.mxu0 %v2104
    %2114 = vmatprep.subr.mxu0 0.0
    %2115 = vmatpush1.msra.mxu0 %v2110
    %2116 = vmatprep.subr.mxu0 0.0
    %2117 = vmatpush1.msra.mxu0 0.0
    %2118 = vmatprep.subr.mxu0 0.0
    %2119 = vmatpush1.msra.mxu0 0.0
    %2120 = vmatprep.subr.mxu0 0.0
    %2121 = vmatpush1.msra.mxu0 0.0
    %2122 = vmatprep.subr.mxu0 0.0
    %2123 = vmatpush1.msra.mxu0 0.0
    %2124 = vmatprep.subr.mxu0 0.0
    %2125 = vmatpush1.msra.mxu0 0.0
    %2126 = vmatprep.subr.mxu0 0.0
    %2127 = vmatpush1.msra.mxu0 0.0
    %2128 = vmatprep.subr.mxu0 0.0
    %2129 = vmatpush1.msra.mxu0 0.0
    %2130 = vmatprep.subr.mxu0 0.0
    %2131 = vmatpush1.msra.mxu0 0.0
    %2132 = vmatprep.subr.mxu0 0.0
    %2133 = vmatpush1.msra.mxu0 0.0
    %2134 = vmatprep.subr.mxu0 0.0
    %2135 = vmatpush1.msra.mxu0 0.0
    %2136 = vmatprep.subr.mxu0 0.0
    %2137 = vmatpush1.msra.mxu0 0.0
    %2138 = vmatprep.subr.mxu0 0.0
    %2139 = vmatpush1.msra.mxu0 0.0
    %2140 = vmatprep.subr.mxu0 0.0
    %2141 = vmatpush1.msra.mxu0 0.0
    %2142 = vmatprep.subr.mxu0 0.0
    %2143 = vmatpush1.msra.mxu0 0.0
    %2144 = vmatprep.subr.mxu0 0.0
    %2145 = vmatpush1.msra.mxu0 0.0
    %2146 = vmatprep.subr.mxu0 0.0
    %2147 = vmatpush1.msra.mxu0 0.0
    %2148 = vmatprep.subr.mxu0 0.0
    %2149 = vmatpush1.msra.mxu0 0.0
    %2150 = vmatprep.subr.mxu0 0.0
    %2151 = vmatpush1.msra.mxu0 0.0
    %2152 = vmatprep.subr.mxu0 0.0
    %2153 = vmatpush1.msra.mxu0 0.0
    %2154 = vmatprep.subr.mxu0 0.0
    %2155 = vmatpush1.msra.mxu0 0.0
    %2156 = vmatprep.subr.mxu0 0.0
    %2157 = vmatpush1.msra.mxu0 0.0
    %2158 = vmatprep.subr.mxu0 0.0
    %2159 = vmatpush1.msra.mxu0 0.0
    %2160 = vmatprep.subr.mxu0 0.0
    %2161 = vmatpush1.msra.mxu0 0.0
    %2162 = vmatprep.subr.mxu0 0.0
    %2163 = vmatpush1.msra.mxu0 0.0
    %2164 = vmatprep.subr.mxu0 0.0
    %2165 = vmatpush1.msra.mxu0 0.0
    %2166 = vmatprep.subr.mxu0 0.0
    %2167 = vmatpush1.msra.mxu0 0.0
    %2168 = vmatprep.subr.mxu0 0.0
    %2169 = vmatpush1.msra.mxu0 0.0
    %2170 = vmatprep.subr.mxu0 0.0
    %2171 = vmatpush1.msra.mxu0 0.0
    %2172 = vmatprep.subr.mxu0 0.0
    %2173 = vmatpush1.msra.mxu0 0.0
    %2174 = vmatprep.subr.mxu0 0.0
    %2175 = vmatpush1.msra.mxu0 0.0
    %2176 = vmatprep.mubr.f32.mxu0 0.0
    %2177 = vmatmul.mubr.f32.gmra.mrb[0].mxu0 %v2107
    %v2178 = vpop.f32.mrb[0].mxu0
    %v2179 = vadd.f32 0.0, %v2178
    %v2180 = vpop.f32.mrb[0].mxu0
    %2181 = vdwg.mxu0
    %v2182 = vmul.f32 %v2101, %v2179
    %v2183 = vld [vmem:[%s18] sm:$0xff]
    %v2184 = vld [vmem:[%s18 + $0x8] sm:$0xff]
    %v2185 = vld [vmem:[%s18 + $0x10] sm:$0xff]
    %v2186 = vld [vmem:[%s18 + $0x18] sm:$0xff]
    %v2187 = vld [vmem:[%s18 + $0x20] sm:$0xff]
    %v2188 = vld [vmem:[%s18 + $0x28] sm:$0xff]
    %v2189 = vld [vmem:[%s18 + $0x30] sm:$0xff]
    %v2190 = vld [vmem:[%s18 + $0x38] sm:$0xff]
    %v2191 = vld [vmem:[%s18 + $0x40] sm:$0xff]
    %v2192 = vld [vmem:[%s18 + $0x48] sm:$0xff]
    %v2193 = vld [vmem:[%s18 + $0x50] sm:$0x1]
    %vm2194 = vcmask 662528
    %v2196 = vsel %vm2194, %v2182, 0
    %v2199 = vsel %vm718, %v2193, 0
    %2201 = vmatprep.subr.mxu0 0.0
    %2202 = vmatpush1.msra.mxu0 %v2183
    %2203 = vmatprep.subr.mxu0 0.0
    %2204 = vmatpush1.msra.mxu0 %v2184
    %2205 = vmatprep.subr.mxu0 0.0
    %2206 = vmatpush1.msra.mxu0 %v2185
    %2207 = vmatprep.subr.mxu0 0.0
    %2208 = vmatpush1.msra.mxu0 %v2186
    %2209 = vmatprep.subr.mxu0 0.0
    %2210 = vmatpush1.msra.mxu0 %v2187
    %2211 = vmatprep.subr.mxu0 0.0
    %2212 = vmatpush1.msra.mxu0 %v2188
    %2213 = vmatprep.subr.mxu0 0.0
    %2214 = vmatpush1.msra.mxu0 %v2189
    %2215 = vmatprep.subr.mxu0 0.0
    %2216 = vmatpush1.msra.mxu0 %v2190
    %2217 = vmatprep.subr.mxu0 0.0
    %2218 = vmatpush1.msra.mxu0 %v2191
    %2219 = vmatprep.subr.mxu0 0.0
    %2220 = vmatpush1.msra.mxu0 %v2192
    %2221 = vmatprep.subr.mxu0 0.0
    %2222 = vmatpush1.msra.mxu0 %v2199
    %2223 = vmatprep.subr.mxu0 0.0
    %2224 = vmatpush1.msra.mxu0 0.0
    %2225 = vmatprep.subr.mxu0 0.0
    %2226 = vmatpush1.msra.mxu0 0.0
    %2227 = vmatprep.subr.mxu0 0.0
    %2228 = vmatpush1.msra.mxu0 0.0
    %2229 = vmatprep.subr.mxu0 0.0
    %2230 = vmatpush1.msra.mxu0 0.0
    %2231 = vmatprep.subr.mxu0 0.0
    %2232 = vmatpush1.msra.mxu0 0.0
    %2233 = vmatprep.subr.mxu0 0.0
    %2234 = vmatpush1.msra.mxu0 0.0
    %2235 = vmatprep.subr.mxu0 0.0
    %2236 = vmatpush1.msra.mxu0 0.0
    %2237 = vmatprep.subr.mxu0 0.0
    %2238 = vmatpush1.msra.mxu0 0.0
    %2239 = vmatprep.subr.mxu0 0.0
    %2240 = vmatpush1.msra.mxu0 0.0
    %2241 = vmatprep.subr.mxu0 0.0
    %2242 = vmatpush1.msra.mxu0 0.0
    %2243 = vmatprep.subr.mxu0 0.0
    %2244 = vmatpush1.msra.mxu0 0.0
    %2245 = vmatprep.subr.mxu0 0.0
    %2246 = vmatpush1.msra.mxu0 0.0
    %2247 = vmatprep.subr.mxu0 0.0
    %2248 = vmatpush1.msra.mxu0 0.0
    %2249 = vmatprep.subr.mxu0 0.0
    %2250 = vmatpush1.msra.mxu0 0.0
    %2251 = vmatprep.subr.mxu0 0.0
    %2252 = vmatpush1.msra.mxu0 0.0
    %2253 = vmatprep.subr.mxu0 0.0
    %2254 = vmatpush1.msra.mxu0 0.0
    %2255 = vmatprep.subr.mxu0 0.0
    %2256 = vmatpush1.msra.mxu0 0.0
    %2257 = vmatprep.subr.mxu0 0.0
    %2258 = vmatpush1.msra.mxu0 0.0
    %2259 = vmatprep.subr.mxu0 0.0
    %2260 = vmatpush1.msra.mxu0 0.0
    %2261 = vmatprep.subr.mxu0 0.0
    %2262 = vmatpush1.msra.mxu0 0.0
    %2263 = vmatprep.subr.mxu0 0.0
    %2264 = vmatpush1.msra.mxu0 0.0
    %2265 = vmatprep.mubr.f32.mxu0 0.0
    %2266 = vmatmul.mubr.f32.gmra.mrb[0].mxu0 %v2196
    %v2267 = vpop.f32.mrb[0].mxu0
    %v2268 = vadd.f32 %v2018, %v2267
    %v2269 = vpop.f32.mrb[0].mxu0
    %2270 = vdwg.mxu0
    %v2271 = vld [vmem:[%s21] sm:$0xff]
    %v2272 = vld [vmem:[%s21 + $0x8] sm:$0xff]
    %v2274 = vlaneseq
    %v2275 = vshrl.u32 %v2274, 7
    %v2276 = vsub.s32 0, %v2275
    %v2277 = vrot.slane %v2018, %v2276
    %2278 = vrot.lane.b32.xlu0 %v2277, 120
    %v2279 = vpop.permute.xlu0 %2278
    %v2281 = vsel %vm1001, %v1750, 0
    %2283 = vmatprep.subr.mxu0 0.0
    %2284 = vmatpush1.msra.mxu0 %v2271
    %2285 = vmatprep.subr.mxu0 0.0
    %2286 = vmatpush1.msra.mxu0 %v2272
    %2287 = vmatprep.subr.mxu0 0.0
    %2288 = vmatpush1.msra.mxu0 0.0
    %2289 = vmatprep.subr.mxu0 0.0
    %2290 = vmatpush1.msra.mxu0 0.0
    %2291 = vmatprep.subr.mxu0 0.0
    %2292 = vmatpush1.msra.mxu0 0.0
    %2293 = vmatprep.subr.mxu0 0.0
    %2294 = vmatpush1.msra.mxu0 0.0
    %2295 = vmatprep.subr.mxu0 0.0
    %2296 = vmatpush1.msra.mxu0 0.0
    %2297 = vmatprep.subr.mxu0 0.0
    %2298 = vmatpush1.msra.mxu0 0.0
    %2299 = vmatprep.subr.mxu0 0.0
    %2300 = vmatpush1.msra.mxu0 0.0
    %2301 = vmatprep.subr.mxu0 0.0
    %2302 = vmatpush1.msra.mxu0 0.0
    %2303 = vmatprep.subr.mxu0 0.0
    %2304 = vmatpush1.msra.mxu0 0.0
    %2305 = vmatprep.subr.mxu0 0.0
    %2306 = vmatpush1.msra.mxu0 0.0
    %2307 = vmatprep.subr.mxu0 0.0
    %2308 = vmatpush1.msra.mxu0 0.0
    %2309 = vmatprep.subr.mxu0 0.0
    %2310 = vmatpush1.msra.mxu0 0.0
    %2311 = vmatprep.subr.mxu0 0.0
    %2312 = vmatpush1.msra.mxu0 0.0
    %2313 = vmatprep.subr.mxu0 0.0
    %2314 = vmatpush1.msra.mxu0 0.0
    %2315 = vmatprep.subr.mxu0 0.0
    %2316 = vmatpush1.msra.mxu0 0.0
    %2317 = vmatprep.subr.mxu0 0.0
    %2318 = vmatpush1.msra.mxu0 0.0
    %2319 = vmatprep.subr.mxu0 0.0
    %2320 = vmatpush1.msra.mxu0 0.0
    %2321 = vmatprep.subr.mxu0 0.0
    %2322 = vmatpush1.msra.mxu0 0.0
    %2323 = vmatprep.subr.mxu0 0.0
    %2324 = vmatpush1.msra.mxu0 0.0
    %2325 = vmatprep.subr.mxu0 0.0
    %2326 = vmatpush1.msra.mxu0 0.0
    %2327 = vmatprep.subr.mxu0 0.0
    %2328 = vmatpush1.msra.mxu0 0.0
    %2329 = vmatprep.subr.mxu0 0.0
    %2330 = vmatpush1.msra.mxu0 0.0
    %2331 = vmatprep.subr.mxu0 0.0
    %2332 = vmatpush1.msra.mxu0 0.0
    %2333 = vmatprep.subr.mxu0 0.0
    %2334 = vmatpush1.msra.mxu0 0.0
    %2335 = vmatprep.subr.mxu0 0.0
    %2336 = vmatpush1.msra.mxu0 0.0
    %2337 = vmatprep.subr.mxu0 0.0
    %2338 = vmatpush1.msra.mxu0 0.0
    %2339 = vmatprep.subr.mxu0 0.0
    %2340 = vmatpush1.msra.mxu0 0.0
    %2341 = vmatprep.subr.mxu0 0.0
    %2342 = vmatpush1.msra.mxu0 0.0
    %2343 = vmatprep.subr.mxu0 0.0
    %2344 = vmatpush1.msra.mxu0 0.0
    %2345 = vmatprep.subr.mxu0 0.0
    %2346 = vmatpush1.msra.mxu0 0.0
    %2347 = vmatprep.mubr.f32.mxu0 0.0
    %2348 = vmatmul.mubr.f32.gmra.mrb[0].mxu0 %v2281
    %v2349 = vpop.f32.mrb[0].mxu0
    %v2350 = vadd.f32 %v2279, %v2349
    %v2351 = vpop.f32.mrb[0].mxu0
    %2352 = vdwg.mxu0
    %2354 = vrot.lane.b32.xlu0 %v2350, 8
    %v2355 = vpop.permute.xlu0 %2354
    %v2357 = vsel %vm926, %v2268, %v2355
    %2360 = vrot.lane.b32.xlu0 %v2271, 120
    %v2361 = vpop.permute.xlu0 %2360
    %2362 = vrot.lane.b32.xlu0 %v2272, 120
    %v2363 = vpop.permute.xlu0 %2362
    %2366 = vrot.lane.b32.xlu0 %v2277, 112
    %v2367 = vpop.permute.xlu0 %2366
    %v2370 = vsel %vm1001, %v2357, 0
    %2372 = vmatprep.subr.mxu0 0.0
    %2373 = vmatpush1.msra.mxu0 %v2361
    %2374 = vmatprep.subr.mxu0 0.0
    %2375 = vmatpush1.msra.mxu0 %v2363
    %2376 = vmatprep.subr.mxu0 0.0
    %2377 = vmatpush1.msra.mxu0 0.0
    %2378 = vmatprep.subr.mxu0 0.0
    %2379 = vmatpush1.msra.mxu0 0.0
    %2380 = vmatprep.subr.mxu0 0.0
    %2381 = vmatpush1.msra.mxu0 0.0
    %2382 = vmatprep.subr.mxu0 0.0
    %2383 = vmatpush1.msra.mxu0 0.0
    %2384 = vmatprep.subr.mxu0 0.0
    %2385 = vmatpush1.msra.mxu0 0.0
    %2386 = vmatprep.subr.mxu0 0.0
    %2387 = vmatpush1.msra.mxu0 0.0
    %2388 = vmatprep.subr.mxu0 0.0
    %2389 = vmatpush1.msra.mxu0 0.0
    %2390 = vmatprep.subr.mxu0 0.0
    %2391 = vmatpush1.msra.mxu0 0.0
    %2392 = vmatprep.subr.mxu0 0.0
    %2393 = vmatpush1.msra.mxu0 0.0
    %2394 = vmatprep.subr.mxu0 0.0
    %2395 = vmatpush1.msra.mxu0 0.0
    %2396 = vmatprep.subr.mxu0 0.0
    %2397 = vmatpush1.msra.mxu0 0.0
    %2398 = vmatprep.subr.mxu0 0.0
    %2399 = vmatpush1.msra.mxu0 0.0
    %2400 = vmatprep.subr.mxu0 0.0
    %2401 = vmatpush1.msra.mxu0 0.0
    %2402 = vmatprep.subr.mxu0 0.0
    %2403 = vmatpush1.msra.mxu0 0.0
    %2404 = vmatprep.subr.mxu0 0.0
    %2405 = vmatpush1.msra.mxu0 0.0
    %2406 = vmatprep.subr.mxu0 0.0
    %2407 = vmatpush1.msra.mxu0 0.0
    %2408 = vmatprep.subr.mxu0 0.0
    %2409 = vmatpush1.msra.mxu0 0.0
    %2410 = vmatprep.subr.mxu0 0.0
    %2411 = vmatpush1.msra.mxu0 0.0
    %2412 = vmatprep.subr.mxu0 0.0
    %2413 = vmatpush1.msra.mxu0 0.0
    %2414 = vmatprep.subr.mxu0 0.0
    %2415 = vmatpush1.msra.mxu0 0.0
    %2416 = vmatprep.subr.mxu0 0.0
    %2417 = vmatpush1.msra.mxu0 0.0
    %2418 = vmatprep.subr.mxu0 0.0
    %2419 = vmatpush1.msra.mxu0 0.0
    %2420 = vmatprep.subr.mxu0 0.0
    %2421 = vmatpush1.msra.mxu0 0.0
    %2422 = vmatprep.subr.mxu0 0.0
    %2423 = vmatpush1.msra.mxu0 0.0
    %2424 = vmatprep.subr.mxu0 0.0
    %2425 = vmatpush1.msra.mxu0 0.0
    %2426 = vmatprep.subr.mxu0 0.0
    %2427 = vmatpush1.msra.mxu0 0.0
    %2428 = vmatprep.subr.mxu0 0.0
    %2429 = vmatpush1.msra.mxu0 0.0
    %2430 = vmatprep.subr.mxu0 0.0
    %2431 = vmatpush1.msra.mxu0 0.0
    %2432 = vmatprep.subr.mxu0 0.0
    %2433 = vmatpush1.msra.mxu0 0.0
    %2434 = vmatprep.subr.mxu0 0.0
    %2435 = vmatpush1.msra.mxu0 0.0
    %2436 = vmatprep.mubr.f32.mxu0 0.0
    %2437 = vmatmul.mubr.f32.gmra.mrb[0].mxu0 %v2370
    %v2438 = vpop.f32.mrb[0].mxu0
    %v2439 = vadd.f32 %v2367, %v2438
    %v2440 = vpop.f32.mrb[0].mxu0
    %2441 = vdwg.mxu0
    %2442 = vrot.lane.b32.xlu0 %v1750, 8
    %v2443 = vpop.permute.xlu0 %2442
    %v2445 = vsel %vm926, %v2017, %v2443
    %2446 = vrot.lane.b32.xlu0 %v2271, 112
    %v2447 = vpop.permute.xlu0 %2446
    %2448 = vrot.lane.b32.xlu0 %v2272, 112
    %v2449 = vpop.permute.xlu0 %2448
    %2452 = vrot.lane.b32.xlu0 %v2277, 104
    %v2453 = vpop.permute.xlu0 %2452
    %v2456 = vsel %vm1001, %v2445, 0
    %2458 = vmatprep.subr.mxu0 0.0
    %2459 = vmatpush1.msra.mxu0 %v2447
    %2460 = vmatprep.subr.mxu0 0.0
    %2461 = vmatpush1.msra.mxu0 %v2449
    %2462 = vmatprep.subr.mxu0 0.0
    %2463 = vmatpush1.msra.mxu0 0.0
    %2464 = vmatprep.subr.mxu0 0.0
    %2465 = vmatpush1.msra.mxu0 0.0
    %2466 = vmatprep.subr.mxu0 0.0
    %2467 = vmatpush1.msra.mxu0 0.0
    %2468 = vmatprep.subr.mxu0 0.0
    %2469 = vmatpush1.msra.mxu0 0.0
    %2470 = vmatprep.subr.mxu0 0.0
    %2471 = vmatpush1.msra.mxu0 0.0
    %2472 = vmatprep.subr.mxu0 0.0
    %2473 = vmatpush1.msra.mxu0 0.0
    %2474 = vmatprep.subr.mxu0 0.0
    %2475 = vmatpush1.msra.mxu0 0.0
    %2476 = vmatprep.subr.mxu0 0.0
    %2477 = vmatpush1.msra.mxu0 0.0
    %2478 = vmatprep.subr.mxu0 0.0
    %2479 = vmatpush1.msra.mxu0 0.0
    %2480 = vmatprep.subr.mxu0 0.0
    %2481 = vmatpush1.msra.mxu0 0.0
    %2482 = vmatprep.subr.mxu0 0.0
    %2483 = vmatpush1.msra.mxu0 0.0
    %2484 = vmatprep.subr.mxu0 0.0
    %2485 = vmatpush1.msra.mxu0 0.0
    %2486 = vmatprep.subr.mxu0 0.0
    %2487 = vmatpush1.msra.mxu0 0.0
    %2488 = vmatprep.subr.mxu0 0.0
    %2489 = vmatpush1.msra.mxu0 0.0
    %2490 = vmatprep.subr.mxu0 0.0
    %2491 = vmatpush1.msra.mxu0 0.0
    %2492 = vmatprep.subr.mxu0 0.0
    %2493 = vmatpush1.msra.mxu0 0.0
    %2494 = vmatprep.subr.mxu0 0.0
    %2495 = vmatpush1.msra.mxu0 0.0
    %2496 = vmatprep.subr.mxu0 0.0
    %2497 = vmatpush1.msra.mxu0 0.0
    %2498 = vmatprep.subr.mxu0 0.0
    %2499 = vmatpush1.msra.mxu0 0.0
    %2500 = vmatprep.subr.mxu0 0.0
    %2501 = vmatpush1.msra.mxu0 0.0
    %2502 = vmatprep.subr.mxu0 0.0
    %2503 = vmatpush1.msra.mxu0 0.0
    %2504 = vmatprep.subr.mxu0 0.0
    %2505 = vmatpush1.msra.mxu0 0.0
    %2506 = vmatprep.subr.mxu0 0.0
    %2507 = vmatpush1.msra.mxu0 0.0
    %2508 = vmatprep.subr.mxu0 0.0
    %2509 = vmatpush1.msra.mxu0 0.0
    %2510 = vmatprep.subr.mxu0 0.0
    %2511 = vmatpush1.msra.mxu0 0.0
    %2512 = vmatprep.subr.mxu0 0.0
    %2513 = vmatpush1.msra.mxu0 0.0
    %2514 = vmatprep.subr.mxu0 0.0
    %2515 = vmatpush1.msra.mxu0 0.0
    %2516 = vmatprep.subr.mxu0 0.0
    %2517 = vmatpush1.msra.mxu0 0.0
    %2518 = vmatprep.subr.mxu0 0.0
    %2519 = vmatpush1.msra.mxu0 0.0
    %2520 = vmatprep.subr.mxu0 0.0
    %2521 = vmatpush1.msra.mxu0 0.0
    %2522 = vmatprep.mubr.f32.mxu0 0.0
    %2523 = vmatmul.mubr.f32.gmra.mrb[0].mxu0 %v2456
    %v2524 = vpop.f32.mrb[0].mxu0
    %v2525 = vadd.f32 %v2453, %v2524
    %v2526 = vpop.f32.mrb[0].mxu0
    %2527 = vdwg.mxu0
    %v2528 = vxor.u32 %v2525, 2147483648
    %v2529 = vmul.f32 %v2528, 1.442695
    %v2530 = vpow.pop %v2529
    %v2531 = vadd.f32 %v2530, 1.0
    %v2532 = vrcp.pop %v2531
    %v2533 = vmul.f32 1.0, %v2532
    %v2534 = vsel %vm926, %v2017, %v1750
    %2535 = vrot.lane.b32.xlu0 %v2271, 111
    %v2536 = vpop.permute.xlu0 %2535
    %2537 = vrot.lane.b32.xlu0 %v2272, 111
    %v2538 = vpop.permute.xlu0 %2537
    %2541 = vrot.lane.b32.xlu0 %v2277, 103
    %v2542 = vpop.permute.xlu0 %2541
    %v2545 = vsel %vm1001, %v2534, 0
    %2547 = vmatprep.subr.mxu0 0.0
    %2548 = vmatpush1.msra.mxu0 %v2536
    %2549 = vmatprep.subr.mxu0 0.0
    %2550 = vmatpush1.msra.mxu0 %v2538
    %2551 = vmatprep.subr.mxu0 0.0
    %2552 = vmatpush1.msra.mxu0 0.0
    %2553 = vmatprep.subr.mxu0 0.0
    %2554 = vmatpush1.msra.mxu0 0.0
    %2555 = vmatprep.subr.mxu0 0.0
    %2556 = vmatpush1.msra.mxu0 0.0
    %2557 = vmatprep.subr.mxu0 0.0
    %2558 = vmatpush1.msra.mxu0 0.0
    %2559 = vmatprep.subr.mxu0 0.0
    %2560 = vmatpush1.msra.mxu0 0.0
    %2561 = vmatprep.subr.mxu0 0.0
    %2562 = vmatpush1.msra.mxu0 0.0
    %2563 = vmatprep.subr.mxu0 0.0
    %2564 = vmatpush1.msra.mxu0 0.0
    %2565 = vmatprep.subr.mxu0 0.0
    %2566 = vmatpush1.msra.mxu0 0.0
    %2567 = vmatprep.subr.mxu0 0.0
    %2568 = vmatpush1.msra.mxu0 0.0
    %2569 = vmatprep.subr.mxu0 0.0
    %2570 = vmatpush1.msra.mxu0 0.0
    %2571 = vmatprep.subr.mxu0 0.0
    %2572 = vmatpush1.msra.mxu0 0.0
    %2573 = vmatprep.subr.mxu0 0.0
    %2574 = vmatpush1.msra.mxu0 0.0
    %2575 = vmatprep.subr.mxu0 0.0
    %2576 = vmatpush1.msra.mxu0 0.0
    %2577 = vmatprep.subr.mxu0 0.0
    %2578 = vmatpush1.msra.mxu0 0.0
    %2579 = vmatprep.subr.mxu0 0.0
    %2580 = vmatpush1.msra.mxu0 0.0
    %2581 = vmatprep.subr.mxu0 0.0
    %2582 = vmatpush1.msra.mxu0 0.0
    %2583 = vmatprep.subr.mxu0 0.0
    %2584 = vmatpush1.msra.mxu0 0.0
    %2585 = vmatprep.subr.mxu0 0.0
    %2586 = vmatpush1.msra.mxu0 0.0
    %2587 = vmatprep.subr.mxu0 0.0
    %2588 = vmatpush1.msra.mxu0 0.0
    %2589 = vmatprep.subr.mxu0 0.0
    %2590 = vmatpush1.msra.mxu0 0.0
    %2591 = vmatprep.subr.mxu0 0.0
    %2592 = vmatpush1.msra.mxu0 0.0
    %2593 = vmatprep.subr.mxu0 0.0
    %2594 = vmatpush1.msra.mxu0 0.0
    %2595 = vmatprep.subr.mxu0 0.0
    %2596 = vmatpush1.msra.mxu0 0.0
    %2597 = vmatprep.subr.mxu0 0.0
    %2598 = vmatpush1.msra.mxu0 0.0
    %2599 = vmatprep.subr.mxu0 0.0
    %2600 = vmatpush1.msra.mxu0 0.0
    %2601 = vmatprep.subr.mxu0 0.0
    %2602 = vmatpush1.msra.mxu0 0.0
    %2603 = vmatprep.subr.mxu0 0.0
    %2604 = vmatpush1.msra.mxu0 0.0
    %2605 = vmatprep.subr.mxu0 0.0
    %2606 = vmatpush1.msra.mxu0 0.0
    %2607 = vmatprep.subr.mxu0 0.0
    %2608 = vmatpush1.msra.mxu0 0.0
    %2609 = vmatprep.subr.mxu0 0.0
    %2610 = vmatpush1.msra.mxu0 0.0
    %2611 = vmatprep.mubr.f32.mxu0 0.0
    %2612 = vmatmul.mubr.f32.gmra.mrb[0].mxu0 %v2545
    %v2613 = vpop.f32.mrb[0].mxu0
    %v2614 = vadd.f32 %v2542, %v2613
    %v2615 = vpop.f32.mrb[0].mxu0
    %2616 = vdwg.mxu0
    %v2617 = vxor.u32 %v2614, 2147483648
    %v2618 = vmul.f32 %v2617, 1.442695
    %v2619 = vpow.pop %v2618
    %v2620 = vadd.f32 %v2619, 1.0
    %v2621 = vrcp.pop %v2620
    %v2622 = vmul.f32 1.0, %v2621
    %2624 = vset.pattern.permute.xlu0 0
    %2625 = vperm.xlu0 %2624, %v2533
    %v2626 = vpop.permute.xlu0 %2625
    %v2628 = vmul.f32 %v2626, %v1750
    %2630 = vset.pattern.permute.xlu0 0
    %2631 = vperm.xlu0 %2630, %v2622
    %v2632 = vpop.permute.xlu0 %2631
    %v2634 = vmul.f32 %v2632, %v1750
    %2636 = vrot.lane.b32.xlu0 %v2439, 16
    %v2637 = vpop.permute.xlu0 %2636
    %v2639 = vsel %vm926, %v2628, %v2634
    %v2640 = vsel %vm1001, %v2639, %v2637
    %v2641 = vmax.f32 %v2640, 0.0
    %v2642 = vld [vmem:[%s22] sm:$0xff]
    %v2643 = vld [vmem:[%s22 + $0x8] sm:$0xff]
    %v2644 = vld [vmem:[%s22 + $0x10] sm:$0xff]
    %2645 = vrot.lane.b32.xlu0 %v2277, 102
    %v2646 = vpop.permute.xlu0 %2645
    %vm2648 = vcmask 195584
    %v2650 = vsel %vm2648, %v2641, 0
    %2652 = vmatprep.subr.mxu0 0.0
    %2653 = vmatpush1.msra.mxu0 %v2642
    %2654 = vmatprep.subr.mxu0 0.0
    %2655 = vmatpush1.msra.mxu0 %v2643
    %2656 = vmatprep.subr.mxu0 0.0
    %2657 = vmatpush1.msra.mxu0 %v2644
    %2658 = vmatprep.subr.mxu0 0.0
    %2659 = vmatpush1.msra.mxu0 0.0
    %2660 = vmatprep.subr.mxu0 0.0
    %2661 = vmatpush1.msra.mxu0 0.0
    %2662 = vmatprep.subr.mxu0 0.0
    %2663 = vmatpush1.msra.mxu0 0.0
    %2664 = vmatprep.subr.mxu0 0.0
    %2665 = vmatpush1.msra.mxu0 0.0
    %2666 = vmatprep.subr.mxu0 0.0
    %2667 = vmatpush1.msra.mxu0 0.0
    %2668 = vmatprep.subr.mxu0 0.0
    %2669 = vmatpush1.msra.mxu0 0.0
    %2670 = vmatprep.subr.mxu0 0.0
    %2671 = vmatpush1.msra.mxu0 0.0
    %2672 = vmatprep.subr.mxu0 0.0
    %2673 = vmatpush1.msra.mxu0 0.0
    %2674 = vmatprep.subr.mxu0 0.0
    %2675 = vmatpush1.msra.mxu0 0.0
    %2676 = vmatprep.subr.mxu0 0.0
    %2677 = vmatpush1.msra.mxu0 0.0
    %2678 = vmatprep.subr.mxu0 0.0
    %2679 = vmatpush1.msra.mxu0 0.0
    %2680 = vmatprep.subr.mxu0 0.0
    %2681 = vmatpush1.msra.mxu0 0.0
    %2682 = vmatprep.subr.mxu0 0.0
    %2683 = vmatpush1.msra.mxu0 0.0
    %2684 = vmatprep.subr.mxu0 0.0
    %2685 = vmatpush1.msra.mxu0 0.0
    %2686 = vmatprep.subr.mxu0 0.0
    %2687 = vmatpush1.msra.mxu0 0.0
    %2688 = vmatprep.subr.mxu0 0.0
    %2689 = vmatpush1.msra.mxu0 0.0
    %2690 = vmatprep.subr.mxu0 0.0
    %2691 = vmatpush1.msra.mxu0 0.0
    %2692 = vmatprep.subr.mxu0 0.0
    %2693 = vmatpush1.msra.mxu0 0.0
    %2694 = vmatprep.subr.mxu0 0.0
    %2695 = vmatpush1.msra.mxu0 0.0
    %2696 = vmatprep.subr.mxu0 0.0
    %2697 = vmatpush1.msra.mxu0 0.0
    %2698 = vmatprep.subr.mxu0 0.0
    %2699 = vmatpush1.msra.mxu0 0.0
    %2700 = vmatprep.subr.mxu0 0.0
    %2701 = vmatpush1.msra.mxu0 0.0
    %2702 = vmatprep.subr.mxu0 0.0
    %2703 = vmatpush1.msra.mxu0 0.0
    %2704 = vmatprep.subr.mxu0 0.0
    %2705 = vmatpush1.msra.mxu0 0.0
    %2706 = vmatprep.subr.mxu0 0.0
    %2707 = vmatpush1.msra.mxu0 0.0
    %2708 = vmatprep.subr.mxu0 0.0
    %2709 = vmatpush1.msra.mxu0 0.0
    %2710 = vmatprep.subr.mxu0 0.0
    %2711 = vmatpush1.msra.mxu0 0.0
    %2712 = vmatprep.subr.mxu0 0.0
    %2713 = vmatpush1.msra.mxu0 0.0
    %2714 = vmatprep.subr.mxu0 0.0
    %2715 = vmatpush1.msra.mxu0 0.0
    %2716 = vmatprep.mubr.f32.mxu0 0.0
    %2717 = vmatmul.mubr.f32.gmra.mrb[0].mxu0 %v2650
    %v2718 = vpop.f32.mrb[0].mxu0
    %v2719 = vadd.f32 %v2646, %v2718
    %v2720 = vpop.f32.mrb[0].mxu0
    %2721 = vdwg.mxu0
    %vm2722 = vcmask 122880
    %2723 = vst.msk [vmem:[#allocation3] sm:$0x1] %vm2722, %v2719
    // Predicated region
    $region98: #{fusionnet_forward.1} parent=1 // pred_check
      _
    $region99: #{fusionnet_forward.1} parent=1 // pred_check_branch
      %2725 = sbr.rel (0) target = $region101
    $region100: #{fusionnet_forward.1} parent=1 // pred_region
      %s2727 = ssub.s32 16, 16
      %2728 = vsyncadd [#allocation4], %s2727
      %s2730 = sshll.u32 [#allocation3], 4
      %s2731 = int_to_ptr.vmem [resolvable:$true] %s2730
      %2733 = dma.vmem_to_hbm [thread:$0]  %s2731, 16, %s24, [#allocation4]
    $region101: #{fusionnet_forward.1} parent=1 // pred_fallthru
      _
    // Predicated region
    $region102: #{fusionnet_forward.1} parent=1 // pred_check
      _
    $region103: #{fusionnet_forward.1} parent=1 // pred_check_branch
      %2735 = sbr.rel (0) target = $region105
    $region104: #{fusionnet_forward.1} parent=1 // pred_region
      %2736 = dma.done [#allocation4], 16
    $region105: #{fusionnet_forward.1} parent=1 // pred_fallthru
      _
    %2737 = vsyncpa [#allocation4], 1

</llo_original>
